<compile_context>
chip_gen: v7x
topology: tpu7x:2x2x1
jax: 0.10.0
libtpu: 0.0.40
codegen_flags: <defaults>
</compile_context>

<pallas_src>
import jax
import jax.numpy as jnp
from jax.experimental import pallas as pl
from jax.experimental.pallas import tpu as pltpu

LEAKY_SLOPE = 0.2
BN_EPS = 1e-5

# Row layout of the small-parameter slab ([16, 1024] f32).
_ROW_B1, _ROW_B2 = 0, 1
_ROW_B3, _ROW_G3, _ROW_BE3 = 2, 3, 4
_ROW_B4, _ROW_G4, _ROW_BE4 = 5, 6, 7
_ROW_W5, _ROW_B5 = 8, 9


def _leaky_relu(v):
    return jnp.where(v > 0, v, LEAKY_SLOPE * v)


def _make_kernel(B, Bp):
    """Kernel closure over the (static) real batch size B and padded size Bp."""
    inv_b = 1.0 / float(B)

    def kernel(x_ref, y_ref, w1_ref, w2_ref, w3a_ref, w3b_ref, w4_ref,
               slab_ref, out_ref):
        f32 = jnp.float32
        bf16 = jnp.bfloat16

        # Valid-row mask carrying 1/B so sum(z * mask) is the mean over the
        # real batch only (padded rows never contaminate BN statistics).
        row = jax.lax.broadcasted_iota(jnp.int32, (Bp, 1), 0)
        mask = jnp.where(row < B, inv_b, 0.0).astype(f32)

        b1 = slab_ref[_ROW_B1:_ROW_B1 + 1, :]
        b2 = slab_ref[_ROW_B2:_ROW_B2 + 1, :]
        b3 = slab_ref[_ROW_B3:_ROW_B3 + 1, 0:512]
        g3 = slab_ref[_ROW_G3:_ROW_G3 + 1, 0:512]
        be3 = slab_ref[_ROW_BE3:_ROW_BE3 + 1, 0:512]
        b4 = slab_ref[_ROW_B4:_ROW_B4 + 1, 0:256]
        g4 = slab_ref[_ROW_G4:_ROW_G4 + 1, 0:256]
        be4 = slab_ref[_ROW_BE4:_ROW_BE4 + 1, 0:256]
        w5 = slab_ref[_ROW_W5:_ROW_W5 + 1, 0:256]
        b5 = slab_ref[_ROW_B5:_ROW_B5 + 1, 0:1]

        # fc_layer_1: Linear(W*H -> 1024) + LeakyReLU(0.2)   (bf16 MXU, f32 acc)
        h1 = _leaky_relu(
            jnp.dot(x_ref[...], w1_ref[...], preferred_element_type=f32) + b1)

        # fc_layer_2: Linear(10 -> 1024) + LeakyReLU(0.2)
        h2 = _leaky_relu(
            jnp.dot(y_ref[...], w2_ref[...], preferred_element_type=f32) + b2)

        # fc_layer_3: Linear(2048 -> 512) on cat([h1, h2]) + BatchNorm1d + LeakyReLU
        # cat([h1, h2]) @ W3 == h1 @ W3a + h2 @ W3b  (exact split of the weight).
        z3 = (jnp.dot(h1.astype(bf16), w3a_ref[...], preferred_element_type=f32)
              + jnp.dot(h2.astype(bf16), w3b_ref[...], preferred_element_type=f32)
              + b3)
        zm3 = z3 * mask
        m3 = jnp.sum(zm3, axis=0, keepdims=True)
        v3 = jnp.sum(z3 * zm3, axis=0, keepdims=True) - m3 * m3
        s3 = g3 * jax.lax.rsqrt(v3 + BN_EPS)
        t3 = be3 - m3 * s3
        h3 = _leaky_relu(z3 * s3 + t3)

        # fc_layer_4: Linear(512 -> 256) + BatchNorm1d + LeakyReLU
        z4 = jnp.dot(h3.astype(bf16), w4_ref[...], preferred_element_type=f32) + b4
        zm4 = z4 * mask
        m4 = jnp.sum(zm4, axis=0, keepdims=True)
        v4 = jnp.sum(z4 * zm4, axis=0, keepdims=True) - m4 * m4
        s4 = g4 * jax.lax.rsqrt(v4 + BN_EPS)
        t4 = be4 - m4 * s4
        h4 = _leaky_relu(z4 * s4 + t4)

        # fc_final_layer: Linear(256 -> 1) + Sigmoid -- VPU multiply + lane reduce
        z5 = jnp.sum(h4 * w5, axis=-1, keepdims=True) + b5
        out_ref[...] = jax.nn.sigmoid(z5).astype(out_ref.dtype)

    return kernel


def pack_params(params):
    """One-time conversion of PyTorch-layout f32 params into kernel layout.

    Matmul weights: transposed to [in, out], fc3 split into the two concat
    halves, stored as bfloat16.  All small vectors packed into one f32 slab.
    """
    (w1, b1, w2, b2, w3, b3, g3, be3, w4, b4, g4, be4, w5, b5) = params
    bf = lambda a: a.astype(jnp.bfloat16)
    w3_t = w3.T.astype(jnp.float32)  # [2048, 512]

    slab = jnp.zeros((16, 1024), jnp.float32)
    slab = slab.at[_ROW_B1, :1024].set(b1)
    slab = slab.at[_ROW_B2, :1024].set(b2)
    slab = slab.at[_ROW_B3, :512].set(b3)
    slab = slab.at[_ROW_G3, :512].set(g3)
    slab = slab.at[_ROW_BE3, :512].set(be3)
    slab = slab.at[_ROW_B4, :256].set(b4)
    slab = slab.at[_ROW_G4, :256].set(g4)
    slab = slab.at[_ROW_BE4, :256].set(be4)
    slab = slab.at[_ROW_W5, :256].set(w5.reshape(-1))
    slab = slab.at[_ROW_B5, 0].set(b5[0])

    return dict(
        w1_t=bf(w1.T), w2_t=bf(w2.T),
        w3a=bf(w3_t[:1024]), w3b=bf(w3_t[1024:]),
        w4_t=bf(w4.T),
        slab=slab,
    )


def _round_up_batch(B):
    return max(16, ((B + 15) // 16) * 16)  # bf16 native sublane tile is 16


def _pad_rows(a, Bp):
    B = a.shape[0]
    if Bp != B:
        a = jnp.pad(a, ((0, Bp - B), (0, 0)))
    return a


def _prep(image, label, Bp):
    B = image.shape[0]
    x = image.reshape(B, -1).astype(jnp.bfloat16)   # input.view(B, -1)
    y = label.astype(jnp.bfloat16)
    return _pad_rows(x, Bp), _pad_rows(y, Bp)


def _discriminator_call(xg, yg, packed, B):
    """xg: [G, Bp, F] bf16, yg: [G, Bp, L] bf16 -> [G, Bp, 1] f32."""
    G, Bp, F = xg.shape
    L = yg.shape[-1]
    w1, w2, w3a, w3b, w4, slab = (packed["w1_t"], packed["w2_t"], packed["w3a"],
                                  packed["w3b"], packed["w4_t"], packed["slab"])

    def whole(a):  # full-array block, resident across grid steps
        return pl.BlockSpec(a.shape, lambda *_: (0,) * a.ndim)

    in_specs = [
        pl.BlockSpec((None, Bp, F), lambda g: (g, 0, 0)),
        pl.BlockSpec((None, Bp, L), lambda g: (g, 0, 0)),
        whole(w1), whole(w2), whole(w3a), whole(w3b), whole(w4), whole(slab),
    ]
    out_specs = pl.BlockSpec((None, Bp, 1), lambda g: (g, 0, 0))

    weight_bytes = sum(int(a.size) * a.dtype.itemsize
                       for a in (w1, w2, w3a, w3b, w4, slab))
    io_bytes = int(xg.size) * 2 + int(yg.size) * 2 + G * Bp * 4
    act_bytes = Bp * (2 * 1024 + 512 + 256) * 4
    vmem_limit = int(min(64 << 20,
                         max(16 << 20,
                             2 * weight_bytes + 4 * act_bytes + io_bytes + (2 << 20))))

    flops = 2 * G * Bp * (F * 1024 + L * 1024 + 2048 * 512 + 512 * 256 + 256)
    cost = pl.CostEstimate(
        flops=int(flops),
        transcendentals=int(G * (Bp + 512 + 256)),
        bytes_accessed=int(weight_bytes + io_bytes),
    )

    return pl.pallas_call(
        _make_kernel(B, Bp),
        out_shape=jax.ShapeDtypeStruct((G, Bp, 1), jnp.float32),
        grid=(G,),
        in_specs=in_specs,
        out_specs=out_specs,
        compiler_params=pltpu.CompilerParams(
            dimension_semantics=("parallel",),
            vmem_limit_bytes=vmem_limit,
        ),
        cost_estimate=cost,
    )(xg, yg, w1, w2, w3a, w3b, w4, slab)


@jax.jit
def discriminator_forward(image, label, packed):
    """image: [B, 1, H, W] f32 (NCHW), label: [B, 10] f32 -> [B, 1] f32."""
    B = image.shape[0]
    Bp = _round_up_batch(B)
    x, y = _prep(image, label, Bp)
    out = _discriminator_call(x[None], y[None], packed, B)
    return out[0, :B]


@jax.jit
def discriminator_forward_pair(image_a, label_a, image_b, label_b, packed):
    """Evaluate D on two independent batches (e.g. real & fake) in one launch.

    BN statistics are computed per batch (per grid step) -- identical to two
    separate PyTorch calls; both v7x TensorCores are used via the parallel grid.
    """
    B = image_a.shape[0]
    Bp = _round_up_batch(B)
    xa, ya = _prep(image_a, label_a, Bp)
    xb, yb = _prep(image_b, label_b, Bp)
    x = jnp.stack([xa, xb], axis=0)
    y = jnp.stack([ya, yb], axis=0)
    out = _discriminator_call(x, y, packed, B)
    return out[0, :B], out[1, :B]


def init_params(key, in_features, label_features=10):
    """Deterministic init mimicking PyTorch Linear default (U(-1/sqrt(fan_in), ..))."""
    def linear(k, fan_out, fan_in):
        kw, kb = jax.random.split(k)
        bound = 1.0 / jnp.sqrt(fan_in)
        w = jax.random.uniform(kw, (fan_out, fan_in), jnp.float32, -bound, bound)
        b = jax.random.uniform(kb, (fan_out,), jnp.float32, -bound, bound)
        return w, b

    k1, k2, k3, k4, k5 = jax.random.split(key, 5)
    w1, b1 = linear(k1, 1024, in_features)
    w2, b2 = linear(k2, 1024, label_features)
    w3, b3 = linear(k3, 512, 2048)
    g3, be3 = jnp.ones((512,), jnp.float32), jnp.zeros((512,), jnp.float32)
    w4, b4 = linear(k4, 256, 512)
    g4, be4 = jnp.ones((256,), jnp.float32), jnp.zeros((256,), jnp.float32)
    w5, b5 = linear(k5, 1, 256)
    return (w1, b1, w2, b2, w3, b3, g3, be3, w4, b4, g4, be4, w5, b5)


def _reference_forward(image, label, params):
    """Plain-JAX mirror of the module forward (bf16 matmul operands, f32 BN)."""
    (w1, b1, w2, b2, w3, b3, g3, be3, w4, b4, g4, be4, w5, b5) = params
    bf = lambda a: a.astype(jnp.bfloat16)
    f32 = jnp.float32
    lrelu = lambda v: jnp.where(v > 0, v, LEAKY_SLOPE * v)

    x = bf(image.reshape(image.shape[0], -1))
    h1 = lrelu(jnp.dot(x, bf(w1.T), preferred_element_type=f32) + b1)
    h2 = lrelu(jnp.dot(bf(label), bf(w2.T), preferred_element_type=f32) + b2)
    z = jnp.concatenate([bf(h1), bf(h2)], axis=1)
    z3 = jnp.dot(z, bf(w3.T), preferred_element_type=f32) + b3
    m, v = jnp.mean(z3, 0), jnp.var(z3, 0)
    h3 = lrelu((z3 - m) * jax.lax.rsqrt(v + BN_EPS) * g3 + be3)
    z4 = jnp.dot(bf(h3), bf(w4.T), preferred_element_type=f32) + b4
    m, v = jnp.mean(z4, 0), jnp.var(z4, 0)
    h4 = lrelu((z4 - m) * jax.lax.rsqrt(v + BN_EPS) * g4 + be4)
    z5 = jnp.sum(h4 * w5.reshape(1, -1), axis=-1, keepdims=True) + b5
    return jax.nn.sigmoid(z5)


if __name__ == "__main__":
    B, C, H, W = 4, 1, 16, 16  # small shapes: in_features = H*W = 256

    key = jax.random.PRNGKey(0)
    k_img, k_img2, k_lab, k_lab2, k_par = jax.random.split(key, 5)

    image = jax.random.normal(k_img, (B, C, H, W), jnp.float32)
    label = jax.nn.one_hot(jax.random.randint(k_lab, (B,), 0, 10), 10,
                           dtype=jnp.float32)
    image2 = jax.random.normal(k_img2, (B, C, H, W), jnp.float32)
    label2 = jax.nn.one_hot(jax.random.randint(k_lab2, (B,), 0, 10), 10,
                            dtype=jnp.float32)

    params = init_params(k_par, in_features=H * W, label_features=10)
    packed = pack_params(params)  # one-time: kernel-layout bf16 weights + slab

    # Single-batch forward.
    out = jax.block_until_ready(discriminator_forward(image, label, packed))
    ref = _reference_forward(image, label, params)
    assert out.shape == (B, 1)
    assert jnp.allclose(out, ref, atol=5e-3, rtol=5e-3), (out, ref)

    # Real+fake pair forward (parallel grid over both batches).
    out_a, out_b = discriminator_forward_pair(image, label, image2, label2, packed)
    out_a, out_b = jax.block_until_ready((out_a, out_b))
    ref_b = _reference_forward(image2, label2, params)
    assert out_a.shape == (B, 1) and out_b.shape == (B, 1)
    assert jnp.allclose(out_a, ref, atol=5e-3, rtol=5e-3), (out_a, ref)
    assert jnp.allclose(out_b, ref_b, atol=5e-3, rtol=5e-3), (out_b, ref_b)

    print("KERNEL_OK")
</pallas_src>

<mosaic_0001>
module attributes {stable_mosaic.version = 11 : i64} {
  func.func @kernel(%arg0: i32, %arg1: memref<1x16x256xbf16, #tpu.memory_space<vmem>>, %arg2: memref<1x16x10xbf16, #tpu.memory_space<vmem>>, %arg3: memref<256x1024xbf16, #tpu.memory_space<vmem>>, %arg4: memref<10x1024xbf16, #tpu.memory_space<vmem>>, %arg5: memref<1024x512xbf16, #tpu.memory_space<vmem>>, %arg6: memref<1024x512xbf16, #tpu.memory_space<vmem>>, %arg7: memref<512x256xbf16, #tpu.memory_space<vmem>>, %arg8: memref<16x1024xf32, #tpu.memory_space<vmem>>, %arg9: memref<1x16x1xf32, #tpu.memory_space<vmem>>) attributes {dimension_semantics = [#tpu.dimension_semantics<parallel>], iteration_bounds = array<i64: 1>, scalar_prefetch = 0 : i64, scratch_operands = 0 : i64, tpu.core_type = #tpu.core_type<tc>, window_params = [{transform_indices = @transform_0, window_bounds = array<i64: 1, 16, 256>}, {transform_indices = @transform_1, window_bounds = array<i64: 1, 16, 10>}, {pipeline_mode = #tpu.pipeline_mode<synchronous>, transform_indices = @transform_2, window_bounds = array<i64: 256, 1024>}, {pipeline_mode = #tpu.pipeline_mode<synchronous>, transform_indices = @transform_3, window_bounds = array<i64: 10, 1024>}, {pipeline_mode = #tpu.pipeline_mode<synchronous>, transform_indices = @transform_4, window_bounds = array<i64: 1024, 512>}, {pipeline_mode = #tpu.pipeline_mode<synchronous>, transform_indices = @transform_5, window_bounds = array<i64: 1024, 512>}, {pipeline_mode = #tpu.pipeline_mode<synchronous>, transform_indices = @transform_6, window_bounds = array<i64: 512, 256>}, {pipeline_mode = #tpu.pipeline_mode<synchronous>, transform_indices = @transform_7, window_bounds = array<i64: 16, 1024>}, {transform_indices = @transform_8, window_bounds = array<i64: 1, 16, 1>}]} {
    %0 = tpu.iota {dimensions = array<i32: 0>} : vector<16x1xi32>
    %c4_i32 = arith.constant 4 : i32
    %1 = vector.broadcast %c4_i32 : i32 to vector<16x1xi32>
    %2 = arith.cmpi slt, %0, %1 : vector<16x1xi32>
    %cst = arith.constant 2.500000e-01 : f32
    %cst_0 = arith.constant 0.000000e+00 : f32
    %3 = vector.broadcast %cst : f32 to vector<16x1xf32>
    %4 = vector.broadcast %cst_0 : f32 to vector<16x1xf32>
    %5 = arith.select %2, %3, %4 : vector<16x1xi1>, vector<16x1xf32>
    %c0 = arith.constant 0 : index
    %c0_1 = arith.constant 0 : index
    %6 = vector.load %arg8[%c0, %c0_1] : memref<16x1024xf32, #tpu.memory_space<vmem>>, vector<1x1024xf32>
    %c1 = arith.constant 1 : index
    %c0_2 = arith.constant 0 : index
    %7 = vector.load %arg8[%c1, %c0_2] : memref<16x1024xf32, #tpu.memory_space<vmem>>, vector<1x1024xf32>
    %c2 = arith.constant 2 : index
    %c0_3 = arith.constant 0 : index
    %8 = vector.load %arg8[%c2, %c0_3] : memref<16x1024xf32, #tpu.memory_space<vmem>>, vector<1x512xf32>
    %c3 = arith.constant 3 : index
    %c0_4 = arith.constant 0 : index
    %9 = vector.load %arg8[%c3, %c0_4] : memref<16x1024xf32, #tpu.memory_space<vmem>>, vector<1x512xf32>
    %c4 = arith.constant 4 : index
    %c0_5 = arith.constant 0 : index
    %10 = vector.load %arg8[%c4, %c0_5] : memref<16x1024xf32, #tpu.memory_space<vmem>>, vector<1x512xf32>
    %c5 = arith.constant 5 : index
    %c0_6 = arith.constant 0 : index
    %11 = vector.load %arg8[%c5, %c0_6] : memref<16x1024xf32, #tpu.memory_space<vmem>>, vector<1x256xf32>
    %c6 = arith.constant 6 : index
    %c0_7 = arith.constant 0 : index
    %12 = vector.load %arg8[%c6, %c0_7] : memref<16x1024xf32, #tpu.memory_space<vmem>>, vector<1x256xf32>
    %c7 = arith.constant 7 : index
    %c0_8 = arith.constant 0 : index
    %13 = vector.load %arg8[%c7, %c0_8] : memref<16x1024xf32, #tpu.memory_space<vmem>>, vector<1x256xf32>
    %c8 = arith.constant 8 : index
    %c0_9 = arith.constant 0 : index
    %14 = vector.load %arg8[%c8, %c0_9] : memref<16x1024xf32, #tpu.memory_space<vmem>>, vector<1x256xf32>
    %c9 = arith.constant 9 : index
    %c0_10 = arith.constant 0 : index
    %15 = vector.load %arg8[%c9, %c0_10] : memref<16x1024xf32, #tpu.memory_space<vmem>>, vector<1x1xf32>
    %c0_11 = arith.constant 0 : index
    %c0_12 = arith.constant 0 : index
    %c0_13 = arith.constant 0 : index
    %16 = vector.load %arg1[%c0_11, %c0_12, %c0_13] : memref<1x16x256xbf16, #tpu.memory_space<vmem>>, vector<1x16x256xbf16>
    %17 = vector.shape_cast %16 : vector<1x16x256xbf16> to vector<16x256xbf16>
    %c0_14 = arith.constant 0 : index
    %c0_15 = arith.constant 0 : index
    %18 = vector.load %arg3[%c0_14, %c0_15] : memref<256x1024xbf16, #tpu.memory_space<vmem>>, vector<256x1024xbf16>
    %cst_16 = arith.constant dense<0.000000e+00> : vector<16x1024xf32>
    %19 = tpu.matmul %17, %18, %cst_16 {dimension_numbers = #tpu.dot_dimension_numbers<[1], [0], [0], [1], [0, 0, 1, 1], [], []>} : vector<16x256xbf16>, vector<256x1024xbf16>, vector<16x1024xf32> -> vector<16x1024xf32>
    %20 = vector.broadcast %6 : vector<1x1024xf32> to vector<16x1024xf32>
    %21 = arith.addf %19, %20 : vector<16x1024xf32>
    %cst_17 = arith.constant 0.000000e+00 : f32
    %22 = vector.broadcast %cst_17 : f32 to vector<16x1024xf32>
    %23 = arith.cmpf ogt, %21, %22 : vector<16x1024xf32>
    %cst_18 = arith.constant 2.000000e-01 : f32
    %24 = vector.broadcast %cst_18 : f32 to vector<16x1024xf32>
    %25 = arith.mulf %24, %21 : vector<16x1024xf32>
    %26 = arith.select %23, %21, %25 : vector<16x1024xi1>, vector<16x1024xf32>
    %c0_19 = arith.constant 0 : index
    %c0_20 = arith.constant 0 : index
    %c0_21 = arith.constant 0 : index
    %27 = vector.load %arg2[%c0_19, %c0_20, %c0_21] : memref<1x16x10xbf16, #tpu.memory_space<vmem>>, vector<1x16x10xbf16>
    %28 = vector.shape_cast %27 : vector<1x16x10xbf16> to vector<16x10xbf16>
    %c0_22 = arith.constant 0 : index
    %c0_23 = arith.constant 0 : index
    %29 = vector.load %arg4[%c0_22, %c0_23] : memref<10x1024xbf16, #tpu.memory_space<vmem>>, vector<10x1024xbf16>
    %cst_24 = arith.constant dense<0.000000e+00> : vector<16x1024xf32>
    %30 = tpu.matmul %28, %29, %cst_24 {dimension_numbers = #tpu.dot_dimension_numbers<[1], [0], [0], [1], [0, 0, 1, 1], [], []>} : vector<16x10xbf16>, vector<10x1024xbf16>, vector<16x1024xf32> -> vector<16x1024xf32>
    %31 = vector.broadcast %7 : vector<1x1024xf32> to vector<16x1024xf32>
    %32 = arith.addf %30, %31 : vector<16x1024xf32>
    %cst_25 = arith.constant 0.000000e+00 : f32
    %33 = vector.broadcast %cst_25 : f32 to vector<16x1024xf32>
    %34 = arith.cmpf ogt, %32, %33 : vector<16x1024xf32>
    %cst_26 = arith.constant 2.000000e-01 : f32
    %35 = vector.broadcast %cst_26 : f32 to vector<16x1024xf32>
    %36 = arith.mulf %35, %32 : vector<16x1024xf32>
    %37 = arith.select %34, %32, %36 : vector<16x1024xi1>, vector<16x1024xf32>
    %38 = arith.truncf %26 : vector<16x1024xf32> to vector<16x1024xbf16>
    %c0_27 = arith.constant 0 : index
    %c0_28 = arith.constant 0 : index
    %39 = vector.load %arg5[%c0_27, %c0_28] : memref<1024x512xbf16, #tpu.memory_space<vmem>>, vector<1024x512xbf16>
    %cst_29 = arith.constant dense<0.000000e+00> : vector<16x512xf32>
    %40 = tpu.matmul %38, %39, %cst_29 {dimension_numbers = #tpu.dot_dimension_numbers<[1], [0], [0], [1], [0, 0, 1, 1], [], []>} : vector<16x1024xbf16>, vector<1024x512xbf16>, vector<16x512xf32> -> vector<16x512xf32>
    %41 = arith.truncf %37 : vector<16x1024xf32> to vector<16x1024xbf16>
    %c0_30 = arith.constant 0 : index
    %c0_31 = arith.constant 0 : index
    %42 = vector.load %arg6[%c0_30, %c0_31] : memref<1024x512xbf16, #tpu.memory_space<vmem>>, vector<1024x512xbf16>
    %cst_32 = arith.constant dense<0.000000e+00> : vector<16x512xf32>
    %43 = tpu.matmul %41, %42, %cst_32 {dimension_numbers = #tpu.dot_dimension_numbers<[1], [0], [0], [1], [0, 0, 1, 1], [], []>} : vector<16x1024xbf16>, vector<1024x512xbf16>, vector<16x512xf32> -> vector<16x512xf32>
    %44 = arith.addf %40, %43 : vector<16x512xf32>
    %45 = vector.broadcast %8 : vector<1x512xf32> to vector<16x512xf32>
    %46 = arith.addf %44, %45 : vector<16x512xf32>
    %47 = vector.broadcast %5 : vector<16x1xf32> to vector<16x512xf32>
    %48 = arith.mulf %46, %47 : vector<16x512xf32>
    %cst_33 = arith.constant dense<0.000000e+00> : vector<512xf32>
    %49 = vector.multi_reduction <add>, %48, %cst_33 [0] : vector<16x512xf32> to vector<512xf32>
    %50 = vector.shape_cast %49 : vector<512xf32> to vector<1x512xf32>
    %51 = arith.mulf %46, %48 : vector<16x512xf32>
    %cst_34 = arith.constant dense<0.000000e+00> : vector<512xf32>
    %52 = vector.multi_reduction <add>, %51, %cst_34 [0] : vector<16x512xf32> to vector<512xf32>
    %53 = vector.shape_cast %52 : vector<512xf32> to vector<1x512xf32>
    %54 = arith.mulf %50, %50 : vector<1x512xf32>
    %55 = arith.subf %53, %54 : vector<1x512xf32>
    %cst_35 = arith.constant 9.99999974E-6 : f32
    %56 = vector.broadcast %cst_35 : f32 to vector<1x512xf32>
    %57 = arith.addf %55, %56 : vector<1x512xf32>
    %58 = math.rsqrt %57 : vector<1x512xf32>
    %59 = arith.mulf %9, %58 : vector<1x512xf32>
    %60 = arith.mulf %50, %59 : vector<1x512xf32>
    %61 = arith.subf %10, %60 : vector<1x512xf32>
    %62 = vector.broadcast %59 : vector<1x512xf32> to vector<16x512xf32>
    %63 = arith.mulf %46, %62 : vector<16x512xf32>
    %64 = vector.broadcast %61 : vector<1x512xf32> to vector<16x512xf32>
    %65 = arith.addf %63, %64 : vector<16x512xf32>
    %cst_36 = arith.constant 0.000000e+00 : f32
    %66 = vector.broadcast %cst_36 : f32 to vector<16x512xf32>
    %67 = arith.cmpf ogt, %65, %66 : vector<16x512xf32>
    %cst_37 = arith.constant 2.000000e-01 : f32
    %68 = vector.broadcast %cst_37 : f32 to vector<16x512xf32>
    %69 = arith.mulf %68, %65 : vector<16x512xf32>
    %70 = arith.select %67, %65, %69 : vector<16x512xi1>, vector<16x512xf32>
    %71 = arith.truncf %70 : vector<16x512xf32> to vector<16x512xbf16>
    %c0_38 = arith.constant 0 : index
    %c0_39 = arith.constant 0 : index
    %72 = vector.load %arg7[%c0_38, %c0_39] : memref<512x256xbf16, #tpu.memory_space<vmem>>, vector<512x256xbf16>
    %cst_40 = arith.constant dense<0.000000e+00> : vector<16x256xf32>
    %73 = tpu.matmul %71, %72, %cst_40 {dimension_numbers = #tpu.dot_dimension_numbers<[1], [0], [0], [1], [0, 0, 1, 1], [], []>} : vector<16x512xbf16>, vector<512x256xbf16>, vector<16x256xf32> -> vector<16x256xf32>
    %74 = vector.broadcast %11 : vector<1x256xf32> to vector<16x256xf32>
    %75 = arith.addf %73, %74 : vector<16x256xf32>
    %76 = vector.broadcast %5 : vector<16x1xf32> to vector<16x256xf32>
    %77 = arith.mulf %75, %76 : vector<16x256xf32>
    %cst_41 = arith.constant dense<0.000000e+00> : vector<256xf32>
    %78 = vector.multi_reduction <add>, %77, %cst_41 [0] : vector<16x256xf32> to vector<256xf32>
    %79 = vector.shape_cast %78 : vector<256xf32> to vector<1x256xf32>
    %80 = arith.mulf %75, %77 : vector<16x256xf32>
    %cst_42 = arith.constant dense<0.000000e+00> : vector<256xf32>
    %81 = vector.multi_reduction <add>, %80, %cst_42 [0] : vector<16x256xf32> to vector<256xf32>
    %82 = vector.shape_cast %81 : vector<256xf32> to vector<1x256xf32>
    %83 = arith.mulf %79, %79 : vector<1x256xf32>
    %84 = arith.subf %82, %83 : vector<1x256xf32>
    %cst_43 = arith.constant 9.99999974E-6 : f32
    %85 = vector.broadcast %cst_43 : f32 to vector<1x256xf32>
    %86 = arith.addf %84, %85 : vector<1x256xf32>
    %87 = math.rsqrt %86 : vector<1x256xf32>
    %88 = arith.mulf %12, %87 : vector<1x256xf32>
    %89 = arith.mulf %79, %88 : vector<1x256xf32>
    %90 = arith.subf %13, %89 : vector<1x256xf32>
    %91 = vector.broadcast %88 : vector<1x256xf32> to vector<16x256xf32>
    %92 = arith.mulf %75, %91 : vector<16x256xf32>
    %93 = vector.broadcast %90 : vector<1x256xf32> to vector<16x256xf32>
    %94 = arith.addf %92, %93 : vector<16x256xf32>
    %cst_44 = arith.constant 0.000000e+00 : f32
    %95 = vector.broadcast %cst_44 : f32 to vector<16x256xf32>
    %96 = arith.cmpf ogt, %94, %95 : vector<16x256xf32>
    %cst_45 = arith.constant 2.000000e-01 : f32
    %97 = vector.broadcast %cst_45 : f32 to vector<16x256xf32>
    %98 = arith.mulf %97, %94 : vector<16x256xf32>
    %99 = arith.select %96, %94, %98 : vector<16x256xi1>, vector<16x256xf32>
    %100 = vector.broadcast %14 : vector<1x256xf32> to vector<16x256xf32>
    %101 = arith.mulf %99, %100 : vector<16x256xf32>
    %cst_46 = arith.constant dense<0.000000e+00> : vector<16xf32>
    %102 = vector.multi_reduction <add>, %101, %cst_46 [1] : vector<16x256xf32> to vector<16xf32>
    %103 = vector.shape_cast %102 : vector<16xf32> to vector<16x1xf32>
    %104 = vector.broadcast %15 : vector<1x1xf32> to vector<16x1xf32>
    %105 = arith.addf %103, %104 : vector<16x1xf32>
    %106 = arith.negf %105 : vector<16x1xf32>
    %107 = math.exp %106 : vector<16x1xf32>
    %cst_47 = arith.constant 1.000000e+00 : f32
    %108 = vector.broadcast %cst_47 : f32 to vector<16x1xf32>
    %109 = arith.addf %108, %107 : vector<16x1xf32>
    %110 = arith.divf %108, %109 : vector<16x1xf32>
    %c0_48 = arith.constant 0 : index
    %c0_49 = arith.constant 0 : index
    %c0_50 = arith.constant 0 : index
    %111 = vector.load %arg9[%c0_48, %c0_49, %c0_50] : memref<1x16x1xf32, #tpu.memory_space<vmem>>, vector<1x16x1xf32>
    %112 = vector.shape_cast %111 : vector<1x16x1xf32> to vector<16x1xf32>
    %113 = vector.shape_cast %110 : vector<16x1xf32> to vector<1x16x1xf32>
    tpu.vector_store %arg9[%c0_48, %c0_49, %c0_50], %113 {strides = array<i32>} : memref<1x16x1xf32, #tpu.memory_space<vmem>>, vector<1x16x1xf32>,
    return
  }
  func.func @transform_0(%arg0: i32) -> (i32, i32, i32) {
    %c0_i32 = arith.constant 0 : i32
    %c0_i32_0 = arith.constant 0 : i32
    %c0_i32_1 = arith.constant 0 : i32
    return %arg0, %c0_i32, %c0_i32_0 : i32, i32, i32
  }
  func.func @transform_1(%arg0: i32) -> (i32, i32, i32) {
    %c0_i32 = arith.constant 0 : i32
    %c0_i32_0 = arith.constant 0 : i32
    %c0_i32_1 = arith.constant 0 : i32
    return %arg0, %c0_i32, %c0_i32_0 : i32, i32, i32
  }
  func.func @transform_2(%arg0: i32) -> (i32, i32) {
    %c0_i32 = arith.constant 0 : i32
    %c0_i32_0 = arith.constant 0 : i32
    %c0_i32_1 = arith.constant 0 : i32
    return %c0_i32, %c0_i32_0 : i32, i32
  }
  func.func @transform_3(%arg0: i32) -> (i32, i32) {
    %c0_i32 = arith.constant 0 : i32
    %c0_i32_0 = arith.constant 0 : i32
    %c0_i32_1 = arith.constant 0 : i32
    return %c0_i32, %c0_i32_0 : i32, i32
  }
  func.func @transform_4(%arg0: i32) -> (i32, i32) {
    %c0_i32 = arith.constant 0 : i32
    %c0_i32_0 = arith.constant 0 : i32
    %c0_i32_1 = arith.constant 0 : i32
    return %c0_i32, %c0_i32_0 : i32, i32
  }
  func.func @transform_5(%arg0: i32) -> (i32, i32) {
    %c0_i32 = arith.constant 0 : i32
    %c0_i32_0 = arith.constant 0 : i32
    %c0_i32_1 = arith.constant 0 : i32
    return %c0_i32, %c0_i32_0 : i32, i32
  }
  func.func @transform_6(%arg0: i32) -> (i32, i32) {
    %c0_i32 = arith.constant 0 : i32
    %c0_i32_0 = arith.constant 0 : i32
    %c0_i32_1 = arith.constant 0 : i32
    return %c0_i32, %c0_i32_0 : i32, i32
  }
  func.func @transform_7(%arg0: i32) -> (i32, i32) {
    %c0_i32 = arith.constant 0 : i32
    %c0_i32_0 = arith.constant 0 : i32
    %c0_i32_1 = arith.constant 0 : i32
    return %c0_i32, %c0_i32_0 : i32, i32
  }
  func.func @transform_8(%arg0: i32) -> (i32, i32, i32) {
    %c0_i32 = arith.constant 0 : i32
    %c0_i32_0 = arith.constant 0 : i32
    %c0_i32_1 = arith.constant 0 : i32
    return %arg0, %c0_i32, %c0_i32_0 : i32, i32, i32
  }
}

</mosaic_0001>

<llo_original>
// kernel: discriminator_forward.1
$region0: #{discriminator_forward.1}
  #allocation0 [shape = 'u32[]', space=smem, size = 0x4, offset = 0x4, fixed_abs, tag = 'smem constant byte address 0x4 - core index']
  #allocation1 [shape = 'u32[144,128]{1,0:T(1,128)}', space=vmem, size = 0x12000, scoped, tag = 'internal scratch']
  %s0 = inlined_call_operand.vmem [shape: bf16[1,16,256], index: 0, kind: input, shape index: {}]
  %s1 = inlined_call_operand.vmem [shape: bf16[1,16,10], index: 1, kind: input, shape index: {}]
  %s2 = inlined_call_operand.hbm [shape: bf16[256,1024], index: 2, kind: input, shape index: {}]
  %s3 = inlined_call_operand.hbm [shape: bf16[10,1024], index: 3, kind: input, shape index: {}]
  %s4 = inlined_call_operand.hbm [shape: bf16[1024,512], index: 4, kind: input, shape index: {}]
  %s5 = inlined_call_operand.hbm [shape: bf16[1024,512], index: 5, kind: input, shape index: {}]
  %s6 = inlined_call_operand.hbm [shape: bf16[512,256], index: 6, kind: input, shape index: {}]
  %s7 = inlined_call_operand.vmem [shape: f32[16,1024], index: 7, kind: input, shape index: {}]
  %s8 = inlined_call_operand.vmem [shape: f32[1,16,1], index: 8, kind: output, shape index: {}]
  %s9 = sld [smem:[#allocation0]]
  $region62: #{discriminator_forward.1} parent=0
    _
  %s11 = ssub.s32 1, %s9
  %s12 = scalar_select 0, %s11, %s9
  $region1: #{discriminator_forward.1} parent=0
    #allocation2 [shape = 'u8[524288]{0}', space=vmem, size = 0x80000, scoped, tag = 'input window, operand 2, single buffered']
    #allocation3 [shape = 's32[1]{0}', space=sflag, size = 0x4, scoped, tag = 'scoped memory for discriminator_forward.1']
    #allocation4 [shape = 'u8[32768]{0}', space=vmem, size = 0x8000, scoped, tag = 'input window, operand 3, single buffered']
    #allocation5 [shape = 's32[1]{0}', space=sflag, size = 0x4, scoped, tag = 'scoped memory for discriminator_forward.1']
    #allocation6 [shape = 'u8[1048576]{0}', space=vmem, size = 0x100000, scoped, tag = 'input window, operand 4, single buffered']
    #allocation7 [shape = 'u8[1048576]{0}', space=vmem, size = 0x100000, scoped, tag = 'input window, operand 5, single buffered']
    #allocation8 [shape = 's32[1]{0}', space=sflag, size = 0x4, scoped, tag = 'scoped memory for discriminator_forward.1']
    #allocation9 [shape = 'u8[262144]{0}', space=vmem, size = 0x40000, scoped, tag = 'input window, operand 6, single buffered']
    %13 = vsyncpa [#allocation3], 0
    %14 = vsyncpa [#allocation5], 0
    %15 = vsyncpa [#allocation8], 0
    // Predicated region
    $region2: #{discriminator_forward.1} parent=1 // pred_check
      _
    $region3: #{discriminator_forward.1} parent=1 // pred_check_branch
      %17 = sbr.rel (0) target = $region5
    $region4: #{discriminator_forward.1} parent=1 // pred_region
      _
    $region5: #{discriminator_forward.1} parent=1 // pred_fallthru
      _
    // Predicated region
    $region6: #{discriminator_forward.1} parent=1 // pred_check
      _
    $region7: #{discriminator_forward.1} parent=1 // pred_check_branch
      %19 = sbr.rel (0) target = $region9
    $region8: #{discriminator_forward.1} parent=1 // pred_region
      _
    $region9: #{discriminator_forward.1} parent=1 // pred_fallthru
      _
    // Predicated region
    $region10: #{discriminator_forward.1} parent=1 // pred_check
      _
    $region11: #{discriminator_forward.1} parent=1 // pred_check_branch
      %21 = sbr.rel (0) target = $region13
    $region12: #{discriminator_forward.1} parent=1 // pred_region
      %s23 = ssub.s32 16384, 16384
      %24 = vsyncadd [#allocation3], %s23
      %s25 = sshll.u32 [#allocation2], 4
      %s26 = int_to_ptr.vmem [resolvable:$true] %s25
      %31 = dma.hbm_to_vmem [thread:$0]  %s2, 16384, %s26, [#allocation3], 512, 512, 32
    $region13: #{discriminator_forward.1} parent=1 // pred_fallthru
      _
    // Predicated region
    $region14: #{discriminator_forward.1} parent=1 // pred_check
      _
    $region15: #{discriminator_forward.1} parent=1 // pred_check_branch
      %33 = sbr.rel (0) target = $region17
    $region16: #{discriminator_forward.1} parent=1 // pred_region
      %s35 = ssub.s32 1024, 1024
      %36 = vsyncadd [#allocation5], %s35
      %s37 = sshll.u32 [#allocation4], 4
      %s38 = int_to_ptr.vmem [resolvable:$true] %s37
      %43 = dma.hbm_to_vmem [thread:$0]  %s3, 1024, %s38, [#allocation5], 512, 512, 32
    $region17: #{discriminator_forward.1} parent=1 // pred_fallthru
      _
    // Predicated region
    $region18: #{discriminator_forward.1} parent=1 // pred_check
      _
    $region19: #{discriminator_forward.1} parent=1 // pred_check_branch
      %45 = sbr.rel (0) target = $region21
    $region20: #{discriminator_forward.1} parent=1 // pred_region
      %s47 = ssub.s32 32768, 32768
      %48 = vsyncadd [#allocation5], %s47
      %s49 = sshll.u32 [#allocation6], 4
      %s50 = int_to_ptr.vmem [resolvable:$true] %s49
      %55 = dma.hbm_to_vmem [thread:$0]  %s4, 32768, %s50, [#allocation5], 256, 256, 16
    $region21: #{discriminator_forward.1} parent=1 // pred_fallthru
      _
    // Predicated region
    $region22: #{discriminator_forward.1} parent=1 // pred_check
      _
    $region23: #{discriminator_forward.1} parent=1 // pred_check_branch
      %57 = sbr.rel (0) target = $region25
    $region24: #{discriminator_forward.1} parent=1 // pred_region
      %s59 = ssub.s32 32768, 32768
      %60 = vsyncadd [#allocation8], %s59
      %s61 = sshll.u32 [#allocation7], 4
      %s62 = int_to_ptr.vmem [resolvable:$true] %s61
      %67 = dma.hbm_to_vmem [thread:$0]  %s5, 32768, %s62, [#allocation8], 256, 256, 16
    $region25: #{discriminator_forward.1} parent=1 // pred_fallthru
      _
    // Predicated region
    $region26: #{discriminator_forward.1} parent=1 // pred_check
      _
    $region27: #{discriminator_forward.1} parent=1 // pred_check_branch
      %69 = sbr.rel (0) target = $region29
    $region28: #{discriminator_forward.1} parent=1 // pred_region
      %s71 = ssub.s32 8192, 8192
      %72 = vsyncadd [#allocation8], %s71
      %s73 = sshll.u32 [#allocation9], 4
      %s74 = int_to_ptr.vmem [resolvable:$true] %s73
      %79 = dma.hbm_to_vmem [thread:$0]  %s6, 8192, %s74, [#allocation8], 128, 128, 8
    $region29: #{discriminator_forward.1} parent=1 // pred_fallthru
      _
    // Predicated region
    $region30: #{discriminator_forward.1} parent=1 // pred_check
      _
    $region31: #{discriminator_forward.1} parent=1 // pred_check_branch
      %81 = sbr.rel (0) target = $region33
    $region32: #{discriminator_forward.1} parent=1 // pred_region
      _
    $region33: #{discriminator_forward.1} parent=1 // pred_fallthru
      _
    // Predicated region
    $region34: #{discriminator_forward.1} parent=1 // pred_check
      _
    $region35: #{discriminator_forward.1} parent=1 // pred_check_branch
      %83 = sbr.rel (0) target = $region37
    $region36: #{discriminator_forward.1} parent=1 // pred_region
      %84 = dma.done [#allocation3], 16384
    $region37: #{discriminator_forward.1} parent=1 // pred_fallthru
      _
    // Predicated region
    $region38: #{discriminator_forward.1} parent=1 // pred_check
      _
    $region39: #{discriminator_forward.1} parent=1 // pred_check_branch
      %86 = sbr.rel (0) target = $region41
    $region40: #{discriminator_forward.1} parent=1 // pred_region
      %87 = dma.done [#allocation5], 1024
    $region41: #{discriminator_forward.1} parent=1 // pred_fallthru
      _
    // Predicated region
    $region42: #{discriminator_forward.1} parent=1 // pred_check
      _
    $region43: #{discriminator_forward.1} parent=1 // pred_check_branch
      %89 = sbr.rel (0) target = $region45
    $region44: #{discriminator_forward.1} parent=1 // pred_region
      %90 = dma.done [#allocation5], 32768
    $region45: #{discriminator_forward.1} parent=1 // pred_fallthru
      _
    // Predicated region
    $region46: #{discriminator_forward.1} parent=1 // pred_check
      _
    $region47: #{discriminator_forward.1} parent=1 // pred_check_branch
      %92 = sbr.rel (0) target = $region49
    $region48: #{discriminator_forward.1} parent=1 // pred_region
      %93 = dma.done [#allocation8], 32768
    $region49: #{discriminator_forward.1} parent=1 // pred_fallthru
      _
    // Predicated region
    $region50: #{discriminator_forward.1} parent=1 // pred_check
      _
    $region51: #{discriminator_forward.1} parent=1 // pred_check_branch
      %95 = sbr.rel (0) target = $region53
    $region52: #{discriminator_forward.1} parent=1 // pred_region
      %96 = dma.done [#allocation8], 8192
    $region53: #{discriminator_forward.1} parent=1 // pred_fallthru
      _
    %v98 = vlaneseq
    %v99 = vshrl.u32 %v98, 7
    %v100 = vadd.s32 %v99, 8
    %vm101 = vcmp.lt.s32.totalorder %v99, 4
    %vm102 = vcmp.lt.s32.totalorder %v100, 4
    %v103 = vsel %vm101, 0.25, 0.0
    %v104 = vsel %vm102, 0.25, 0.0
    %v105 = vld [vmem:[%s7] ss:$8 sm:$0xf]
    %v106 = vld [vmem:[%s7] ss:$8 sm:$0xf0]
    %v107 = vor.u32 %v105, %v106
    %s108 = scalar_lea.vmem %s7, 1
    %v109 = vld [vmem:[%s108] ss:$8 sm:$0xf]
    %v110 = vld [vmem:[%s108] ss:$8 sm:$0xf0]
    %v111 = vor.u32 %v109, %v110
    %s112 = scalar_lea.vmem %s7, 2
    %v113 = vld [vmem:[%s112] ss:$8 sm:$0xf]
    %s114 = scalar_lea.vmem %s7, 3
    %v115 = vld [vmem:[%s114] ss:$8 sm:$0xf]
    %s116 = scalar_lea.vmem %s7, 4
    %v117 = vld [vmem:[%s116] ss:$8 sm:$0xf]
    %s118 = scalar_lea.vmem %s7, 5
    %v119 = vld [vmem:[%s118] ss:$8 sm:$0x3]
    %s120 = scalar_lea.vmem %s7, 6
    %v121 = vld [vmem:[%s120] ss:$8 sm:$0x3]
    %s122 = scalar_lea.vmem %s7, 7
    %v123 = vld [vmem:[%s122] ss:$8 sm:$0x3]
    %s124 = scalar_lea.vmem %s7, 64
    %v125 = vld [vmem:[%s124] ss:$8 sm:$0x3]
    %v126 = vld [vmem:[%s7 + $0x41] ss:$0 sm:$0xff]
    %v127 = vld [vmem:[%s0] sm:$0xff]
    %v128 = vld [vmem:[%s0 + $0x8] sm:$0xff]
    %v129 = vld [vmem:[#allocation2] sm:$0xff]
    %v130 = vld [vmem:[#allocation2 + $0x8] sm:$0xff]
    %v131 = vld [vmem:[#allocation2 + $0x10] sm:$0xff]
    %v132 = vld [vmem:[#allocation2 + $0x18] sm:$0xff]
    %v133 = vld [vmem:[#allocation2 + $0x20] sm:$0xff]
    %v134 = vld [vmem:[#allocation2 + $0x28] sm:$0xff]
    %v135 = vld [vmem:[#allocation2 + $0x30] sm:$0xff]
    %v136 = vld [vmem:[#allocation2 + $0x38] sm:$0xff]
    %v137 = vld [vmem:[#allocation2 + $0x40] sm:$0xff]
    %v138 = vld [vmem:[#allocation2 + $0x48] sm:$0xff]
    %v139 = vld [vmem:[#allocation2 + $0x50] sm:$0xff]
    %v140 = vld [vmem:[#allocation2 + $0x58] sm:$0xff]
    %v141 = vld [vmem:[#allocation2 + $0x60] sm:$0xff]
    %v142 = vld [vmem:[#allocation2 + $0x68] sm:$0xff]
    %v143 = vld [vmem:[#allocation2 + $0x70] sm:$0xff]
    %v144 = vld [vmem:[#allocation2 + $0x78] sm:$0xff]
    %v145 = vld [vmem:[#allocation2 + $0x80] sm:$0xff]
    %v146 = vld [vmem:[#allocation2 + $0x88] sm:$0xff]
    %v147 = vld [vmem:[#allocation2 + $0x90] sm:$0xff]
    %v148 = vld [vmem:[#allocation2 + $0x98] sm:$0xff]
    %v149 = vld [vmem:[#allocation2 + $0xa0] sm:$0xff]
    %v150 = vld [vmem:[#allocation2 + $0xa8] sm:$0xff]
    %v151 = vld [vmem:[#allocation2 + $0xb0] sm:$0xff]
    %v152 = vld [vmem:[#allocation2 + $0xb8] sm:$0xff]
    %v153 = vld [vmem:[#allocation2 + $0xc0] sm:$0xff]
    %v154 = vld [vmem:[#allocation2 + $0xc8] sm:$0xff]
    %v155 = vld [vmem:[#allocation2 + $0xd0] sm:$0xff]
    %v156 = vld [vmem:[#allocation2 + $0xd8] sm:$0xff]
    %v157 = vld [vmem:[#allocation2 + $0xe0] sm:$0xff]
    %v158 = vld [vmem:[#allocation2 + $0xe8] sm:$0xff]
    %v159 = vld [vmem:[#allocation2 + $0xf0] sm:$0xff]
    %v160 = vld [vmem:[#allocation2 + $0xf8] sm:$0xff]
    %v161 = vld [vmem:[#allocation2 + $0x100] sm:$0xff]
    %v162 = vld [vmem:[#allocation2 + $0x108] sm:$0xff]
    %v163 = vld [vmem:[#allocation2 + $0x110] sm:$0xff]
    %v164 = vld [vmem:[#allocation2 + $0x118] sm:$0xff]
    %v165 = vld [vmem:[#allocation2 + $0x120] sm:$0xff]
    %v166 = vld [vmem:[#allocation2 + $0x128] sm:$0xff]
    %v167 = vld [vmem:[#allocation2 + $0x130] sm:$0xff]
    %v168 = vld [vmem:[#allocation2 + $0x138] sm:$0xff]
    %v169 = vld [vmem:[#allocation2 + $0x140] sm:$0xff]
    %v170 = vld [vmem:[#allocation2 + $0x148] sm:$0xff]
    %v171 = vld [vmem:[#allocation2 + $0x150] sm:$0xff]
    %v172 = vld [vmem:[#allocation2 + $0x158] sm:$0xff]
    %v173 = vld [vmem:[#allocation2 + $0x160] sm:$0xff]
    %v174 = vld [vmem:[#allocation2 + $0x168] sm:$0xff]
    %v175 = vld [vmem:[#allocation2 + $0x170] sm:$0xff]
    %v176 = vld [vmem:[#allocation2 + $0x178] sm:$0xff]
    %v177 = vld [vmem:[#allocation2 + $0x180] sm:$0xff]
    %v178 = vld [vmem:[#allocation2 + $0x188] sm:$0xff]
    %v179 = vld [vmem:[#allocation2 + $0x190] sm:$0xff]
    %v180 = vld [vmem:[#allocation2 + $0x198] sm:$0xff]
    %v181 = vld [vmem:[#allocation2 + $0x1a0] sm:$0xff]
    %v182 = vld [vmem:[#allocation2 + $0x1a8] sm:$0xff]
    %v183 = vld [vmem:[#allocation2 + $0x1b0] sm:$0xff]
    %v184 = vld [vmem:[#allocation2 + $0x1b8] sm:$0xff]
    %v185 = vld [vmem:[#allocation2 + $0x1c0] sm:$0xff]
    %v186 = vld [vmem:[#allocation2 + $0x1c8] sm:$0xff]
    %v187 = vld [vmem:[#allocation2 + $0x1d0] sm:$0xff]
    %v188 = vld [vmem:[#allocation2 + $0x1d8] sm:$0xff]
    %v189 = vld [vmem:[#allocation2 + $0x1e0] sm:$0xff]
    %v190 = vld [vmem:[#allocation2 + $0x1e8] sm:$0xff]
    %v191 = vld [vmem:[#allocation2 + $0x1f0] sm:$0xff]
    %v192 = vld [vmem:[#allocation2 + $0x1f8] sm:$0xff]
    %v193 = vld [vmem:[#allocation2 + $0x200] sm:$0xff]
    %v194 = vld [vmem:[#allocation2 + $0x208] sm:$0xff]
    %v195 = vld [vmem:[#allocation2 + $0x210] sm:$0xff]
    %v196 = vld [vmem:[#allocation2 + $0x218] sm:$0xff]
    %v197 = vld [vmem:[#allocation2 + $0x220] sm:$0xff]
    %v198 = vld [vmem:[#allocation2 + $0x228] sm:$0xff]
    %v199 = vld [vmem:[#allocation2 + $0x230] sm:$0xff]
    %v200 = vld [vmem:[#allocation2 + $0x238] sm:$0xff]
    %v201 = vld [vmem:[#allocation2 + $0x240] sm:$0xff]
    %v202 = vld [vmem:[#allocation2 + $0x248] sm:$0xff]
    %v203 = vld [vmem:[#allocation2 + $0x250] sm:$0xff]
    %v204 = vld [vmem:[#allocation2 + $0x258] sm:$0xff]
    %v205 = vld [vmem:[#allocation2 + $0x260] sm:$0xff]
    %v206 = vld [vmem:[#allocation2 + $0x268] sm:$0xff]
    %v207 = vld [vmem:[#allocation2 + $0x270] sm:$0xff]
    %v208 = vld [vmem:[#allocation2 + $0x278] sm:$0xff]
    %v209 = vld [vmem:[#allocation2 + $0x280] sm:$0xff]
    %v210 = vld [vmem:[#allocation2 + $0x288] sm:$0xff]
    %v211 = vld [vmem:[#allocation2 + $0x290] sm:$0xff]
    %v212 = vld [vmem:[#allocation2 + $0x298] sm:$0xff]
    %v213 = vld [vmem:[#allocation2 + $0x2a0] sm:$0xff]
    %v214 = vld [vmem:[#allocation2 + $0x2a8] sm:$0xff]
    %v215 = vld [vmem:[#allocation2 + $0x2b0] sm:$0xff]
    %v216 = vld [vmem:[#allocation2 + $0x2b8] sm:$0xff]
    %v217 = vld [vmem:[#allocation2 + $0x2c0] sm:$0xff]
    %v218 = vld [vmem:[#allocation2 + $0x2c8] sm:$0xff]
    %v219 = vld [vmem:[#allocation2 + $0x2d0] sm:$0xff]
    %v220 = vld [vmem:[#allocation2 + $0x2d8] sm:$0xff]
    %v221 = vld [vmem:[#allocation2 + $0x2e0] sm:$0xff]
    %v222 = vld [vmem:[#allocation2 + $0x2e8] sm:$0xff]
    %v223 = vld [vmem:[#allocation2 + $0x2f0] sm:$0xff]
    %v224 = vld [vmem:[#allocation2 + $0x2f8] sm:$0xff]
    %v225 = vld [vmem:[#allocation2 + $0x300] sm:$0xff]
    %v226 = vld [vmem:[#allocation2 + $0x308] sm:$0xff]
    %v227 = vld [vmem:[#allocation2 + $0x310] sm:$0xff]
    %v228 = vld [vmem:[#allocation2 + $0x318] sm:$0xff]
    %v229 = vld [vmem:[#allocation2 + $0x320] sm:$0xff]
    %v230 = vld [vmem:[#allocation2 + $0x328] sm:$0xff]
    %v231 = vld [vmem:[#allocation2 + $0x330] sm:$0xff]
    %v232 = vld [vmem:[#allocation2 + $0x338] sm:$0xff]
    %v233 = vld [vmem:[#allocation2 + $0x340] sm:$0xff]
    %v234 = vld [vmem:[#allocation2 + $0x348] sm:$0xff]
    %v235 = vld [vmem:[#allocation2 + $0x350] sm:$0xff]
    %v236 = vld [vmem:[#allocation2 + $0x358] sm:$0xff]
    %v237 = vld [vmem:[#allocation2 + $0x360] sm:$0xff]
    %v238 = vld [vmem:[#allocation2 + $0x368] sm:$0xff]
    %v239 = vld [vmem:[#allocation2 + $0x370] sm:$0xff]
    %v240 = vld [vmem:[#allocation2 + $0x378] sm:$0xff]
    %v241 = vld [vmem:[#allocation2 + $0x380] sm:$0xff]
    %v242 = vld [vmem:[#allocation2 + $0x388] sm:$0xff]
    %v243 = vld [vmem:[#allocation2 + $0x390] sm:$0xff]
    %v244 = vld [vmem:[#allocation2 + $0x398] sm:$0xff]
    %v245 = vld [vmem:[#allocation2 + $0x3a0] sm:$0xff]
    %v246 = vld [vmem:[#allocation2 + $0x3a8] sm:$0xff]
    %v247 = vld [vmem:[#allocation2 + $0x3b0] sm:$0xff]
    %v248 = vld [vmem:[#allocation2 + $0x3b8] sm:$0xff]
    %v249 = vld [vmem:[#allocation2 + $0x3c0] sm:$0xff]
    %v250 = vld [vmem:[#allocation2 + $0x3c8] sm:$0xff]
    %v251 = vld [vmem:[#allocation2 + $0x3d0] sm:$0xff]
    %v252 = vld [vmem:[#allocation2 + $0x3d8] sm:$0xff]
    %v253 = vld [vmem:[#allocation2 + $0x3e0] sm:$0xff]
    %v254 = vld [vmem:[#allocation2 + $0x3e8] sm:$0xff]
    %v255 = vld [vmem:[#allocation2 + $0x3f0] sm:$0xff]
    %v256 = vld [vmem:[#allocation2 + $0x3f8] sm:$0xff]
    %v258 = vlaneseq
    %v259 = vshrl.u32 %v258, 7
    %v260 = vsub.s32 0, %v259
    %v261 = vrot.slane %v107, %v260
    %v262 = vlaneseq
    %v263 = vshrl.u32 %v262, 7
    %v264 = vsub.s32 1, %v263
    %v265 = vrot.slane %v107, %v264
    %v266 = vlaneseq
    %v267 = vshrl.u32 %v266, 7
    %v268 = vsub.s32 2, %v267
    %v269 = vrot.slane %v107, %v268
    %v270 = vlaneseq
    %v271 = vshrl.u32 %v270, 7
    %v272 = vsub.s32 3, %v271
    %v273 = vrot.slane %v107, %v272
    %v274 = vlaneseq
    %v275 = vshrl.u32 %v274, 7
    %v276 = vsub.s32 4, %v275
    %v277 = vrot.slane %v107, %v276
    %v278 = vlaneseq
    %v279 = vshrl.u32 %v278, 7
    %v280 = vsub.s32 5, %v279
    %v281 = vrot.slane %v107, %v280
    %v282 = vlaneseq
    %v283 = vshrl.u32 %v282, 7
    %v284 = vsub.s32 6, %v283
    %v285 = vrot.slane %v107, %v284
    %v286 = vlaneseq
    %v287 = vshrl.u32 %v286, 7
    %v288 = vsub.s32 7, %v287
    %v289 = vrot.slane %v107, %v288
    %v300 = vunpack.c.l.b16 %v127
    %v301 = vunpack.c.h.b16 %v127
    %v302 = vunpack.c.l.b16 %v128
    %v303 = vunpack.c.h.b16 %v128
    %v304 = vpack.c.b16 %v302, %v300
    %v305 = vpack.c.b16 %v303, %v301
    %v436 = vunpack.c.l.b16 %v129
    %v437 = vunpack.c.h.b16 %v129
    %v438 = vunpack.c.l.b16 %v130
    %v439 = vunpack.c.h.b16 %v130
    %v440 = vunpack.c.l.b16 %v131
    %v441 = vunpack.c.h.b16 %v131
    %v442 = vunpack.c.l.b16 %v132
    %v443 = vunpack.c.h.b16 %v132
    %v444 = vunpack.c.l.b16 %v133
    %v445 = vunpack.c.h.b16 %v133
    %v446 = vunpack.c.l.b16 %v134
    %v447 = vunpack.c.h.b16 %v134
    %v448 = vunpack.c.l.b16 %v135
    %v449 = vunpack.c.h.b16 %v135
    %v450 = vunpack.c.l.b16 %v136
    %v451 = vunpack.c.h.b16 %v136
    %v452 = vunpack.c.l.b16 %v137
    %v453 = vunpack.c.h.b16 %v137
    %v454 = vunpack.c.l.b16 %v138
    %v455 = vunpack.c.h.b16 %v138
    %v456 = vunpack.c.l.b16 %v139
    %v457 = vunpack.c.h.b16 %v139
    %v458 = vunpack.c.l.b16 %v140
    %v459 = vunpack.c.h.b16 %v140
    %v460 = vunpack.c.l.b16 %v141
    %v461 = vunpack.c.h.b16 %v141
    %v462 = vunpack.c.l.b16 %v142
    %v463 = vunpack.c.h.b16 %v142
    %v464 = vunpack.c.l.b16 %v143
    %v465 = vunpack.c.h.b16 %v143
    %v466 = vunpack.c.l.b16 %v144
    %v467 = vunpack.c.h.b16 %v144
    %v468 = vunpack.c.l.b16 %v145
    %v469 = vunpack.c.h.b16 %v145
    %v470 = vunpack.c.l.b16 %v146
    %v471 = vunpack.c.h.b16 %v146
    %v472 = vunpack.c.l.b16 %v147
    %v473 = vunpack.c.h.b16 %v147
    %v474 = vunpack.c.l.b16 %v148
    %v475 = vunpack.c.h.b16 %v148
    %v476 = vunpack.c.l.b16 %v149
    %v477 = vunpack.c.h.b16 %v149
    %v478 = vunpack.c.l.b16 %v150
    %v479 = vunpack.c.h.b16 %v150
    %v480 = vunpack.c.l.b16 %v151
    %v481 = vunpack.c.h.b16 %v151
    %v482 = vunpack.c.l.b16 %v152
    %v483 = vunpack.c.h.b16 %v152
    %v484 = vunpack.c.l.b16 %v153
    %v485 = vunpack.c.h.b16 %v153
    %v486 = vunpack.c.l.b16 %v154
    %v487 = vunpack.c.h.b16 %v154
    %v488 = vunpack.c.l.b16 %v155
    %v489 = vunpack.c.h.b16 %v155
    %v490 = vunpack.c.l.b16 %v156
    %v491 = vunpack.c.h.b16 %v156
    %v492 = vunpack.c.l.b16 %v157
    %v493 = vunpack.c.h.b16 %v157
    %v494 = vunpack.c.l.b16 %v158
    %v495 = vunpack.c.h.b16 %v158
    %v496 = vunpack.c.l.b16 %v159
    %v497 = vunpack.c.h.b16 %v159
    %v498 = vunpack.c.l.b16 %v160
    %v499 = vunpack.c.h.b16 %v160
    %v500 = vunpack.c.l.b16 %v161
    %v501 = vunpack.c.h.b16 %v161
    %v502 = vunpack.c.l.b16 %v162
    %v503 = vunpack.c.h.b16 %v162
    %v504 = vunpack.c.l.b16 %v163
    %v505 = vunpack.c.h.b16 %v163
    %v506 = vunpack.c.l.b16 %v164
    %v507 = vunpack.c.h.b16 %v164
    %v508 = vunpack.c.l.b16 %v165
    %v509 = vunpack.c.h.b16 %v165
    %v510 = vunpack.c.l.b16 %v166
    %v511 = vunpack.c.h.b16 %v166
    %v512 = vunpack.c.l.b16 %v167
    %v513 = vunpack.c.h.b16 %v167
    %v514 = vunpack.c.l.b16 %v168
    %v515 = vunpack.c.h.b16 %v168
    %v516 = vunpack.c.l.b16 %v169
    %v517 = vunpack.c.h.b16 %v169
    %v518 = vunpack.c.l.b16 %v170
    %v519 = vunpack.c.h.b16 %v170
    %v520 = vunpack.c.l.b16 %v171
    %v521 = vunpack.c.h.b16 %v171
    %v522 = vunpack.c.l.b16 %v172
    %v523 = vunpack.c.h.b16 %v172
    %v524 = vunpack.c.l.b16 %v173
    %v525 = vunpack.c.h.b16 %v173
    %v526 = vunpack.c.l.b16 %v174
    %v527 = vunpack.c.h.b16 %v174
    %v528 = vunpack.c.l.b16 %v175
    %v529 = vunpack.c.h.b16 %v175
    %v530 = vunpack.c.l.b16 %v176
    %v531 = vunpack.c.h.b16 %v176
    %v532 = vunpack.c.l.b16 %v177
    %v533 = vunpack.c.h.b16 %v177
    %v534 = vunpack.c.l.b16 %v178
    %v535 = vunpack.c.h.b16 %v178
    %v536 = vunpack.c.l.b16 %v179
    %v537 = vunpack.c.h.b16 %v179
    %v538 = vunpack.c.l.b16 %v180
    %v539 = vunpack.c.h.b16 %v180
    %v540 = vunpack.c.l.b16 %v181
    %v541 = vunpack.c.h.b16 %v181
    %v542 = vunpack.c.l.b16 %v182
    %v543 = vunpack.c.h.b16 %v182
    %v544 = vunpack.c.l.b16 %v183
    %v545 = vunpack.c.h.b16 %v183
    %v546 = vunpack.c.l.b16 %v184
    %v547 = vunpack.c.h.b16 %v184
    %v548 = vunpack.c.l.b16 %v185
    %v549 = vunpack.c.h.b16 %v185
    %v550 = vunpack.c.l.b16 %v186
    %v551 = vunpack.c.h.b16 %v186
    %v552 = vunpack.c.l.b16 %v187
    %v553 = vunpack.c.h.b16 %v187
    %v554 = vunpack.c.l.b16 %v188
    %v555 = vunpack.c.h.b16 %v188
    %v556 = vunpack.c.l.b16 %v189
    %v557 = vunpack.c.h.b16 %v189
    %v558 = vunpack.c.l.b16 %v190
    %v559 = vunpack.c.h.b16 %v190
    %v560 = vunpack.c.l.b16 %v191
    %v561 = vunpack.c.h.b16 %v191
    %v562 = vunpack.c.l.b16 %v192
    %v563 = vunpack.c.h.b16 %v192
    %v564 = vunpack.c.l.b16 %v193
    %v565 = vunpack.c.h.b16 %v193
    %v566 = vunpack.c.l.b16 %v194
    %v567 = vunpack.c.h.b16 %v194
    %v568 = vunpack.c.l.b16 %v195
    %v569 = vunpack.c.h.b16 %v195
    %v570 = vunpack.c.l.b16 %v196
    %v571 = vunpack.c.h.b16 %v196
    %v572 = vunpack.c.l.b16 %v197
    %v573 = vunpack.c.h.b16 %v197
    %v574 = vunpack.c.l.b16 %v198
    %v575 = vunpack.c.h.b16 %v198
    %v576 = vunpack.c.l.b16 %v199
    %v577 = vunpack.c.h.b16 %v199
    %v578 = vunpack.c.l.b16 %v200
    %v579 = vunpack.c.h.b16 %v200
    %v580 = vunpack.c.l.b16 %v201
    %v581 = vunpack.c.h.b16 %v201
    %v582 = vunpack.c.l.b16 %v202
    %v583 = vunpack.c.h.b16 %v202
    %v584 = vunpack.c.l.b16 %v203
    %v585 = vunpack.c.h.b16 %v203
    %v586 = vunpack.c.l.b16 %v204
    %v587 = vunpack.c.h.b16 %v204
    %v588 = vunpack.c.l.b16 %v205
    %v589 = vunpack.c.h.b16 %v205
    %v590 = vunpack.c.l.b16 %v206
    %v591 = vunpack.c.h.b16 %v206
    %v592 = vunpack.c.l.b16 %v207
    %v593 = vunpack.c.h.b16 %v207
    %v594 = vunpack.c.l.b16 %v208
    %v595 = vunpack.c.h.b16 %v208
    %v596 = vunpack.c.l.b16 %v209
    %v597 = vunpack.c.h.b16 %v209
    %v598 = vunpack.c.l.b16 %v210
    %v599 = vunpack.c.h.b16 %v210
    %v600 = vunpack.c.l.b16 %v211
    %v601 = vunpack.c.h.b16 %v211
    %v602 = vunpack.c.l.b16 %v212
    %v603 = vunpack.c.h.b16 %v212
    %v604 = vunpack.c.l.b16 %v213
    %v605 = vunpack.c.h.b16 %v213
    %v606 = vunpack.c.l.b16 %v214
    %v607 = vunpack.c.h.b16 %v214
    %v608 = vunpack.c.l.b16 %v215
    %v609 = vunpack.c.h.b16 %v215
    %v610 = vunpack.c.l.b16 %v216
    %v611 = vunpack.c.h.b16 %v216
    %v612 = vunpack.c.l.b16 %v217
    %v613 = vunpack.c.h.b16 %v217
    %v614 = vunpack.c.l.b16 %v218
    %v615 = vunpack.c.h.b16 %v218
    %v616 = vunpack.c.l.b16 %v219
    %v617 = vunpack.c.h.b16 %v219
    %v618 = vunpack.c.l.b16 %v220
    %v619 = vunpack.c.h.b16 %v220
    %v620 = vunpack.c.l.b16 %v221
    %v621 = vunpack.c.h.b16 %v221
    %v622 = vunpack.c.l.b16 %v222
    %v623 = vunpack.c.h.b16 %v222
    %v624 = vunpack.c.l.b16 %v223
    %v625 = vunpack.c.h.b16 %v223
    %v626 = vunpack.c.l.b16 %v224
    %v627 = vunpack.c.h.b16 %v224
    %v628 = vunpack.c.l.b16 %v225
    %v629 = vunpack.c.h.b16 %v225
    %v630 = vunpack.c.l.b16 %v226
    %v631 = vunpack.c.h.b16 %v226
    %v632 = vunpack.c.l.b16 %v227
    %v633 = vunpack.c.h.b16 %v227
    %v634 = vunpack.c.l.b16 %v228
    %v635 = vunpack.c.h.b16 %v228
    %v636 = vunpack.c.l.b16 %v229
    %v637 = vunpack.c.h.b16 %v229
    %v638 = vunpack.c.l.b16 %v230
    %v639 = vunpack.c.h.b16 %v230
    %v640 = vunpack.c.l.b16 %v231
    %v641 = vunpack.c.h.b16 %v231
    %v642 = vunpack.c.l.b16 %v232
    %v643 = vunpack.c.h.b16 %v232
    %v644 = vunpack.c.l.b16 %v233
    %v645 = vunpack.c.h.b16 %v233
    %v646 = vunpack.c.l.b16 %v234
    %v647 = vunpack.c.h.b16 %v234
    %v648 = vunpack.c.l.b16 %v235
    %v649 = vunpack.c.h.b16 %v235
    %v650 = vunpack.c.l.b16 %v236
    %v651 = vunpack.c.h.b16 %v236
    %v652 = vunpack.c.l.b16 %v237
    %v653 = vunpack.c.h.b16 %v237
    %v654 = vunpack.c.l.b16 %v238
    %v655 = vunpack.c.h.b16 %v238
    %v656 = vunpack.c.l.b16 %v239
    %v657 = vunpack.c.h.b16 %v239
    %v658 = vunpack.c.l.b16 %v240
    %v659 = vunpack.c.h.b16 %v240
    %v660 = vunpack.c.l.b16 %v241
    %v661 = vunpack.c.h.b16 %v241
    %v662 = vunpack.c.l.b16 %v242
    %v663 = vunpack.c.h.b16 %v242
    %v664 = vunpack.c.l.b16 %v243
    %v665 = vunpack.c.h.b16 %v243
    %v666 = vunpack.c.l.b16 %v244
    %v667 = vunpack.c.h.b16 %v244
    %v668 = vunpack.c.l.b16 %v245
    %v669 = vunpack.c.h.b16 %v245
    %v670 = vunpack.c.l.b16 %v246
    %v671 = vunpack.c.h.b16 %v246
    %v672 = vunpack.c.l.b16 %v247
    %v673 = vunpack.c.h.b16 %v247
    %v674 = vunpack.c.l.b16 %v248
    %v675 = vunpack.c.h.b16 %v248
    %v676 = vunpack.c.l.b16 %v249
    %v677 = vunpack.c.h.b16 %v249
    %v678 = vunpack.c.l.b16 %v250
    %v679 = vunpack.c.h.b16 %v250
    %v680 = vunpack.c.l.b16 %v251
    %v681 = vunpack.c.h.b16 %v251
    %v682 = vunpack.c.l.b16 %v252
    %v683 = vunpack.c.h.b16 %v252
    %v684 = vunpack.c.l.b16 %v253
    %v685 = vunpack.c.h.b16 %v253
    %v686 = vunpack.c.l.b16 %v254
    %v687 = vunpack.c.h.b16 %v254
    %v688 = vunpack.c.l.b16 %v255
    %v689 = vunpack.c.h.b16 %v255
    %v690 = vunpack.c.l.b16 %v256
    %v691 = vunpack.c.h.b16 %v256
    %v692 = vpack.c.b16 %v444, %v436
    %v693 = vpack.c.b16 %v445, %v437
    %v694 = vpack.c.b16 %v446, %v438
    %v695 = vpack.c.b16 %v447, %v439
    %v696 = vpack.c.b16 %v448, %v440
    %v697 = vpack.c.b16 %v449, %v441
    %v698 = vpack.c.b16 %v450, %v442
    %v699 = vpack.c.b16 %v451, %v443
    %v700 = vpack.c.b16 %v460, %v452
    %v701 = vpack.c.b16 %v461, %v453
    %v702 = vpack.c.b16 %v462, %v454
    %v703 = vpack.c.b16 %v463, %v455
    %v704 = vpack.c.b16 %v464, %v456
    %v705 = vpack.c.b16 %v465, %v457
    %v706 = vpack.c.b16 %v466, %v458
    %v707 = vpack.c.b16 %v467, %v459
    %v708 = vpack.c.b16 %v476, %v468
    %v709 = vpack.c.b16 %v477, %v469
    %v710 = vpack.c.b16 %v478, %v470
    %v711 = vpack.c.b16 %v479, %v471
    %v712 = vpack.c.b16 %v480, %v472
    %v713 = vpack.c.b16 %v481, %v473
    %v714 = vpack.c.b16 %v482, %v474
    %v715 = vpack.c.b16 %v483, %v475
    %v716 = vpack.c.b16 %v492, %v484
    %v717 = vpack.c.b16 %v493, %v485
    %v718 = vpack.c.b16 %v494, %v486
    %v719 = vpack.c.b16 %v495, %v487
    %v720 = vpack.c.b16 %v496, %v488
    %v721 = vpack.c.b16 %v497, %v489
    %v722 = vpack.c.b16 %v498, %v490
    %v723 = vpack.c.b16 %v499, %v491
    %v724 = vpack.c.b16 %v508, %v500
    %v725 = vpack.c.b16 %v509, %v501
    %v726 = vpack.c.b16 %v510, %v502
    %v727 = vpack.c.b16 %v511, %v503
    %v728 = vpack.c.b16 %v512, %v504
    %v729 = vpack.c.b16 %v513, %v505
    %v730 = vpack.c.b16 %v514, %v506
    %v731 = vpack.c.b16 %v515, %v507
    %v732 = vpack.c.b16 %v524, %v516
    %v733 = vpack.c.b16 %v525, %v517
    %v734 = vpack.c.b16 %v526, %v518
    %v735 = vpack.c.b16 %v527, %v519
    %v736 = vpack.c.b16 %v528, %v520
    %v737 = vpack.c.b16 %v529, %v521
    %v738 = vpack.c.b16 %v530, %v522
    %v739 = vpack.c.b16 %v531, %v523
    %v740 = vpack.c.b16 %v540, %v532
    %v741 = vpack.c.b16 %v541, %v533
    %v742 = vpack.c.b16 %v542, %v534
    %v743 = vpack.c.b16 %v543, %v535
    %v744 = vpack.c.b16 %v544, %v536
    %v745 = vpack.c.b16 %v545, %v537
    %v746 = vpack.c.b16 %v546, %v538
    %v747 = vpack.c.b16 %v547, %v539
    %v748 = vpack.c.b16 %v556, %v548
    %v749 = vpack.c.b16 %v557, %v549
    %v750 = vpack.c.b16 %v558, %v550
    %v751 = vpack.c.b16 %v559, %v551
    %v752 = vpack.c.b16 %v560, %v552
    %v753 = vpack.c.b16 %v561, %v553
    %v754 = vpack.c.b16 %v562, %v554
    %v755 = vpack.c.b16 %v563, %v555
    %v756 = vpack.c.b16 %v572, %v564
    %v757 = vpack.c.b16 %v573, %v565
    %v758 = vpack.c.b16 %v574, %v566
    %v759 = vpack.c.b16 %v575, %v567
    %v760 = vpack.c.b16 %v576, %v568
    %v761 = vpack.c.b16 %v577, %v569
    %v762 = vpack.c.b16 %v578, %v570
    %v763 = vpack.c.b16 %v579, %v571
    %v764 = vpack.c.b16 %v588, %v580
    %v765 = vpack.c.b16 %v589, %v581
    %v766 = vpack.c.b16 %v590, %v582
    %v767 = vpack.c.b16 %v591, %v583
    %v768 = vpack.c.b16 %v592, %v584
    %v769 = vpack.c.b16 %v593, %v585
    %v770 = vpack.c.b16 %v594, %v586
    %v771 = vpack.c.b16 %v595, %v587
    %v772 = vpack.c.b16 %v604, %v596
    %v773 = vpack.c.b16 %v605, %v597
    %v774 = vpack.c.b16 %v606, %v598
    %v775 = vpack.c.b16 %v607, %v599
    %v776 = vpack.c.b16 %v608, %v600
    %v777 = vpack.c.b16 %v609, %v601
    %v778 = vpack.c.b16 %v610, %v602
    %v779 = vpack.c.b16 %v611, %v603
    %v780 = vpack.c.b16 %v620, %v612
    %v781 = vpack.c.b16 %v621, %v613
    %v782 = vpack.c.b16 %v622, %v614
    %v783 = vpack.c.b16 %v623, %v615
    %v784 = vpack.c.b16 %v624, %v616
    %v785 = vpack.c.b16 %v625, %v617
    %v786 = vpack.c.b16 %v626, %v618
    %v787 = vpack.c.b16 %v627, %v619
    %v788 = vpack.c.b16 %v636, %v628
    %v789 = vpack.c.b16 %v637, %v629
    %v790 = vpack.c.b16 %v638, %v630
    %v791 = vpack.c.b16 %v639, %v631
    %v792 = vpack.c.b16 %v640, %v632
    %v793 = vpack.c.b16 %v641, %v633
    %v794 = vpack.c.b16 %v642, %v634
    %v795 = vpack.c.b16 %v643, %v635
    %v796 = vpack.c.b16 %v652, %v644
    %v797 = vpack.c.b16 %v653, %v645
    %v798 = vpack.c.b16 %v654, %v646
    %v799 = vpack.c.b16 %v655, %v647
    %v800 = vpack.c.b16 %v656, %v648
    %v801 = vpack.c.b16 %v657, %v649
    %v802 = vpack.c.b16 %v658, %v650
    %v803 = vpack.c.b16 %v659, %v651
    %v804 = vpack.c.b16 %v668, %v660
    %v805 = vpack.c.b16 %v669, %v661
    %v806 = vpack.c.b16 %v670, %v662
    %v807 = vpack.c.b16 %v671, %v663
    %v808 = vpack.c.b16 %v672, %v664
    %v809 = vpack.c.b16 %v673, %v665
    %v810 = vpack.c.b16 %v674, %v666
    %v811 = vpack.c.b16 %v675, %v667
    %v812 = vpack.c.b16 %v684, %v676
    %v813 = vpack.c.b16 %v685, %v677
    %v814 = vpack.c.b16 %v686, %v678
    %v815 = vpack.c.b16 %v687, %v679
    %v816 = vpack.c.b16 %v688, %v680
    %v817 = vpack.c.b16 %v689, %v681
    %v818 = vpack.c.b16 %v690, %v682
    %v819 = vpack.c.b16 %v691, %v683
    %948 = vmatprep.subr.bf16.mxu0 %v693
    %949 = vmatpush1.bf16.msra.mxu0 %v692
    %950 = vmatprep.subr.bf16.mxu0 %v701
    %951 = vmatpush1.bf16.msra.mxu0 %v700
    %952 = vmatprep.subr.bf16.mxu0 %v709
    %953 = vmatpush1.bf16.msra.mxu0 %v708
    %954 = vmatprep.subr.bf16.mxu0 %v717
    %955 = vmatpush1.bf16.msra.mxu0 %v716
    %956 = vmatprep.subr.bf16.mxu0 %v725
    %957 = vmatpush1.bf16.msra.mxu0 %v724
    %958 = vmatprep.subr.bf16.mxu0 %v733
    %959 = vmatpush1.bf16.msra.mxu0 %v732
    %960 = vmatprep.subr.bf16.mxu0 %v741
    %961 = vmatpush1.bf16.msra.mxu0 %v740
    %962 = vmatprep.subr.bf16.mxu0 %v749
    %963 = vmatpush1.bf16.msra.mxu0 %v748
    %964 = vmatprep.subr.bf16.mxu0 %v757
    %965 = vmatpush1.bf16.msra.mxu0 %v756
    %966 = vmatprep.subr.bf16.mxu0 %v765
    %967 = vmatpush1.bf16.msra.mxu0 %v764
    %968 = vmatprep.subr.bf16.mxu0 %v773
    %969 = vmatpush1.bf16.msra.mxu0 %v772
    %970 = vmatprep.subr.bf16.mxu0 %v781
    %971 = vmatpush1.bf16.msra.mxu0 %v780
    %972 = vmatprep.subr.bf16.mxu0 %v789
    %973 = vmatpush1.bf16.msra.mxu0 %v788
    %974 = vmatprep.subr.bf16.mxu0 %v797
    %975 = vmatpush1.bf16.msra.mxu0 %v796
    %976 = vmatprep.subr.bf16.mxu0 %v805
    %977 = vmatpush1.bf16.msra.mxu0 %v804
    %978 = vmatprep.subr.bf16.mxu0 %v813
    %979 = vmatpush1.bf16.msra.mxu0 %v812
    %980 = vmatprep.mubr.bf16.mxu0 %v305
    %981 = vmatmul.mubr.bf16.gmra.mrb[0].mxu0 %v304
    %v982 = vpop.f32.mrb[0].mxu0
    %v983 = vadd.f32 %v261, %v982
    %v984 = vpop.f32.mrb[0].mxu0
    %v985 = vadd.f32 %v265, %v984
    %v986 = vpop.f32.mrb[0].mxu0
    %v987 = vadd.f32 %v261, %v986
    %v988 = vpop.f32.mrb[0].mxu0
    %v989 = vadd.f32 %v265, %v988
    %990 = vdwg.mxu0
    %991 = vmatprep.subr.bf16.mxu0 %v695
    %992 = vmatpush1.bf16.msra.mxu0 %v694
    %993 = vmatprep.subr.bf16.mxu0 %v703
    %994 = vmatpush1.bf16.msra.mxu0 %v702
    %995 = vmatprep.subr.bf16.mxu0 %v711
    %996 = vmatpush1.bf16.msra.mxu0 %v710
    %997 = vmatprep.subr.bf16.mxu0 %v719
    %998 = vmatpush1.bf16.msra.mxu0 %v718
    %999 = vmatprep.subr.bf16.mxu0 %v727
    %1000 = vmatpush1.bf16.msra.mxu0 %v726
    %1001 = vmatprep.subr.bf16.mxu0 %v735
    %1002 = vmatpush1.bf16.msra.mxu0 %v734
    %1003 = vmatprep.subr.bf16.mxu0 %v743
    %1004 = vmatpush1.bf16.msra.mxu0 %v742
    %1005 = vmatprep.subr.bf16.mxu0 %v751
    %1006 = vmatpush1.bf16.msra.mxu0 %v750
    %1007 = vmatprep.subr.bf16.mxu0 %v759
    %1008 = vmatpush1.bf16.msra.mxu0 %v758
    %1009 = vmatprep.subr.bf16.mxu0 %v767
    %1010 = vmatpush1.bf16.msra.mxu0 %v766
    %1011 = vmatprep.subr.bf16.mxu0 %v775
    %1012 = vmatpush1.bf16.msra.mxu0 %v774
    %1013 = vmatprep.subr.bf16.mxu0 %v783
    %1014 = vmatpush1.bf16.msra.mxu0 %v782
    %1015 = vmatprep.subr.bf16.mxu0 %v791
    %1016 = vmatpush1.bf16.msra.mxu0 %v790
    %1017 = vmatprep.subr.bf16.mxu0 %v799
    %1018 = vmatpush1.bf16.msra.mxu0 %v798
    %1019 = vmatprep.subr.bf16.mxu0 %v807
    %1020 = vmatpush1.bf16.msra.mxu0 %v806
    %1021 = vmatprep.subr.bf16.mxu0 %v815
    %1022 = vmatpush1.bf16.msra.mxu0 %v814
    %1023 = vmatprep.mubr.bf16.mxu0 %v305
    %1024 = vmatmul.mubr.bf16.gmra.mrb[0].mxu0 %v304
    %v1025 = vpop.f32.mrb[0].mxu0
    %v1026 = vadd.f32 %v269, %v1025
    %v1027 = vpop.f32.mrb[0].mxu0
    %v1028 = vadd.f32 %v273, %v1027
    %v1029 = vpop.f32.mrb[0].mxu0
    %v1030 = vadd.f32 %v269, %v1029
    %v1031 = vpop.f32.mrb[0].mxu0
    %v1032 = vadd.f32 %v273, %v1031
    %1033 = vdwg.mxu0
    %1034 = vmatprep.subr.bf16.mxu0 %v697
    %1035 = vmatpush1.bf16.msra.mxu0 %v696
    %1036 = vmatprep.subr.bf16.mxu0 %v705
    %1037 = vmatpush1.bf16.msra.mxu0 %v704
    %1038 = vmatprep.subr.bf16.mxu0 %v713
    %1039 = vmatpush1.bf16.msra.mxu0 %v712
    %1040 = vmatprep.subr.bf16.mxu0 %v721
    %1041 = vmatpush1.bf16.msra.mxu0 %v720
    %1042 = vmatprep.subr.bf16.mxu0 %v729
    %1043 = vmatpush1.bf16.msra.mxu0 %v728
    %1044 = vmatprep.subr.bf16.mxu0 %v737
    %1045 = vmatpush1.bf16.msra.mxu0 %v736
    %1046 = vmatprep.subr.bf16.mxu0 %v745
    %1047 = vmatpush1.bf16.msra.mxu0 %v744
    %1048 = vmatprep.subr.bf16.mxu0 %v753
    %1049 = vmatpush1.bf16.msra.mxu0 %v752
    %1050 = vmatprep.subr.bf16.mxu0 %v761
    %1051 = vmatpush1.bf16.msra.mxu0 %v760
    %1052 = vmatprep.subr.bf16.mxu0 %v769
    %1053 = vmatpush1.bf16.msra.mxu0 %v768
    %1054 = vmatprep.subr.bf16.mxu0 %v777
    %1055 = vmatpush1.bf16.msra.mxu0 %v776
    %1056 = vmatprep.subr.bf16.mxu0 %v785
    %1057 = vmatpush1.bf16.msra.mxu0 %v784
    %1058 = vmatprep.subr.bf16.mxu0 %v793
    %1059 = vmatpush1.bf16.msra.mxu0 %v792
    %1060 = vmatprep.subr.bf16.mxu0 %v801
    %1061 = vmatpush1.bf16.msra.mxu0 %v800
    %1062 = vmatprep.subr.bf16.mxu0 %v809
    %1063 = vmatpush1.bf16.msra.mxu0 %v808
    %1064 = vmatprep.subr.bf16.mxu0 %v817
    %1065 = vmatpush1.bf16.msra.mxu0 %v816
    %1066 = vmatprep.mubr.bf16.mxu0 %v305
    %1067 = vmatmul.mubr.bf16.gmra.mrb[0].mxu0 %v304
    %v1068 = vpop.f32.mrb[0].mxu0
    %v1069 = vadd.f32 %v277, %v1068
    %v1070 = vpop.f32.mrb[0].mxu0
    %v1071 = vadd.f32 %v281, %v1070
    %v1072 = vpop.f32.mrb[0].mxu0
    %v1073 = vadd.f32 %v277, %v1072
    %v1074 = vpop.f32.mrb[0].mxu0
    %v1075 = vadd.f32 %v281, %v1074
    %1076 = vdwg.mxu0
    %1077 = vmatprep.subr.bf16.mxu0 %v699
    %1078 = vmatpush1.bf16.msra.mxu0 %v698
    %1079 = vmatprep.subr.bf16.mxu0 %v707
    %1080 = vmatpush1.bf16.msra.mxu0 %v706
    %1081 = vmatprep.subr.bf16.mxu0 %v715
    %1082 = vmatpush1.bf16.msra.mxu0 %v714
    %1083 = vmatprep.subr.bf16.mxu0 %v723
    %1084 = vmatpush1.bf16.msra.mxu0 %v722
    %1085 = vmatprep.subr.bf16.mxu0 %v731
    %1086 = vmatpush1.bf16.msra.mxu0 %v730
    %1087 = vmatprep.subr.bf16.mxu0 %v739
    %1088 = vmatpush1.bf16.msra.mxu0 %v738
    %1089 = vmatprep.subr.bf16.mxu0 %v747
    %1090 = vmatpush1.bf16.msra.mxu0 %v746
    %1091 = vmatprep.subr.bf16.mxu0 %v755
    %1092 = vmatpush1.bf16.msra.mxu0 %v754
    %1093 = vmatprep.subr.bf16.mxu0 %v763
    %1094 = vmatpush1.bf16.msra.mxu0 %v762
    %1095 = vmatprep.subr.bf16.mxu0 %v771
    %1096 = vmatpush1.bf16.msra.mxu0 %v770
    %1097 = vmatprep.subr.bf16.mxu0 %v779
    %1098 = vmatpush1.bf16.msra.mxu0 %v778
    %1099 = vmatprep.subr.bf16.mxu0 %v787
    %1100 = vmatpush1.bf16.msra.mxu0 %v786
    %1101 = vmatprep.subr.bf16.mxu0 %v795
    %1102 = vmatpush1.bf16.msra.mxu0 %v794
    %1103 = vmatprep.subr.bf16.mxu0 %v803
    %1104 = vmatpush1.bf16.msra.mxu0 %v802
    %1105 = vmatprep.subr.bf16.mxu0 %v811
    %1106 = vmatpush1.bf16.msra.mxu0 %v810
    %1107 = vmatprep.subr.bf16.mxu0 %v819
    %1108 = vmatpush1.bf16.msra.mxu0 %v818
    %1109 = vmatprep.mubr.bf16.mxu0 %v305
    %1110 = vmatmul.mubr.bf16.gmra.mrb[0].mxu0 %v304
    %v1111 = vpop.f32.mrb[0].mxu0
    %v1112 = vadd.f32 %v285, %v1111
    %v1113 = vpop.f32.mrb[0].mxu0
    %v1114 = vadd.f32 %v289, %v1113
    %v1115 = vpop.f32.mrb[0].mxu0
    %v1116 = vadd.f32 %v285, %v1115
    %v1117 = vpop.f32.mrb[0].mxu0
    %v1118 = vadd.f32 %v289, %v1117
    %1119 = vdwg.mxu0
    %vm1120 = vcmp.gt.f32.partialorder %v983, 0.0
    %vm1121 = vcmp.gt.f32.partialorder %v985, 0.0
    %vm1122 = vcmp.gt.f32.partialorder %v1026, 0.0
    %vm1123 = vcmp.gt.f32.partialorder %v1028, 0.0
    %vm1124 = vcmp.gt.f32.partialorder %v1069, 0.0
    %vm1125 = vcmp.gt.f32.partialorder %v1071, 0.0
    %vm1126 = vcmp.gt.f32.partialorder %v1112, 0.0
    %vm1127 = vcmp.gt.f32.partialorder %v1114, 0.0
    %vm1128 = vcmp.gt.f32.partialorder %v987, 0.0
    %vm1129 = vcmp.gt.f32.partialorder %v989, 0.0
    %vm1130 = vcmp.gt.f32.partialorder %v1030, 0.0
    %vm1131 = vcmp.gt.f32.partialorder %v1032, 0.0
    %vm1132 = vcmp.gt.f32.partialorder %v1073, 0.0
    %vm1133 = vcmp.gt.f32.partialorder %v1075, 0.0
    %vm1134 = vcmp.gt.f32.partialorder %v1116, 0.0
    %vm1135 = vcmp.gt.f32.partialorder %v1118, 0.0
    %v1136 = vmul.f32 %v983, 0.2
    %v1137 = vmul.f32 %v985, 0.2
    %v1138 = vmul.f32 %v1026, 0.2
    %v1139 = vmul.f32 %v1028, 0.2
    %v1140 = vmul.f32 %v1069, 0.2
    %v1141 = vmul.f32 %v1071, 0.2
    %v1142 = vmul.f32 %v1112, 0.2
    %v1143 = vmul.f32 %v1114, 0.2
    %v1144 = vmul.f32 %v987, 0.2
    %v1145 = vmul.f32 %v989, 0.2
    %v1146 = vmul.f32 %v1030, 0.2
    %v1147 = vmul.f32 %v1032, 0.2
    %v1148 = vmul.f32 %v1073, 0.2
    %v1149 = vmul.f32 %v1075, 0.2
    %v1150 = vmul.f32 %v1116, 0.2
    %v1151 = vmul.f32 %v1118, 0.2
    %v1152 = vsel %vm1120, %v983, %v1136
    %v1153 = vsel %vm1121, %v985, %v1137
    %v1154 = vsel %vm1122, %v1026, %v1138
    %v1155 = vsel %vm1123, %v1028, %v1139
    %v1156 = vsel %vm1124, %v1069, %v1140
    %v1157 = vsel %vm1125, %v1071, %v1141
    %v1158 = vsel %vm1126, %v1112, %v1142
    %v1159 = vsel %vm1127, %v1114, %v1143
    %v1160 = vsel %vm1128, %v987, %v1144
    %v1161 = vsel %vm1129, %v989, %v1145
    %v1162 = vsel %vm1130, %v1030, %v1146
    %v1163 = vsel %vm1131, %v1032, %v1147
    %v1164 = vsel %vm1132, %v1073, %v1148
    %v1165 = vsel %vm1133, %v1075, %v1149
    %v1166 = vsel %vm1134, %v1116, %v1150
    %v1167 = vsel %vm1135, %v1118, %v1151
    %v1168 = vld [vmem:[%s1] sm:$0xf]
    %v1169 = vld [vmem:[%s1 + $0x4] sm:$0xf]
    %v1170 = vld [vmem:[#allocation4] sm:$0xff]
    %v1171 = vld [vmem:[#allocation4 + $0x8] sm:$0xff]
    %v1172 = vld [vmem:[#allocation4 + $0x10] sm:$0xff]
    %v1173 = vld [vmem:[#allocation4 + $0x18] sm:$0xff]
    %v1174 = vld [vmem:[#allocation4 + $0x20] sm:$0x11]
    %v1175 = vld [vmem:[#allocation4 + $0x28] sm:$0x11]
    %v1176 = vld [vmem:[#allocation4 + $0x30] sm:$0x11]
    %v1177 = vld [vmem:[#allocation4 + $0x38] sm:$0x11]
    %v1179 = vlaneseq
    %v1180 = vshrl.u32 %v1179, 7
    %v1181 = vsub.s32 0, %v1180
    %v1182 = vrot.slane %v111, %v1181
    %v1183 = vlaneseq
    %v1184 = vshrl.u32 %v1183, 7
    %v1185 = vsub.s32 1, %v1184
    %v1186 = vrot.slane %v111, %v1185
    %v1187 = vlaneseq
    %v1188 = vshrl.u32 %v1187, 7
    %v1189 = vsub.s32 2, %v1188
    %v1190 = vrot.slane %v111, %v1189
    %v1191 = vlaneseq
    %v1192 = vshrl.u32 %v1191, 7
    %v1193 = vsub.s32 3, %v1192
    %v1194 = vrot.slane %v111, %v1193
    %v1195 = vlaneseq
    %v1196 = vshrl.u32 %v1195, 7
    %v1197 = vsub.s32 4, %v1196
    %v1198 = vrot.slane %v111, %v1197
    %v1199 = vlaneseq
    %v1200 = vshrl.u32 %v1199, 7
    %v1201 = vsub.s32 5, %v1200
    %v1202 = vrot.slane %v111, %v1201
    %v1203 = vlaneseq
    %v1204 = vshrl.u32 %v1203, 7
    %v1205 = vsub.s32 6, %v1204
    %v1206 = vrot.slane %v111, %v1205
    %v1207 = vlaneseq
    %v1208 = vshrl.u32 %v1207, 7
    %v1209 = vsub.s32 7, %v1208
    %v1210 = vrot.slane %v111, %v1209
    %v1221 = vunpack.c.l.b16 %v1168
    %v1222 = vunpack.c.l.b16 %v1169
    %v1223 = vpack.c.b16 %v1222, %v1221
    %v1232 = vunpack.c.l.b16 %v1170
    %v1233 = vunpack.c.h.b16 %v1170
    %v1234 = vunpack.c.l.b16 %v1171
    %v1235 = vunpack.c.h.b16 %v1171
    %v1236 = vunpack.c.l.b16 %v1172
    %v1237 = vunpack.c.h.b16 %v1172
    %v1238 = vunpack.c.l.b16 %v1173
    %v1239 = vunpack.c.h.b16 %v1173
    %v1240 = vunpack.c.l.b16 %v1174
    %v1241 = vunpack.c.h.b16 %v1174
    %v1242 = vunpack.c.l.b16 %v1175
    %v1243 = vunpack.c.h.b16 %v1175
    %v1244 = vunpack.c.l.b16 %v1176
    %v1245 = vunpack.c.h.b16 %v1176
    %v1246 = vunpack.c.l.b16 %v1177
    %v1247 = vunpack.c.h.b16 %v1177
    %v1248 = vpack.c.b16 %v1240, %v1232
    %v1249 = vpack.c.b16 %v1241, %v1233
    %v1250 = vpack.c.b16 %v1242, %v1234
    %v1251 = vpack.c.b16 %v1243, %v1235
    %v1252 = vpack.c.b16 %v1244, %v1236
    %v1253 = vpack.c.b16 %v1245, %v1237
    %v1254 = vpack.c.b16 %v1246, %v1238
    %v1255 = vpack.c.b16 %v1247, %v1239
    %vm1256 = vcmask 80896
    %v1258 = vsel %vm1256, %v1223, 0
    %vm1260 = vcmask 1044480
    %v1262 = vsel %vm1260, %v1248, 0
    %v1265 = vsel %vm1260, %v1249, 0
    %v1268 = vsel %vm1260, %v1250, 0
    %v1271 = vsel %vm1260, %v1251, 0
    %v1274 = vsel %vm1260, %v1252, 0
    %v1277 = vsel %vm1260, %v1253, 0
    %v1280 = vsel %vm1260, %v1254, 0
    %v1283 = vsel %vm1260, %v1255, 0
    %1285 = vmatprep.subr.bf16.mxu0 %v1265
    %1286 = vmatpush1.bf16.msra.mxu0 %v1262
    %1287 = vmatprep.subr.bf16.mxu0 0
    %1288 = vmatpush1.bf16.msra.mxu0 0
    %1289 = vmatprep.subr.bf16.mxu0 0
    %1290 = vmatpush1.bf16.msra.mxu0 0
    %1291 = vmatprep.subr.bf16.mxu0 0
    %1292 = vmatpush1.bf16.msra.mxu0 0
    %1293 = vmatprep.subr.bf16.mxu0 0
    %1294 = vmatpush1.bf16.msra.mxu0 0
    %1295 = vmatprep.subr.bf16.mxu0 0
    %1296 = vmatpush1.bf16.msra.mxu0 0
    %1297 = vmatprep.subr.bf16.mxu0 0
    %1298 = vmatpush1.bf16.msra.mxu0 0
    %1299 = vmatprep.subr.bf16.mxu0 0
    %1300 = vmatpush1.bf16.msra.mxu0 0
    %1301 = vmatprep.subr.bf16.mxu0 0
    %1302 = vmatpush1.bf16.msra.mxu0 0
    %1303 = vmatprep.subr.bf16.mxu0 0
    %1304 = vmatpush1.bf16.msra.mxu0 0
    %1305 = vmatprep.subr.bf16.mxu0 0
    %1306 = vmatpush1.bf16.msra.mxu0 0
    %1307 = vmatprep.subr.bf16.mxu0 0
    %1308 = vmatpush1.bf16.msra.mxu0 0
    %1309 = vmatprep.subr.bf16.mxu0 0
    %1310 = vmatpush1.bf16.msra.mxu0 0
    %1311 = vmatprep.subr.bf16.mxu0 0
    %1312 = vmatpush1.bf16.msra.mxu0 0
    %1313 = vmatprep.subr.bf16.mxu0 0
    %1314 = vmatpush1.bf16.msra.mxu0 0
    %1315 = vmatprep.subr.bf16.mxu0 0
    %1316 = vmatpush1.bf16.msra.mxu0 0
    %1317 = vmatprep.mubr.bf16.mxu0 0
    %1318 = vmatmul.mubr.bf16.gmra.mrb[0].mxu0 %v1258
    %v1319 = vpop.f32.mrb[0].mxu0
    %v1320 = vadd.f32 %v1182, %v1319
    %v1321 = vpop.f32.mrb[0].mxu0
    %v1322 = vadd.f32 %v1186, %v1321
    %v1323 = vpop.f32.mrb[0].mxu0
    %v1324 = vadd.f32 %v1182, %v1323
    %v1325 = vpop.f32.mrb[0].mxu0
    %v1326 = vadd.f32 %v1186, %v1325
    %1327 = vdwg.mxu0
    %1328 = vmatprep.subr.bf16.mxu0 %v1271
    %1329 = vmatpush1.bf16.msra.mxu0 %v1268
    %1330 = vmatprep.subr.bf16.mxu0 0
    %1331 = vmatpush1.bf16.msra.mxu0 0
    %1332 = vmatprep.subr.bf16.mxu0 0
    %1333 = vmatpush1.bf16.msra.mxu0 0
    %1334 = vmatprep.subr.bf16.mxu0 0
    %1335 = vmatpush1.bf16.msra.mxu0 0
    %1336 = vmatprep.subr.bf16.mxu0 0
    %1337 = vmatpush1.bf16.msra.mxu0 0
    %1338 = vmatprep.subr.bf16.mxu0 0
    %1339 = vmatpush1.bf16.msra.mxu0 0
    %1340 = vmatprep.subr.bf16.mxu0 0
    %1341 = vmatpush1.bf16.msra.mxu0 0
    %1342 = vmatprep.subr.bf16.mxu0 0
    %1343 = vmatpush1.bf16.msra.mxu0 0
    %1344 = vmatprep.subr.bf16.mxu0 0
    %1345 = vmatpush1.bf16.msra.mxu0 0
    %1346 = vmatprep.subr.bf16.mxu0 0
    %1347 = vmatpush1.bf16.msra.mxu0 0
    %1348 = vmatprep.subr.bf16.mxu0 0
    %1349 = vmatpush1.bf16.msra.mxu0 0
    %1350 = vmatprep.subr.bf16.mxu0 0
    %1351 = vmatpush1.bf16.msra.mxu0 0
    %1352 = vmatprep.subr.bf16.mxu0 0
    %1353 = vmatpush1.bf16.msra.mxu0 0
    %1354 = vmatprep.subr.bf16.mxu0 0
    %1355 = vmatpush1.bf16.msra.mxu0 0
    %1356 = vmatprep.subr.bf16.mxu0 0
    %1357 = vmatpush1.bf16.msra.mxu0 0
    %1358 = vmatprep.subr.bf16.mxu0 0
    %1359 = vmatpush1.bf16.msra.mxu0 0
    %1360 = vmatprep.mubr.bf16.mxu0 0
    %1361 = vmatmul.mubr.bf16.gmra.mrb[0].mxu0 %v1258
    %v1362 = vpop.f32.mrb[0].mxu0
    %v1363 = vadd.f32 %v1190, %v1362
    %v1364 = vpop.f32.mrb[0].mxu0
    %v1365 = vadd.f32 %v1194, %v1364
    %v1366 = vpop.f32.mrb[0].mxu0
    %v1367 = vadd.f32 %v1190, %v1366
    %v1368 = vpop.f32.mrb[0].mxu0
    %v1369 = vadd.f32 %v1194, %v1368
    %1370 = vdwg.mxu0
    %1371 = vmatprep.subr.bf16.mxu0 %v1277
    %1372 = vmatpush1.bf16.msra.mxu0 %v1274
    %1373 = vmatprep.subr.bf16.mxu0 0
    %1374 = vmatpush1.bf16.msra.mxu0 0
    %1375 = vmatprep.subr.bf16.mxu0 0
    %1376 = vmatpush1.bf16.msra.mxu0 0
    %1377 = vmatprep.subr.bf16.mxu0 0
    %1378 = vmatpush1.bf16.msra.mxu0 0
    %1379 = vmatprep.subr.bf16.mxu0 0
    %1380 = vmatpush1.bf16.msra.mxu0 0
    %1381 = vmatprep.subr.bf16.mxu0 0
    %1382 = vmatpush1.bf16.msra.mxu0 0
    %1383 = vmatprep.subr.bf16.mxu0 0
    %1384 = vmatpush1.bf16.msra.mxu0 0
    %1385 = vmatprep.subr.bf16.mxu0 0
    %1386 = vmatpush1.bf16.msra.mxu0 0
    %1387 = vmatprep.subr.bf16.mxu0 0
    %1388 = vmatpush1.bf16.msra.mxu0 0
    %1389 = vmatprep.subr.bf16.mxu0 0
    %1390 = vmatpush1.bf16.msra.mxu0 0
    %1391 = vmatprep.subr.bf16.mxu0 0
    %1392 = vmatpush1.bf16.msra.mxu0 0
    %1393 = vmatprep.subr.bf16.mxu0 0
    %1394 = vmatpush1.bf16.msra.mxu0 0
    %1395 = vmatprep.subr.bf16.mxu0 0
    %1396 = vmatpush1.bf16.msra.mxu0 0
    %1397 = vmatprep.subr.bf16.mxu0 0
    %1398 = vmatpush1.bf16.msra.mxu0 0
    %1399 = vmatprep.subr.bf16.mxu0 0
    %1400 = vmatpush1.bf16.msra.mxu0 0
    %1401 = vmatprep.subr.bf16.mxu0 0
    %1402 = vmatpush1.bf16.msra.mxu0 0
    %1403 = vmatprep.mubr.bf16.mxu0 0
    %1404 = vmatmul.mubr.bf16.gmra.mrb[0].mxu0 %v1258
    %v1405 = vpop.f32.mrb[0].mxu0
    %v1406 = vadd.f32 %v1198, %v1405
    %v1407 = vpop.f32.mrb[0].mxu0
    %v1408 = vadd.f32 %v1202, %v1407
    %v1409 = vpop.f32.mrb[0].mxu0
    %v1410 = vadd.f32 %v1198, %v1409
    %v1411 = vpop.f32.mrb[0].mxu0
    %v1412 = vadd.f32 %v1202, %v1411
    %1413 = vdwg.mxu0
    %1414 = vmatprep.subr.bf16.mxu0 %v1283
    %1415 = vmatpush1.bf16.msra.mxu0 %v1280
    %1416 = vmatprep.subr.bf16.mxu0 0
    %1417 = vmatpush1.bf16.msra.mxu0 0
    %1418 = vmatprep.subr.bf16.mxu0 0
    %1419 = vmatpush1.bf16.msra.mxu0 0
    %1420 = vmatprep.subr.bf16.mxu0 0
    %1421 = vmatpush1.bf16.msra.mxu0 0
    %1422 = vmatprep.subr.bf16.mxu0 0
    %1423 = vmatpush1.bf16.msra.mxu0 0
    %1424 = vmatprep.subr.bf16.mxu0 0
    %1425 = vmatpush1.bf16.msra.mxu0 0
    %1426 = vmatprep.subr.bf16.mxu0 0
    %1427 = vmatpush1.bf16.msra.mxu0 0
    %1428 = vmatprep.subr.bf16.mxu0 0
    %1429 = vmatpush1.bf16.msra.mxu0 0
    %1430 = vmatprep.subr.bf16.mxu0 0
    %1431 = vmatpush1.bf16.msra.mxu0 0
    %1432 = vmatprep.subr.bf16.mxu0 0
    %1433 = vmatpush1.bf16.msra.mxu0 0
    %1434 = vmatprep.subr.bf16.mxu0 0
    %1435 = vmatpush1.bf16.msra.mxu0 0
    %1436 = vmatprep.subr.bf16.mxu0 0
    %1437 = vmatpush1.bf16.msra.mxu0 0
    %1438 = vmatprep.subr.bf16.mxu0 0
    %1439 = vmatpush1.bf16.msra.mxu0 0
    %1440 = vmatprep.subr.bf16.mxu0 0
    %1441 = vmatpush1.bf16.msra.mxu0 0
    %1442 = vmatprep.subr.bf16.mxu0 0
    %1443 = vmatpush1.bf16.msra.mxu0 0
    %1444 = vmatprep.subr.bf16.mxu0 0
    %1445 = vmatpush1.bf16.msra.mxu0 0
    %1446 = vmatprep.mubr.bf16.mxu0 0
    %1447 = vmatmul.mubr.bf16.gmra.mrb[0].mxu0 %v1258
    %v1448 = vpop.f32.mrb[0].mxu0
    %v1449 = vadd.f32 %v1206, %v1448
    %v1450 = vpop.f32.mrb[0].mxu0
    %v1451 = vadd.f32 %v1210, %v1450
    %v1452 = vpop.f32.mrb[0].mxu0
    %v1453 = vadd.f32 %v1206, %v1452
    %v1454 = vpop.f32.mrb[0].mxu0
    %v1455 = vadd.f32 %v1210, %v1454
    %1456 = vdwg.mxu0
    %vm1457 = vcmp.gt.f32.partialorder %v1320, 0.0
    %vm1458 = vcmp.gt.f32.partialorder %v1322, 0.0
    %vm1459 = vcmp.gt.f32.partialorder %v1363, 0.0
    %vm1460 = vcmp.gt.f32.partialorder %v1365, 0.0
    %vm1461 = vcmp.gt.f32.partialorder %v1406, 0.0
    %vm1462 = vcmp.gt.f32.partialorder %v1408, 0.0
    %vm1463 = vcmp.gt.f32.partialorder %v1449, 0.0
    %vm1464 = vcmp.gt.f32.partialorder %v1451, 0.0
    %vm1465 = vcmp.gt.f32.partialorder %v1324, 0.0
    %vm1466 = vcmp.gt.f32.partialorder %v1326, 0.0
    %vm1467 = vcmp.gt.f32.partialorder %v1367, 0.0
    %vm1468 = vcmp.gt.f32.partialorder %v1369, 0.0
    %vm1469 = vcmp.gt.f32.partialorder %v1410, 0.0
    %vm1470 = vcmp.gt.f32.partialorder %v1412, 0.0
    %vm1471 = vcmp.gt.f32.partialorder %v1453, 0.0
    %vm1472 = vcmp.gt.f32.partialorder %v1455, 0.0
    %v1473 = vmul.f32 %v1320, 0.2
    %v1474 = vmul.f32 %v1322, 0.2
    %v1475 = vmul.f32 %v1363, 0.2
    %v1476 = vmul.f32 %v1365, 0.2
    %v1477 = vmul.f32 %v1406, 0.2
    %v1478 = vmul.f32 %v1408, 0.2
    %v1479 = vmul.f32 %v1449, 0.2
    %v1480 = vmul.f32 %v1451, 0.2
    %v1481 = vmul.f32 %v1324, 0.2
    %v1482 = vmul.f32 %v1326, 0.2
    %v1483 = vmul.f32 %v1367, 0.2
    %v1484 = vmul.f32 %v1369, 0.2
    %v1485 = vmul.f32 %v1410, 0.2
    %v1486 = vmul.f32 %v1412, 0.2
    %v1487 = vmul.f32 %v1453, 0.2
    %v1488 = vmul.f32 %v1455, 0.2
    %v1489 = vsel %vm1457, %v1320, %v1473
    %v1490 = vsel %vm1458, %v1322, %v1474
    %v1491 = vsel %vm1459, %v1363, %v1475
    %v1492 = vsel %vm1460, %v1365, %v1476
    %v1493 = vsel %vm1461, %v1406, %v1477
    %v1494 = vsel %vm1462, %v1408, %v1478
    %v1495 = vsel %vm1463, %v1449, %v1479
    %v1496 = vsel %vm1464, %v1451, %v1480
    %v1497 = vsel %vm1465, %v1324, %v1481
    %v1498 = vsel %vm1466, %v1326, %v1482
    %v1499 = vsel %vm1467, %v1367, %v1483
    %v1500 = vsel %vm1468, %v1369, %v1484
    %v1501 = vsel %vm1469, %v1410, %v1485
    %v1502 = vsel %vm1470, %v1412, %v1486
    %v1503 = vsel %vm1471, %v1453, %v1487
    %v1504 = vsel %vm1472, %v1455, %v1488
    %v1505 = vpack.c.bf16 %v1160, %v1152
    %v1506 = vpack.c.bf16 %v1161, %v1153
    %v1507 = vpack.c.bf16 %v1162, %v1154
    %v1508 = vpack.c.bf16 %v1163, %v1155
    %v1509 = vpack.c.bf16 %v1164, %v1156
    %v1510 = vpack.c.bf16 %v1165, %v1157
    %v1511 = vpack.c.bf16 %v1166, %v1158
    %v1512 = vpack.c.bf16 %v1167, %v1159
    %v1513 = vld [vmem:[#allocation6] sm:$0xff]
    %v1514 = vld [vmem:[#allocation6 + $0x8] sm:$0xff]
    %v1515 = vld [vmem:[#allocation6 + $0x10] sm:$0xff]
    %v1516 = vld [vmem:[#allocation6 + $0x18] sm:$0xff]
    %v1517 = vld [vmem:[#allocation6 + $0x20] sm:$0xff]
    %v1518 = vld [vmem:[#allocation6 + $0x28] sm:$0xff]
    %v1519 = vld [vmem:[#allocation6 + $0x30] sm:$0xff]
    %v1520 = vld [vmem:[#allocation6 + $0x38] sm:$0xff]
    %v1521 = vld [vmem:[#allocation6 + $0x40] sm:$0xff]
    %v1522 = vld [vmem:[#allocation6 + $0x48] sm:$0xff]
    %v1523 = vld [vmem:[#allocation6 + $0x50] sm:$0xff]
    %v1524 = vld [vmem:[#allocation6 + $0x58] sm:$0xff]
    %v1525 = vld [vmem:[#allocation6 + $0x60] sm:$0xff]
    %v1526 = vld [vmem:[#allocation6 + $0x68] sm:$0xff]
    %v1527 = vld [vmem:[#allocation6 + $0x70] sm:$0xff]
    %v1528 = vld [vmem:[#allocation6 + $0x78] sm:$0xff]
    %v1529 = vld [vmem:[#allocation6 + $0x80] sm:$0xff]
    %v1530 = vld [vmem:[#allocation6 + $0x88] sm:$0xff]
    %v1531 = vld [vmem:[#allocation6 + $0x90] sm:$0xff]
    %v1532 = vld [vmem:[#allocation6 + $0x98] sm:$0xff]
    %v1533 = vld [vmem:[#allocation6 + $0xa0] sm:$0xff]
    %v1534 = vld [vmem:[#allocation6 + $0xa8] sm:$0xff]
    %v1535 = vld [vmem:[#allocation6 + $0xb0] sm:$0xff]
    %v1536 = vld [vmem:[#allocation6 + $0xb8] sm:$0xff]
    %v1537 = vld [vmem:[#allocation6 + $0xc0] sm:$0xff]
    %v1538 = vld [vmem:[#allocation6 + $0xc8] sm:$0xff]
    %v1539 = vld [vmem:[#allocation6 + $0xd0] sm:$0xff]
    %v1540 = vld [vmem:[#allocation6 + $0xd8] sm:$0xff]
    %v1541 = vld [vmem:[#allocation6 + $0xe0] sm:$0xff]
    %v1542 = vld [vmem:[#allocation6 + $0xe8] sm:$0xff]
    %v1543 = vld [vmem:[#allocation6 + $0xf0] sm:$0xff]
    %v1544 = vld [vmem:[#allocation6 + $0xf8] sm:$0xff]
    %v1545 = vld [vmem:[#allocation6 + $0x100] sm:$0xff]
    %v1546 = vld [vmem:[#allocation6 + $0x108] sm:$0xff]
    %v1547 = vld [vmem:[#allocation6 + $0x110] sm:$0xff]
    %v1548 = vld [vmem:[#allocation6 + $0x118] sm:$0xff]
    %v1549 = vld [vmem:[#allocation6 + $0x120] sm:$0xff]
    %v1550 = vld [vmem:[#allocation6 + $0x128] sm:$0xff]
    %v1551 = vld [vmem:[#allocation6 + $0x130] sm:$0xff]
    %v1552 = vld [vmem:[#allocation6 + $0x138] sm:$0xff]
    %v1553 = vld [vmem:[#allocation6 + $0x140] sm:$0xff]
    %v1554 = vld [vmem:[#allocation6 + $0x148] sm:$0xff]
    %v1555 = vld [vmem:[#allocation6 + $0x150] sm:$0xff]
    %v1556 = vld [vmem:[#allocation6 + $0x158] sm:$0xff]
    %v1557 = vld [vmem:[#allocation6 + $0x160] sm:$0xff]
    %v1558 = vld [vmem:[#allocation6 + $0x168] sm:$0xff]
    %v1559 = vld [vmem:[#allocation6 + $0x170] sm:$0xff]
    %v1560 = vld [vmem:[#allocation6 + $0x178] sm:$0xff]
    %v1561 = vld [vmem:[#allocation6 + $0x180] sm:$0xff]
    %v1562 = vld [vmem:[#allocation6 + $0x188] sm:$0xff]
    %v1563 = vld [vmem:[#allocation6 + $0x190] sm:$0xff]
    %v1564 = vld [vmem:[#allocation6 + $0x198] sm:$0xff]
    %v1565 = vld [vmem:[#allocation6 + $0x1a0] sm:$0xff]
    %v1566 = vld [vmem:[#allocation6 + $0x1a8] sm:$0xff]
    %v1567 = vld [vmem:[#allocation6 + $0x1b0] sm:$0xff]
    %v1568 = vld [vmem:[#allocation6 + $0x1b8] sm:$0xff]
    %v1569 = vld [vmem:[#allocation6 + $0x1c0] sm:$0xff]
    %v1570 = vld [vmem:[#allocation6 + $0x1c8] sm:$0xff]
    %v1571 = vld [vmem:[#allocation6 + $0x1d0] sm:$0xff]
    %v1572 = vld [vmem:[#allocation6 + $0x1d8] sm:$0xff]
    %v1573 = vld [vmem:[#allocation6 + $0x1e0] sm:$0xff]
    %v1574 = vld [vmem:[#allocation6 + $0x1e8] sm:$0xff]
    %v1575 = vld [vmem:[#allocation6 + $0x1f0] sm:$0xff]
    %v1576 = vld [vmem:[#allocation6 + $0x1f8] sm:$0xff]
    %v1577 = vld [vmem:[#allocation6 + $0x200] sm:$0xff]
    %v1578 = vld [vmem:[#allocation6 + $0x208] sm:$0xff]
    %v1579 = vld [vmem:[#allocation6 + $0x210] sm:$0xff]
    %v1580 = vld [vmem:[#allocation6 + $0x218] sm:$0xff]
    %v1581 = vld [vmem:[#allocation6 + $0x220] sm:$0xff]
    %v1582 = vld [vmem:[#allocation6 + $0x228] sm:$0xff]
    %v1583 = vld [vmem:[#allocation6 + $0x230] sm:$0xff]
    %v1584 = vld [vmem:[#allocation6 + $0x238] sm:$0xff]
    %v1585 = vld [vmem:[#allocation6 + $0x240] sm:$0xff]
    %v1586 = vld [vmem:[#allocation6 + $0x248] sm:$0xff]
    %v1587 = vld [vmem:[#allocation6 + $0x250] sm:$0xff]
    %v1588 = vld [vmem:[#allocation6 + $0x258] sm:$0xff]
    %v1589 = vld [vmem:[#allocation6 + $0x260] sm:$0xff]
    %v1590 = vld [vmem:[#allocation6 + $0x268] sm:$0xff]
    %v1591 = vld [vmem:[#allocation6 + $0x270] sm:$0xff]
    %v1592 = vld [vmem:[#allocation6 + $0x278] sm:$0xff]
    %v1593 = vld [vmem:[#allocation6 + $0x280] sm:$0xff]
    %v1594 = vld [vmem:[#allocation6 + $0x288] sm:$0xff]
    %v1595 = vld [vmem:[#allocation6 + $0x290] sm:$0xff]
    %v1596 = vld [vmem:[#allocation6 + $0x298] sm:$0xff]
    %v1597 = vld [vmem:[#allocation6 + $0x2a0] sm:$0xff]
    %v1598 = vld [vmem:[#allocation6 + $0x2a8] sm:$0xff]
    %v1599 = vld [vmem:[#allocation6 + $0x2b0] sm:$0xff]
    %v1600 = vld [vmem:[#allocation6 + $0x2b8] sm:$0xff]
    %v1601 = vld [vmem:[#allocation6 + $0x2c0] sm:$0xff]
    %v1602 = vld [vmem:[#allocation6 + $0x2c8] sm:$0xff]
    %v1603 = vld [vmem:[#allocation6 + $0x2d0] sm:$0xff]
    %v1604 = vld [vmem:[#allocation6 + $0x2d8] sm:$0xff]
    %v1605 = vld [vmem:[#allocation6 + $0x2e0] sm:$0xff]
    %v1606 = vld [vmem:[#allocation6 + $0x2e8] sm:$0xff]
    %v1607 = vld [vmem:[#allocation6 + $0x2f0] sm:$0xff]
    %v1608 = vld [vmem:[#allocation6 + $0x2f8] sm:$0xff]
    %v1609 = vld [vmem:[#allocation6 + $0x300] sm:$0xff]
    %v1610 = vld [vmem:[#allocation6 + $0x308] sm:$0xff]
    %v1611 = vld [vmem:[#allocation6 + $0x310] sm:$0xff]
    %v1612 = vld [vmem:[#allocation6 + $0x318] sm:$0xff]
    %v1613 = vld [vmem:[#allocation6 + $0x320] sm:$0xff]
    %v1614 = vld [vmem:[#allocation6 + $0x328] sm:$0xff]
    %v1615 = vld [vmem:[#allocation6 + $0x330] sm:$0xff]
    %v1616 = vld [vmem:[#allocation6 + $0x338] sm:$0xff]
    %v1617 = vld [vmem:[#allocation6 + $0x340] sm:$0xff]
    %v1618 = vld [vmem:[#allocation6 + $0x348] sm:$0xff]
    %v1619 = vld [vmem:[#allocation6 + $0x350] sm:$0xff]
    %v1620 = vld [vmem:[#allocation6 + $0x358] sm:$0xff]
    %v1621 = vld [vmem:[#allocation6 + $0x360] sm:$0xff]
    %v1622 = vld [vmem:[#allocation6 + $0x368] sm:$0xff]
    %v1623 = vld [vmem:[#allocation6 + $0x370] sm:$0xff]
    %v1624 = vld [vmem:[#allocation6 + $0x378] sm:$0xff]
    %v1625 = vld [vmem:[#allocation6 + $0x380] sm:$0xff]
    %v1626 = vld [vmem:[#allocation6 + $0x388] sm:$0xff]
    %v1627 = vld [vmem:[#allocation6 + $0x390] sm:$0xff]
    %v1628 = vld [vmem:[#allocation6 + $0x398] sm:$0xff]
    %v1629 = vld [vmem:[#allocation6 + $0x3a0] sm:$0xff]
    %v1630 = vld [vmem:[#allocation6 + $0x3a8] sm:$0xff]
    %v1631 = vld [vmem:[#allocation6 + $0x3b0] sm:$0xff]
    %v1632 = vld [vmem:[#allocation6 + $0x3b8] sm:$0xff]
    %v1633 = vld [vmem:[#allocation6 + $0x3c0] sm:$0xff]
    %v1634 = vld [vmem:[#allocation6 + $0x3c8] sm:$0xff]
    %v1635 = vld [vmem:[#allocation6 + $0x3d0] sm:$0xff]
    %v1636 = vld [vmem:[#allocation6 + $0x3d8] sm:$0xff]
    %v1637 = vld [vmem:[#allocation6 + $0x3e0] sm:$0xff]
    %v1638 = vld [vmem:[#allocation6 + $0x3e8] sm:$0xff]
    %v1639 = vld [vmem:[#allocation6 + $0x3f0] sm:$0xff]
    %v1640 = vld [vmem:[#allocation6 + $0x3f8] sm:$0xff]
    %v1641 = vld [vmem:[#allocation6 + $0x400] sm:$0xff]
    %v1642 = vld [vmem:[#allocation6 + $0x408] sm:$0xff]
    %v1643 = vld [vmem:[#allocation6 + $0x410] sm:$0xff]
    %v1644 = vld [vmem:[#allocation6 + $0x418] sm:$0xff]
    %v1645 = vld [vmem:[#allocation6 + $0x420] sm:$0xff]
    %v1646 = vld [vmem:[#allocation6 + $0x428] sm:$0xff]
    %v1647 = vld [vmem:[#allocation6 + $0x430] sm:$0xff]
    %v1648 = vld [vmem:[#allocation6 + $0x438] sm:$0xff]
    %v1649 = vld [vmem:[#allocation6 + $0x440] sm:$0xff]
    %v1650 = vld [vmem:[#allocation6 + $0x448] sm:$0xff]
    %v1651 = vld [vmem:[#allocation6 + $0x450] sm:$0xff]
    %v1652 = vld [vmem:[#allocation6 + $0x458] sm:$0xff]
    %v1653 = vld [vmem:[#allocation6 + $0x460] sm:$0xff]
    %v1654 = vld [vmem:[#allocation6 + $0x468] sm:$0xff]
    %v1655 = vld [vmem:[#allocation6 + $0x470] sm:$0xff]
    %v1656 = vld [vmem:[#allocation6 + $0x478] sm:$0xff]
    %v1657 = vld [vmem:[#allocation6 + $0x480] sm:$0xff]
    %v1658 = vld [vmem:[#allocation6 + $0x488] sm:$0xff]
    %v1659 = vld [vmem:[#allocation6 + $0x490] sm:$0xff]
    %v1660 = vld [vmem:[#allocation6 + $0x498] sm:$0xff]
    %v1661 = vld [vmem:[#allocation6 + $0x4a0] sm:$0xff]
    %v1662 = vld [vmem:[#allocation6 + $0x4a8] sm:$0xff]
    %v1663 = vld [vmem:[#allocation6 + $0x4b0] sm:$0xff]
    %v1664 = vld [vmem:[#allocation6 + $0x4b8] sm:$0xff]
    %v1665 = vld [vmem:[#allocation6 + $0x4c0] sm:$0xff]
    %v1666 = vld [vmem:[#allocation6 + $0x4c8] sm:$0xff]
    %v1667 = vld [vmem:[#allocation6 + $0x4d0] sm:$0xff]
    %v1668 = vld [vmem:[#allocation6 + $0x4d8] sm:$0xff]
    %v1669 = vld [vmem:[#allocation6 + $0x4e0] sm:$0xff]
    %v1670 = vld [vmem:[#allocation6 + $0x4e8] sm:$0xff]
    %v1671 = vld [vmem:[#allocation6 + $0x4f0] sm:$0xff]
    %v1672 = vld [vmem:[#allocation6 + $0x4f8] sm:$0xff]
    %v1673 = vld [vmem:[#allocation6 + $0x500] sm:$0xff]
    %v1674 = vld [vmem:[#allocation6 + $0x508] sm:$0xff]
    %v1675 = vld [vmem:[#allocation6 + $0x510] sm:$0xff]
    %v1676 = vld [vmem:[#allocation6 + $0x518] sm:$0xff]
    %v1677 = vld [vmem:[#allocation6 + $0x520] sm:$0xff]
    %v1678 = vld [vmem:[#allocation6 + $0x528] sm:$0xff]
    %v1679 = vld [vmem:[#allocation6 + $0x530] sm:$0xff]
    %v1680 = vld [vmem:[#allocation6 + $0x538] sm:$0xff]
    %v1681 = vld [vmem:[#allocation6 + $0x540] sm:$0xff]
    %v1682 = vld [vmem:[#allocation6 + $0x548] sm:$0xff]
    %v1683 = vld [vmem:[#allocation6 + $0x550] sm:$0xff]
    %v1684 = vld [vmem:[#allocation6 + $0x558] sm:$0xff]
    %v1685 = vld [vmem:[#allocation6 + $0x560] sm:$0xff]
    %v1686 = vld [vmem:[#allocation6 + $0x568] sm:$0xff]
    %v1687 = vld [vmem:[#allocation6 + $0x570] sm:$0xff]
    %v1688 = vld [vmem:[#allocation6 + $0x578] sm:$0xff]
    %v1689 = vld [vmem:[#allocation6 + $0x580] sm:$0xff]
    %v1690 = vld [vmem:[#allocation6 + $0x588] sm:$0xff]
    %v1691 = vld [vmem:[#allocation6 + $0x590] sm:$0xff]
    %v1692 = vld [vmem:[#allocation6 + $0x598] sm:$0xff]
    %v1693 = vld [vmem:[#allocation6 + $0x5a0] sm:$0xff]
    %v1694 = vld [vmem:[#allocation6 + $0x5a8] sm:$0xff]
    %v1695 = vld [vmem:[#allocation6 + $0x5b0] sm:$0xff]
    %v1696 = vld [vmem:[#allocation6 + $0x5b8] sm:$0xff]
    %v1697 = vld [vmem:[#allocation6 + $0x5c0] sm:$0xff]
    %v1698 = vld [vmem:[#allocation6 + $0x5c8] sm:$0xff]
    %v1699 = vld [vmem:[#allocation6 + $0x5d0] sm:$0xff]
    %v1700 = vld [vmem:[#allocation6 + $0x5d8] sm:$0xff]
    %v1701 = vld [vmem:[#allocation6 + $0x5e0] sm:$0xff]
    %v1702 = vld [vmem:[#allocation6 + $0x5e8] sm:$0xff]
    %v1703 = vld [vmem:[#allocation6 + $0x5f0] sm:$0xff]
    %v1704 = vld [vmem:[#allocation6 + $0x5f8] sm:$0xff]
    %v1705 = vld [vmem:[#allocation6 + $0x600] sm:$0xff]
    %v1706 = vld [vmem:[#allocation6 + $0x608] sm:$0xff]
    %v1707 = vld [vmem:[#allocation6 + $0x610] sm:$0xff]
    %v1708 = vld [vmem:[#allocation6 + $0x618] sm:$0xff]
    %v1709 = vld [vmem:[#allocation6 + $0x620] sm:$0xff]
    %v1710 = vld [vmem:[#allocation6 + $0x628] sm:$0xff]
    %v1711 = vld [vmem:[#allocation6 + $0x630] sm:$0xff]
    %v1712 = vld [vmem:[#allocation6 + $0x638] sm:$0xff]
    %v1713 = vld [vmem:[#allocation6 + $0x640] sm:$0xff]
    %v1714 = vld [vmem:[#allocation6 + $0x648] sm:$0xff]
    %v1715 = vld [vmem:[#allocation6 + $0x650] sm:$0xff]
    %v1716 = vld [vmem:[#allocation6 + $0x658] sm:$0xff]
    %v1717 = vld [vmem:[#allocation6 + $0x660] sm:$0xff]
    %v1718 = vld [vmem:[#allocation6 + $0x668] sm:$0xff]
    %v1719 = vld [vmem:[#allocation6 + $0x670] sm:$0xff]
    %v1720 = vld [vmem:[#allocation6 + $0x678] sm:$0xff]
    %v1721 = vld [vmem:[#allocation6 + $0x680] sm:$0xff]
    %v1722 = vld [vmem:[#allocation6 + $0x688] sm:$0xff]
    %v1723 = vld [vmem:[#allocation6 + $0x690] sm:$0xff]
    %v1724 = vld [vmem:[#allocation6 + $0x698] sm:$0xff]
    %v1725 = vld [vmem:[#allocation6 + $0x6a0] sm:$0xff]
    %v1726 = vld [vmem:[#allocation6 + $0x6a8] sm:$0xff]
    %v1727 = vld [vmem:[#allocation6 + $0x6b0] sm:$0xff]
    %v1728 = vld [vmem:[#allocation6 + $0x6b8] sm:$0xff]
    %v1729 = vld [vmem:[#allocation6 + $0x6c0] sm:$0xff]
    %v1730 = vld [vmem:[#allocation6 + $0x6c8] sm:$0xff]
    %v1731 = vld [vmem:[#allocation6 + $0x6d0] sm:$0xff]
    %v1732 = vld [vmem:[#allocation6 + $0x6d8] sm:$0xff]
    %v1733 = vld [vmem:[#allocation6 + $0x6e0] sm:$0xff]
    %v1734 = vld [vmem:[#allocation6 + $0x6e8] sm:$0xff]
    %v1735 = vld [vmem:[#allocation6 + $0x6f0] sm:$0xff]
    %v1736 = vld [vmem:[#allocation6 + $0x6f8] sm:$0xff]
    %v1737 = vld [vmem:[#allocation6 + $0x700] sm:$0xff]
    %v1738 = vld [vmem:[#allocation6 + $0x708] sm:$0xff]
    %v1739 = vld [vmem:[#allocation6 + $0x710] sm:$0xff]
    %v1740 = vld [vmem:[#allocation6 + $0x718] sm:$0xff]
    %v1741 = vld [vmem:[#allocation6 + $0x720] sm:$0xff]
    %v1742 = vld [vmem:[#allocation6 + $0x728] sm:$0xff]
    %v1743 = vld [vmem:[#allocation6 + $0x730] sm:$0xff]
    %v1744 = vld [vmem:[#allocation6 + $0x738] sm:$0xff]
    %v1745 = vld [vmem:[#allocation6 + $0x740] sm:$0xff]
    %v1746 = vld [vmem:[#allocation6 + $0x748] sm:$0xff]
    %v1747 = vld [vmem:[#allocation6 + $0x750] sm:$0xff]
    %v1748 = vld [vmem:[#allocation6 + $0x758] sm:$0xff]
    %v1749 = vld [vmem:[#allocation6 + $0x760] sm:$0xff]
    %v1750 = vld [vmem:[#allocation6 + $0x768] sm:$0xff]
    %v1751 = vld [vmem:[#allocation6 + $0x770] sm:$0xff]
    %v1752 = vld [vmem:[#allocation6 + $0x778] sm:$0xff]
    %v1753 = vld [vmem:[#allocation6 + $0x780] sm:$0xff]
    %v1754 = vld [vmem:[#allocation6 + $0x788] sm:$0xff]
    %v1755 = vld [vmem:[#allocation6 + $0x790] sm:$0xff]
    %v1756 = vld [vmem:[#allocation6 + $0x798] sm:$0xff]
    %v1757 = vld [vmem:[#allocation6 + $0x7a0] sm:$0xff]
    %v1758 = vld [vmem:[#allocation6 + $0x7a8] sm:$0xff]
    %v1759 = vld [vmem:[#allocation6 + $0x7b0] sm:$0xff]
    %v1760 = vld [vmem:[#allocation6 + $0x7b8] sm:$0xff]
    %v1761 = vld [vmem:[#allocation6 + $0x7c0] sm:$0xff]
    %v1762 = vld [vmem:[#allocation6 + $0x7c8] sm:$0xff]
    %v1763 = vld [vmem:[#allocation6 + $0x7d0] sm:$0xff]
    %v1764 = vld [vmem:[#allocation6 + $0x7d8] sm:$0xff]
    %v1765 = vld [vmem:[#allocation6 + $0x7e0] sm:$0xff]
    %v1766 = vld [vmem:[#allocation6 + $0x7e8] sm:$0xff]
    %v1767 = vld [vmem:[#allocation6 + $0x7f0] sm:$0xff]
    %v1768 = vld [vmem:[#allocation6 + $0x7f8] sm:$0xff]
    %v1769 = vpack.c.bf16 %v1497, %v1489
    %v1770 = vpack.c.bf16 %v1498, %v1490
    %v1771 = vpack.c.bf16 %v1499, %v1491
    %v1772 = vpack.c.bf16 %v1500, %v1492
    %v1773 = vpack.c.bf16 %v1501, %v1493
    %v1774 = vpack.c.bf16 %v1502, %v1494
    %v1775 = vpack.c.bf16 %v1503, %v1495
    %v1776 = vpack.c.bf16 %v1504, %v1496
    %v1777 = vld [vmem:[#allocation7] sm:$0xff]
    %v1778 = vld [vmem:[#allocation7 + $0x8] sm:$0xff]
    %v1779 = vld [vmem:[#allocation7 + $0x10] sm:$0xff]
    %v1780 = vld [vmem:[#allocation7 + $0x18] sm:$0xff]
    %v1781 = vld [vmem:[#allocation7 + $0x20] sm:$0xff]
    %v1782 = vld [vmem:[#allocation7 + $0x28] sm:$0xff]
    %v1783 = vld [vmem:[#allocation7 + $0x30] sm:$0xff]
    %v1784 = vld [vmem:[#allocation7 + $0x38] sm:$0xff]
    %v1785 = vld [vmem:[#allocation7 + $0x40] sm:$0xff]
    %v1786 = vld [vmem:[#allocation7 + $0x48] sm:$0xff]
    %v1787 = vld [vmem:[#allocation7 + $0x50] sm:$0xff]
    %v1788 = vld [vmem:[#allocation7 + $0x58] sm:$0xff]
    %v1789 = vld [vmem:[#allocation7 + $0x60] sm:$0xff]
    %v1790 = vld [vmem:[#allocation7 + $0x68] sm:$0xff]
    %v1791 = vld [vmem:[#allocation7 + $0x70] sm:$0xff]
    %v1792 = vld [vmem:[#allocation7 + $0x78] sm:$0xff]
    %v1793 = vld [vmem:[#allocation7 + $0x80] sm:$0xff]
    %v1794 = vld [vmem:[#allocation7 + $0x88] sm:$0xff]
    %v1795 = vld [vmem:[#allocation7 + $0x90] sm:$0xff]
    %v1796 = vld [vmem:[#allocation7 + $0x98] sm:$0xff]
    %v1797 = vld [vmem:[#allocation7 + $0xa0] sm:$0xff]
    %v1798 = vld [vmem:[#allocation7 + $0xa8] sm:$0xff]
    %v1799 = vld [vmem:[#allocation7 + $0xb0] sm:$0xff]
    %v1800 = vld [vmem:[#allocation7 + $0xb8] sm:$0xff]
    %v1801 = vld [vmem:[#allocation7 + $0xc0] sm:$0xff]
    %v1802 = vld [vmem:[#allocation7 + $0xc8] sm:$0xff]
    %v1803 = vld [vmem:[#allocation7 + $0xd0] sm:$0xff]
    %v1804 = vld [vmem:[#allocation7 + $0xd8] sm:$0xff]
    %v1805 = vld [vmem:[#allocation7 + $0xe0] sm:$0xff]
    %v1806 = vld [vmem:[#allocation7 + $0xe8] sm:$0xff]
    %v1807 = vld [vmem:[#allocation7 + $0xf0] sm:$0xff]
    %v1808 = vld [vmem:[#allocation7 + $0xf8] sm:$0xff]
    %v1809 = vld [vmem:[#allocation7 + $0x100] sm:$0xff]
    %v1810 = vld [vmem:[#allocation7 + $0x108] sm:$0xff]
    %v1811 = vld [vmem:[#allocation7 + $0x110] sm:$0xff]
    %v1812 = vld [vmem:[#allocation7 + $0x118] sm:$0xff]
    %v1813 = vld [vmem:[#allocation7 + $0x120] sm:$0xff]
    %v1814 = vld [vmem:[#allocation7 + $0x128] sm:$0xff]
    %v1815 = vld [vmem:[#allocation7 + $0x130] sm:$0xff]
    %v1816 = vld [vmem:[#allocation7 + $0x138] sm:$0xff]
    %v1817 = vld [vmem:[#allocation7 + $0x140] sm:$0xff]
    %v1818 = vld [vmem:[#allocation7 + $0x148] sm:$0xff]
    %v1819 = vld [vmem:[#allocation7 + $0x150] sm:$0xff]
    %v1820 = vld [vmem:[#allocation7 + $0x158] sm:$0xff]
    %v1821 = vld [vmem:[#allocation7 + $0x160] sm:$0xff]
    %v1822 = vld [vmem:[#allocation7 + $0x168] sm:$0xff]
    %v1823 = vld [vmem:[#allocation7 + $0x170] sm:$0xff]
    %v1824 = vld [vmem:[#allocation7 + $0x178] sm:$0xff]
    %v1825 = vld [vmem:[#allocation7 + $0x180] sm:$0xff]
    %v1826 = vld [vmem:[#allocation7 + $0x188] sm:$0xff]
    %v1827 = vld [vmem:[#allocation7 + $0x190] sm:$0xff]
    %v1828 = vld [vmem:[#allocation7 + $0x198] sm:$0xff]
    %v1829 = vld [vmem:[#allocation7 + $0x1a0] sm:$0xff]
    %v1830 = vld [vmem:[#allocation7 + $0x1a8] sm:$0xff]
    %v1831 = vld [vmem:[#allocation7 + $0x1b0] sm:$0xff]
    %v1832 = vld [vmem:[#allocation7 + $0x1b8] sm:$0xff]
    %v1833 = vld [vmem:[#allocation7 + $0x1c0] sm:$0xff]
    %v1834 = vld [vmem:[#allocation7 + $0x1c8] sm:$0xff]
    %v1835 = vld [vmem:[#allocation7 + $0x1d0] sm:$0xff]
    %v1836 = vld [vmem:[#allocation7 + $0x1d8] sm:$0xff]
    %v1837 = vld [vmem:[#allocation7 + $0x1e0] sm:$0xff]
    %v1838 = vld [vmem:[#allocation7 + $0x1e8] sm:$0xff]
    %v1839 = vld [vmem:[#allocation7 + $0x1f0] sm:$0xff]
    %v1840 = vld [vmem:[#allocation7 + $0x1f8] sm:$0xff]
    %v1841 = vld [vmem:[#allocation7 + $0x200] sm:$0xff]
    %v1842 = vld [vmem:[#allocation7 + $0x208] sm:$0xff]
    %v1843 = vld [vmem:[#allocation7 + $0x210] sm:$0xff]
    %v1844 = vld [vmem:[#allocation7 + $0x218] sm:$0xff]
    %v1845 = vld [vmem:[#allocation7 + $0x220] sm:$0xff]
    %v1846 = vld [vmem:[#allocation7 + $0x228] sm:$0xff]
    %v1847 = vld [vmem:[#allocation7 + $0x230] sm:$0xff]
    %v1848 = vld [vmem:[#allocation7 + $0x238] sm:$0xff]
    %v1849 = vld [vmem:[#allocation7 + $0x240] sm:$0xff]
    %v1850 = vld [vmem:[#allocation7 + $0x248] sm:$0xff]
    %v1851 = vld [vmem:[#allocation7 + $0x250] sm:$0xff]
    %v1852 = vld [vmem:[#allocation7 + $0x258] sm:$0xff]
    %v1853 = vld [vmem:[#allocation7 + $0x260] sm:$0xff]
    %v1854 = vld [vmem:[#allocation7 + $0x268] sm:$0xff]
    %v1855 = vld [vmem:[#allocation7 + $0x270] sm:$0xff]
    %v1856 = vld [vmem:[#allocation7 + $0x278] sm:$0xff]
    %v1857 = vld [vmem:[#allocation7 + $0x280] sm:$0xff]
    %v1858 = vld [vmem:[#allocation7 + $0x288] sm:$0xff]
    %v1859 = vld [vmem:[#allocation7 + $0x290] sm:$0xff]
    %v1860 = vld [vmem:[#allocation7 + $0x298] sm:$0xff]
    %v1861 = vld [vmem:[#allocation7 + $0x2a0] sm:$0xff]
    %v1862 = vld [vmem:[#allocation7 + $0x2a8] sm:$0xff]
    %v1863 = vld [vmem:[#allocation7 + $0x2b0] sm:$0xff]
    %v1864 = vld [vmem:[#allocation7 + $0x2b8] sm:$0xff]
    %v1865 = vld [vmem:[#allocation7 + $0x2c0] sm:$0xff]
    %v1866 = vld [vmem:[#allocation7 + $0x2c8] sm:$0xff]
    %v1867 = vld [vmem:[#allocation7 + $0x2d0] sm:$0xff]
    %v1868 = vld [vmem:[#allocation7 + $0x2d8] sm:$0xff]
    %v1869 = vld [vmem:[#allocation7 + $0x2e0] sm:$0xff]
    %v1870 = vld [vmem:[#allocation7 + $0x2e8] sm:$0xff]
    %v1871 = vld [vmem:[#allocation7 + $0x2f0] sm:$0xff]
    %v1872 = vld [vmem:[#allocation7 + $0x2f8] sm:$0xff]
    %v1873 = vld [vmem:[#allocation7 + $0x300] sm:$0xff]
    %v1874 = vld [vmem:[#allocation7 + $0x308] sm:$0xff]
    %v1875 = vld [vmem:[#allocation7 + $0x310] sm:$0xff]
    %v1876 = vld [vmem:[#allocation7 + $0x318] sm:$0xff]
    %v1877 = vld [vmem:[#allocation7 + $0x320] sm:$0xff]
    %v1878 = vld [vmem:[#allocation7 + $0x328] sm:$0xff]
    %v1879 = vld [vmem:[#allocation7 + $0x330] sm:$0xff]
    %v1880 = vld [vmem:[#allocation7 + $0x338] sm:$0xff]
    %v1881 = vld [vmem:[#allocation7 + $0x340] sm:$0xff]
    %v1882 = vld [vmem:[#allocation7 + $0x348] sm:$0xff]
    %v1883 = vld [vmem:[#allocation7 + $0x350] sm:$0xff]
    %v1884 = vld [vmem:[#allocation7 + $0x358] sm:$0xff]
    %v1885 = vld [vmem:[#allocation7 + $0x360] sm:$0xff]
    %v1886 = vld [vmem:[#allocation7 + $0x368] sm:$0xff]
    %v1887 = vld [vmem:[#allocation7 + $0x370] sm:$0xff]
    %v1888 = vld [vmem:[#allocation7 + $0x378] sm:$0xff]
    %v1889 = vld [vmem:[#allocation7 + $0x380] sm:$0xff]
    %v1890 = vld [vmem:[#allocation7 + $0x388] sm:$0xff]
    %v1891 = vld [vmem:[#allocation7 + $0x390] sm:$0xff]
    %v1892 = vld [vmem:[#allocation7 + $0x398] sm:$0xff]
    %v1893 = vld [vmem:[#allocation7 + $0x3a0] sm:$0xff]
    %v1894 = vld [vmem:[#allocation7 + $0x3a8] sm:$0xff]
    %v1895 = vld [vmem:[#allocation7 + $0x3b0] sm:$0xff]
    %v1896 = vld [vmem:[#allocation7 + $0x3b8] sm:$0xff]
    %v1897 = vld [vmem:[#allocation7 + $0x3c0] sm:$0xff]
    %v1898 = vld [vmem:[#allocation7 + $0x3c8] sm:$0xff]
    %v1899 = vld [vmem:[#allocation7 + $0x3d0] sm:$0xff]
    %v1900 = vld [vmem:[#allocation7 + $0x3d8] sm:$0xff]
    %v1901 = vld [vmem:[#allocation7 + $0x3e0] sm:$0xff]
    %v1902 = vld [vmem:[#allocation7 + $0x3e8] sm:$0xff]
    %v1903 = vld [vmem:[#allocation7 + $0x3f0] sm:$0xff]
    %v1904 = vld [vmem:[#allocation7 + $0x3f8] sm:$0xff]
    %v1905 = vld [vmem:[#allocation7 + $0x400] sm:$0xff]
    %v1906 = vld [vmem:[#allocation7 + $0x408] sm:$0xff]
    %v1907 = vld [vmem:[#allocation7 + $0x410] sm:$0xff]
    %v1908 = vld [vmem:[#allocation7 + $0x418] sm:$0xff]
    %v1909 = vld [vmem:[#allocation7 + $0x420] sm:$0xff]
    %v1910 = vld [vmem:[#allocation7 + $0x428] sm:$0xff]
    %v1911 = vld [vmem:[#allocation7 + $0x430] sm:$0xff]
    %v1912 = vld [vmem:[#allocation7 + $0x438] sm:$0xff]
    %v1913 = vld [vmem:[#allocation7 + $0x440] sm:$0xff]
    %v1914 = vld [vmem:[#allocation7 + $0x448] sm:$0xff]
    %v1915 = vld [vmem:[#allocation7 + $0x450] sm:$0xff]
    %v1916 = vld [vmem:[#allocation7 + $0x458] sm:$0xff]
    %v1917 = vld [vmem:[#allocation7 + $0x460] sm:$0xff]
    %v1918 = vld [vmem:[#allocation7 + $0x468] sm:$0xff]
    %v1919 = vld [vmem:[#allocation7 + $0x470] sm:$0xff]
    %v1920 = vld [vmem:[#allocation7 + $0x478] sm:$0xff]
    %v1921 = vld [vmem:[#allocation7 + $0x480] sm:$0xff]
    %v1922 = vld [vmem:[#allocation7 + $0x488] sm:$0xff]
    %v1923 = vld [vmem:[#allocation7 + $0x490] sm:$0xff]
    %v1924 = vld [vmem:[#allocation7 + $0x498] sm:$0xff]
    %v1925 = vld [vmem:[#allocation7 + $0x4a0] sm:$0xff]
    %v1926 = vld [vmem:[#allocation7 + $0x4a8] sm:$0xff]
    %v1927 = vld [vmem:[#allocation7 + $0x4b0] sm:$0xff]
    %v1928 = vld [vmem:[#allocation7 + $0x4b8] sm:$0xff]
    %v1929 = vld [vmem:[#allocation7 + $0x4c0] sm:$0xff]
    %v1930 = vld [vmem:[#allocation7 + $0x4c8] sm:$0xff]
    %v1931 = vld [vmem:[#allocation7 + $0x4d0] sm:$0xff]
    %v1932 = vld [vmem:[#allocation7 + $0x4d8] sm:$0xff]
    %v1933 = vld [vmem:[#allocation7 + $0x4e0] sm:$0xff]
    %v1934 = vld [vmem:[#allocation7 + $0x4e8] sm:$0xff]
    %v1935 = vld [vmem:[#allocation7 + $0x4f0] sm:$0xff]
    %v1936 = vld [vmem:[#allocation7 + $0x4f8] sm:$0xff]
    %v1937 = vld [vmem:[#allocation7 + $0x500] sm:$0xff]
    %v1938 = vld [vmem:[#allocation7 + $0x508] sm:$0xff]
    %v1939 = vld [vmem:[#allocation7 + $0x510] sm:$0xff]
    %v1940 = vld [vmem:[#allocation7 + $0x518] sm:$0xff]
    %v1941 = vld [vmem:[#allocation7 + $0x520] sm:$0xff]
    %v1942 = vld [vmem:[#allocation7 + $0x528] sm:$0xff]
    %v1943 = vld [vmem:[#allocation7 + $0x530] sm:$0xff]
    %v1944 = vld [vmem:[#allocation7 + $0x538] sm:$0xff]
    %v1945 = vld [vmem:[#allocation7 + $0x540] sm:$0xff]
    %v1946 = vld [vmem:[#allocation7 + $0x548] sm:$0xff]
    %v1947 = vld [vmem:[#allocation7 + $0x550] sm:$0xff]
    %v1948 = vld [vmem:[#allocation7 + $0x558] sm:$0xff]
    %v1949 = vld [vmem:[#allocation7 + $0x560] sm:$0xff]
    %v1950 = vld [vmem:[#allocation7 + $0x568] sm:$0xff]
    %v1951 = vld [vmem:[#allocation7 + $0x570] sm:$0xff]
    %v1952 = vld [vmem:[#allocation7 + $0x578] sm:$0xff]
    %v1953 = vld [vmem:[#allocation7 + $0x580] sm:$0xff]
    %v1954 = vld [vmem:[#allocation7 + $0x588] sm:$0xff]
    %v1955 = vld [vmem:[#allocation7 + $0x590] sm:$0xff]
    %v1956 = vld [vmem:[#allocation7 + $0x598] sm:$0xff]
    %v1957 = vld [vmem:[#allocation7 + $0x5a0] sm:$0xff]
    %v1958 = vld [vmem:[#allocation7 + $0x5a8] sm:$0xff]
    %v1959 = vld [vmem:[#allocation7 + $0x5b0] sm:$0xff]
    %v1960 = vld [vmem:[#allocation7 + $0x5b8] sm:$0xff]
    %v1961 = vld [vmem:[#allocation7 + $0x5c0] sm:$0xff]
    %v1962 = vld [vmem:[#allocation7 + $0x5c8] sm:$0xff]
    %v1963 = vld [vmem:[#allocation7 + $0x5d0] sm:$0xff]
    %v1964 = vld [vmem:[#allocation7 + $0x5d8] sm:$0xff]
    %v1965 = vld [vmem:[#allocation7 + $0x5e0] sm:$0xff]
    %v1966 = vld [vmem:[#allocation7 + $0x5e8] sm:$0xff]
    %v1967 = vld [vmem:[#allocation7 + $0x5f0] sm:$0xff]
    %v1968 = vld [vmem:[#allocation7 + $0x5f8] sm:$0xff]
    %v1969 = vld [vmem:[#allocation7 + $0x600] sm:$0xff]
    %v1970 = vld [vmem:[#allocation7 + $0x608] sm:$0xff]
    %v1971 = vld [vmem:[#allocation7 + $0x610] sm:$0xff]
    %v1972 = vld [vmem:[#allocation7 + $0x618] sm:$0xff]
    %v1973 = vld [vmem:[#allocation7 + $0x620] sm:$0xff]
    %v1974 = vld [vmem:[#allocation7 + $0x628] sm:$0xff]
    %v1975 = vld [vmem:[#allocation7 + $0x630] sm:$0xff]
    %v1976 = vld [vmem:[#allocation7 + $0x638] sm:$0xff]
    %v1977 = vld [vmem:[#allocation7 + $0x640] sm:$0xff]
    %v1978 = vld [vmem:[#allocation7 + $0x648] sm:$0xff]
    %v1979 = vld [vmem:[#allocation7 + $0x650] sm:$0xff]
    %v1980 = vld [vmem:[#allocation7 + $0x658] sm:$0xff]
    %v1981 = vld [vmem:[#allocation7 + $0x660] sm:$0xff]
    %v1982 = vld [vmem:[#allocation7 + $0x668] sm:$0xff]
    %v1983 = vld [vmem:[#allocation7 + $0x670] sm:$0xff]
    %v1984 = vld [vmem:[#allocation7 + $0x678] sm:$0xff]
    %v1985 = vld [vmem:[#allocation7 + $0x680] sm:$0xff]
    %v1986 = vld [vmem:[#allocation7 + $0x688] sm:$0xff]
    %v1987 = vld [vmem:[#allocation7 + $0x690] sm:$0xff]
    %v1988 = vld [vmem:[#allocation7 + $0x698] sm:$0xff]
    %v1989 = vld [vmem:[#allocation7 + $0x6a0] sm:$0xff]
    %v1990 = vld [vmem:[#allocation7 + $0x6a8] sm:$0xff]
    %v1991 = vld [vmem:[#allocation7 + $0x6b0] sm:$0xff]
    %v1992 = vld [vmem:[#allocation7 + $0x6b8] sm:$0xff]
    %v1993 = vld [vmem:[#allocation7 + $0x6c0] sm:$0xff]
    %v1994 = vld [vmem:[#allocation7 + $0x6c8] sm:$0xff]
    %v1995 = vld [vmem:[#allocation7 + $0x6d0] sm:$0xff]
    %v1996 = vld [vmem:[#allocation7 + $0x6d8] sm:$0xff]
    %v1997 = vld [vmem:[#allocation7 + $0x6e0] sm:$0xff]
    %v1998 = vld [vmem:[#allocation7 + $0x6e8] sm:$0xff]
    %v1999 = vld [vmem:[#allocation7 + $0x6f0] sm:$0xff]
    %v2000 = vld [vmem:[#allocation7 + $0x6f8] sm:$0xff]
    %v2001 = vld [vmem:[#allocation7 + $0x700] sm:$0xff]
    %v2002 = vld [vmem:[#allocation7 + $0x708] sm:$0xff]
    %v2003 = vld [vmem:[#allocation7 + $0x710] sm:$0xff]
    %v2004 = vld [vmem:[#allocation7 + $0x718] sm:$0xff]
    %v2005 = vld [vmem:[#allocation7 + $0x720] sm:$0xff]
    %v2006 = vld [vmem:[#allocation7 + $0x728] sm:$0xff]
    %v2007 = vld [vmem:[#allocation7 + $0x730] sm:$0xff]
    %v2008 = vld [vmem:[#allocation7 + $0x738] sm:$0xff]
    %v2009 = vld [vmem:[#allocation7 + $0x740] sm:$0xff]
    %v2010 = vld [vmem:[#allocation7 + $0x748] sm:$0xff]
    %v2011 = vld [vmem:[#allocation7 + $0x750] sm:$0xff]
    %v2012 = vld [vmem:[#allocation7 + $0x758] sm:$0xff]
    %v2013 = vld [vmem:[#allocation7 + $0x760] sm:$0xff]
    %v2014 = vld [vmem:[#allocation7 + $0x768] sm:$0xff]
    %v2015 = vld [vmem:[#allocation7 + $0x770] sm:$0xff]
    %v2016 = vld [vmem:[#allocation7 + $0x778] sm:$0xff]
    %v2017 = vld [vmem:[#allocation7 + $0x780] sm:$0xff]
    %v2018 = vld [vmem:[#allocation7 + $0x788] sm:$0xff]
    %v2019 = vld [vmem:[#allocation7 + $0x790] sm:$0xff]
    %v2020 = vld [vmem:[#allocation7 + $0x798] sm:$0xff]
    %v2021 = vld [vmem:[#allocation7 + $0x7a0] sm:$0xff]
    %v2022 = vld [vmem:[#allocation7 + $0x7a8] sm:$0xff]
    %v2023 = vld [vmem:[#allocation7 + $0x7b0] sm:$0xff]
    %v2024 = vld [vmem:[#allocation7 + $0x7b8] sm:$0xff]
    %v2025 = vld [vmem:[#allocation7 + $0x7c0] sm:$0xff]
    %v2026 = vld [vmem:[#allocation7 + $0x7c8] sm:$0xff]
    %v2027 = vld [vmem:[#allocation7 + $0x7d0] sm:$0xff]
    %v2028 = vld [vmem:[#allocation7 + $0x7d8] sm:$0xff]
    %v2029 = vld [vmem:[#allocation7 + $0x7e0] sm:$0xff]
    %v2030 = vld [vmem:[#allocation7 + $0x7e8] sm:$0xff]
    %v2031 = vld [vmem:[#allocation7 + $0x7f0] sm:$0xff]
    %v2032 = vld [vmem:[#allocation7 + $0x7f8] sm:$0xff]
    %v2289 = vunpack.c.l.b16 %v1777
    %v2290 = vunpack.c.h.b16 %v1777
    %v2291 = vunpack.c.l.b16 %v1778
    %v2292 = vunpack.c.h.b16 %v1778
    %v2293 = vunpack.c.l.b16 %v1779
    %v2294 = vunpack.c.h.b16 %v1779
    %v2295 = vunpack.c.l.b16 %v1780
    %v2296 = vunpack.c.h.b16 %v1780
    %v2297 = vunpack.c.l.b16 %v1781
    %v2298 = vunpack.c.h.b16 %v1781
    %v2299 = vunpack.c.l.b16 %v1782
    %v2300 = vunpack.c.h.b16 %v1782
    %v2301 = vunpack.c.l.b16 %v1783
    %v2302 = vunpack.c.h.b16 %v1783
    %v2303 = vunpack.c.l.b16 %v1784
    %v2304 = vunpack.c.h.b16 %v1784
    %v2305 = vunpack.c.l.b16 %v1785
    %v2306 = vunpack.c.h.b16 %v1785
    %v2307 = vunpack.c.l.b16 %v1786
    %v2308 = vunpack.c.h.b16 %v1786
    %v2309 = vunpack.c.l.b16 %v1787
    %v2310 = vunpack.c.h.b16 %v1787
    %v2311 = vunpack.c.l.b16 %v1788
    %v2312 = vunpack.c.h.b16 %v1788
    %v2313 = vunpack.c.l.b16 %v1789
    %v2314 = vunpack.c.h.b16 %v1789
    %v2315 = vunpack.c.l.b16 %v1790
    %v2316 = vunpack.c.h.b16 %v1790
    %v2317 = vunpack.c.l.b16 %v1791
    %v2318 = vunpack.c.h.b16 %v1791
    %v2319 = vunpack.c.l.b16 %v1792
    %v2320 = vunpack.c.h.b16 %v1792
    %v2321 = vunpack.c.l.b16 %v1793
    %v2322 = vunpack.c.h.b16 %v1793
    %v2323 = vunpack.c.l.b16 %v1794
    %v2324 = vunpack.c.h.b16 %v1794
    %v2325 = vunpack.c.l.b16 %v1795
    %v2326 = vunpack.c.h.b16 %v1795
    %v2327 = vunpack.c.l.b16 %v1796
    %v2328 = vunpack.c.h.b16 %v1796
    %v2329 = vunpack.c.l.b16 %v1797
    %v2330 = vunpack.c.h.b16 %v1797
    %v2331 = vunpack.c.l.b16 %v1798
    %v2332 = vunpack.c.h.b16 %v1798
    %v2333 = vunpack.c.l.b16 %v1799
    %v2334 = vunpack.c.h.b16 %v1799
    %v2335 = vunpack.c.l.b16 %v1800
    %v2336 = vunpack.c.h.b16 %v1800
    %v2337 = vunpack.c.l.b16 %v1801
    %v2338 = vunpack.c.h.b16 %v1801
    %v2339 = vunpack.c.l.b16 %v1802
    %v2340 = vunpack.c.h.b16 %v1802
    %v2341 = vunpack.c.l.b16 %v1803
    %v2342 = vunpack.c.h.b16 %v1803
    %v2343 = vunpack.c.l.b16 %v1804
    %v2344 = vunpack.c.h.b16 %v1804
    %v2345 = vunpack.c.l.b16 %v1805
    %v2346 = vunpack.c.h.b16 %v1805
    %v2347 = vunpack.c.l.b16 %v1806
    %v2348 = vunpack.c.h.b16 %v1806
    %v2349 = vunpack.c.l.b16 %v1807
    %v2350 = vunpack.c.h.b16 %v1807
    %v2351 = vunpack.c.l.b16 %v1808
    %v2352 = vunpack.c.h.b16 %v1808
    %v2353 = vunpack.c.l.b16 %v1809
    %v2354 = vunpack.c.h.b16 %v1809
    %v2355 = vunpack.c.l.b16 %v1810
    %v2356 = vunpack.c.h.b16 %v1810
    %v2357 = vunpack.c.l.b16 %v1811
    %v2358 = vunpack.c.h.b16 %v1811
    %v2359 = vunpack.c.l.b16 %v1812
    %v2360 = vunpack.c.h.b16 %v1812
    %v2361 = vunpack.c.l.b16 %v1813
    %v2362 = vunpack.c.h.b16 %v1813
    %v2363 = vunpack.c.l.b16 %v1814
    %v2364 = vunpack.c.h.b16 %v1814
    %v2365 = vunpack.c.l.b16 %v1815
    %v2366 = vunpack.c.h.b16 %v1815
    %v2367 = vunpack.c.l.b16 %v1816
    %v2368 = vunpack.c.h.b16 %v1816
    %v2369 = vunpack.c.l.b16 %v1817
    %v2370 = vunpack.c.h.b16 %v1817
    %v2371 = vunpack.c.l.b16 %v1818
    %v2372 = vunpack.c.h.b16 %v1818
    %v2373 = vunpack.c.l.b16 %v1819
    %v2374 = vunpack.c.h.b16 %v1819
    %v2375 = vunpack.c.l.b16 %v1820
    %v2376 = vunpack.c.h.b16 %v1820
    %v2377 = vunpack.c.l.b16 %v1821
    %v2378 = vunpack.c.h.b16 %v1821
    %v2379 = vunpack.c.l.b16 %v1822
    %v2380 = vunpack.c.h.b16 %v1822
    %v2381 = vunpack.c.l.b16 %v1823
    %v2382 = vunpack.c.h.b16 %v1823
    %v2383 = vunpack.c.l.b16 %v1824
    %v2384 = vunpack.c.h.b16 %v1824
    %v2385 = vunpack.c.l.b16 %v1825
    %v2386 = vunpack.c.h.b16 %v1825
    %v2387 = vunpack.c.l.b16 %v1826
    %v2388 = vunpack.c.h.b16 %v1826
    %v2389 = vunpack.c.l.b16 %v1827
    %v2390 = vunpack.c.h.b16 %v1827
    %v2391 = vunpack.c.l.b16 %v1828
    %v2392 = vunpack.c.h.b16 %v1828
    %v2393 = vunpack.c.l.b16 %v1829
    %v2394 = vunpack.c.h.b16 %v1829
    %v2395 = vunpack.c.l.b16 %v1830
    %v2396 = vunpack.c.h.b16 %v1830
    %v2397 = vunpack.c.l.b16 %v1831
    %v2398 = vunpack.c.h.b16 %v1831
    %v2399 = vunpack.c.l.b16 %v1832
    %v2400 = vunpack.c.h.b16 %v1832
    %v2401 = vunpack.c.l.b16 %v1833
    %v2402 = vunpack.c.h.b16 %v1833
    %v2403 = vunpack.c.l.b16 %v1834
    %v2404 = vunpack.c.h.b16 %v1834
    %v2405 = vunpack.c.l.b16 %v1835
    %v2406 = vunpack.c.h.b16 %v1835
    %v2407 = vunpack.c.l.b16 %v1836
    %v2408 = vunpack.c.h.b16 %v1836
    %v2409 = vunpack.c.l.b16 %v1837
    %v2410 = vunpack.c.h.b16 %v1837
    %v2411 = vunpack.c.l.b16 %v1838
    %v2412 = vunpack.c.h.b16 %v1838
    %v2413 = vunpack.c.l.b16 %v1839
    %v2414 = vunpack.c.h.b16 %v1839
    %v2415 = vunpack.c.l.b16 %v1840
    %v2416 = vunpack.c.h.b16 %v1840
    %v2417 = vunpack.c.l.b16 %v1841
    %v2418 = vunpack.c.h.b16 %v1841
    %v2419 = vunpack.c.l.b16 %v1842
    %v2420 = vunpack.c.h.b16 %v1842
    %v2421 = vunpack.c.l.b16 %v1843
    %v2422 = vunpack.c.h.b16 %v1843
    %v2423 = vunpack.c.l.b16 %v1844
    %v2424 = vunpack.c.h.b16 %v1844
    %v2425 = vunpack.c.l.b16 %v1845
    %v2426 = vunpack.c.h.b16 %v1845
    %v2427 = vunpack.c.l.b16 %v1846
    %v2428 = vunpack.c.h.b16 %v1846
    %v2429 = vunpack.c.l.b16 %v1847
    %v2430 = vunpack.c.h.b16 %v1847
    %v2431 = vunpack.c.l.b16 %v1848
    %v2432 = vunpack.c.h.b16 %v1848
    %v2433 = vunpack.c.l.b16 %v1849
    %v2434 = vunpack.c.h.b16 %v1849
    %v2435 = vunpack.c.l.b16 %v1850
    %v2436 = vunpack.c.h.b16 %v1850
    %v2437 = vunpack.c.l.b16 %v1851
    %v2438 = vunpack.c.h.b16 %v1851
    %v2439 = vunpack.c.l.b16 %v1852
    %v2440 = vunpack.c.h.b16 %v1852
    %v2441 = vunpack.c.l.b16 %v1853
    %v2442 = vunpack.c.h.b16 %v1853
    %v2443 = vunpack.c.l.b16 %v1854
    %v2444 = vunpack.c.h.b16 %v1854
    %v2445 = vunpack.c.l.b16 %v1855
    %v2446 = vunpack.c.h.b16 %v1855
    %v2447 = vunpack.c.l.b16 %v1856
    %v2448 = vunpack.c.h.b16 %v1856
    %v2449 = vunpack.c.l.b16 %v1857
    %v2450 = vunpack.c.h.b16 %v1857
    %v2451 = vunpack.c.l.b16 %v1858
    %v2452 = vunpack.c.h.b16 %v1858
    %v2453 = vunpack.c.l.b16 %v1859
    %v2454 = vunpack.c.h.b16 %v1859
    %v2455 = vunpack.c.l.b16 %v1860
    %v2456 = vunpack.c.h.b16 %v1860
    %v2457 = vunpack.c.l.b16 %v1861
    %v2458 = vunpack.c.h.b16 %v1861
    %v2459 = vunpack.c.l.b16 %v1862
    %v2460 = vunpack.c.h.b16 %v1862
    %v2461 = vunpack.c.l.b16 %v1863
    %v2462 = vunpack.c.h.b16 %v1863
    %v2463 = vunpack.c.l.b16 %v1864
    %v2464 = vunpack.c.h.b16 %v1864
    %v2465 = vunpack.c.l.b16 %v1865
    %v2466 = vunpack.c.h.b16 %v1865
    %v2467 = vunpack.c.l.b16 %v1866
    %v2468 = vunpack.c.h.b16 %v1866
    %v2469 = vunpack.c.l.b16 %v1867
    %v2470 = vunpack.c.h.b16 %v1867
    %v2471 = vunpack.c.l.b16 %v1868
    %v2472 = vunpack.c.h.b16 %v1868
    %v2473 = vunpack.c.l.b16 %v1869
    %v2474 = vunpack.c.h.b16 %v1869
    %v2475 = vunpack.c.l.b16 %v1870
    %v2476 = vunpack.c.h.b16 %v1870
    %v2477 = vunpack.c.l.b16 %v1871
    %v2478 = vunpack.c.h.b16 %v1871
    %v2479 = vunpack.c.l.b16 %v1872
    %v2480 = vunpack.c.h.b16 %v1872
    %v2481 = vunpack.c.l.b16 %v1873
    %v2482 = vunpack.c.h.b16 %v1873
    %v2483 = vunpack.c.l.b16 %v1874
    %v2484 = vunpack.c.h.b16 %v1874
    %v2485 = vunpack.c.l.b16 %v1875
    %v2486 = vunpack.c.h.b16 %v1875
    %v2487 = vunpack.c.l.b16 %v1876
    %v2488 = vunpack.c.h.b16 %v1876
    %v2489 = vunpack.c.l.b16 %v1877
    %v2490 = vunpack.c.h.b16 %v1877
    %v2491 = vunpack.c.l.b16 %v1878
    %v2492 = vunpack.c.h.b16 %v1878
    %v2493 = vunpack.c.l.b16 %v1879
    %v2494 = vunpack.c.h.b16 %v1879
    %v2495 = vunpack.c.l.b16 %v1880
    %v2496 = vunpack.c.h.b16 %v1880
    %v2497 = vunpack.c.l.b16 %v1881
    %v2498 = vunpack.c.h.b16 %v1881
    %v2499 = vunpack.c.l.b16 %v1882
    %v2500 = vunpack.c.h.b16 %v1882
    %v2501 = vunpack.c.l.b16 %v1883
    %v2502 = vunpack.c.h.b16 %v1883
    %v2503 = vunpack.c.l.b16 %v1884
    %v2504 = vunpack.c.h.b16 %v1884
    %v2505 = vunpack.c.l.b16 %v1885
    %v2506 = vunpack.c.h.b16 %v1885
    %v2507 = vunpack.c.l.b16 %v1886
    %v2508 = vunpack.c.h.b16 %v1886
    %v2509 = vunpack.c.l.b16 %v1887
    %v2510 = vunpack.c.h.b16 %v1887
    %v2511 = vunpack.c.l.b16 %v1888
    %v2512 = vunpack.c.h.b16 %v1888
    %v2513 = vunpack.c.l.b16 %v1889
    %v2514 = vunpack.c.h.b16 %v1889
    %v2515 = vunpack.c.l.b16 %v1890
    %v2516 = vunpack.c.h.b16 %v1890
    %v2517 = vunpack.c.l.b16 %v1891
    %v2518 = vunpack.c.h.b16 %v1891
    %v2519 = vunpack.c.l.b16 %v1892
    %v2520 = vunpack.c.h.b16 %v1892
    %v2521 = vunpack.c.l.b16 %v1893
    %v2522 = vunpack.c.h.b16 %v1893
    %v2523 = vunpack.c.l.b16 %v1894
    %v2524 = vunpack.c.h.b16 %v1894
    %v2525 = vunpack.c.l.b16 %v1895
    %v2526 = vunpack.c.h.b16 %v1895
    %v2527 = vunpack.c.l.b16 %v1896
    %v2528 = vunpack.c.h.b16 %v1896
    %v2529 = vunpack.c.l.b16 %v1897
    %v2530 = vunpack.c.h.b16 %v1897
    %v2531 = vunpack.c.l.b16 %v1898
    %v2532 = vunpack.c.h.b16 %v1898
    %v2533 = vunpack.c.l.b16 %v1899
    %v2534 = vunpack.c.h.b16 %v1899
    %v2535 = vunpack.c.l.b16 %v1900
    %v2536 = vunpack.c.h.b16 %v1900
    %v2537 = vunpack.c.l.b16 %v1901
    %v2538 = vunpack.c.h.b16 %v1901
    %v2539 = vunpack.c.l.b16 %v1902
    %v2540 = vunpack.c.h.b16 %v1902
    %v2541 = vunpack.c.l.b16 %v1903
    %v2542 = vunpack.c.h.b16 %v1903
    %v2543 = vunpack.c.l.b16 %v1904
    %v2544 = vunpack.c.h.b16 %v1904
    %v2545 = vunpack.c.l.b16 %v1905
    %v2546 = vunpack.c.h.b16 %v1905
    %v2547 = vunpack.c.l.b16 %v1906
    %v2548 = vunpack.c.h.b16 %v1906
    %v2549 = vunpack.c.l.b16 %v1907
    %v2550 = vunpack.c.h.b16 %v1907
    %v2551 = vunpack.c.l.b16 %v1908
    %v2552 = vunpack.c.h.b16 %v1908
    %v2553 = vunpack.c.l.b16 %v1909
    %v2554 = vunpack.c.h.b16 %v1909
    %v2555 = vunpack.c.l.b16 %v1910
    %v2556 = vunpack.c.h.b16 %v1910
    %v2557 = vunpack.c.l.b16 %v1911
    %v2558 = vunpack.c.h.b16 %v1911
    %v2559 = vunpack.c.l.b16 %v1912
    %v2560 = vunpack.c.h.b16 %v1912
    %v2561 = vunpack.c.l.b16 %v1913
    %v2562 = vunpack.c.h.b16 %v1913
    %v2563 = vunpack.c.l.b16 %v1914
    %v2564 = vunpack.c.h.b16 %v1914
    %v2565 = vunpack.c.l.b16 %v1915
    %v2566 = vunpack.c.h.b16 %v1915
    %v2567 = vunpack.c.l.b16 %v1916
    %v2568 = vunpack.c.h.b16 %v1916
    %v2569 = vunpack.c.l.b16 %v1917
    %v2570 = vunpack.c.h.b16 %v1917
    %v2571 = vunpack.c.l.b16 %v1918
    %v2572 = vunpack.c.h.b16 %v1918
    %v2573 = vunpack.c.l.b16 %v1919
    %v2574 = vunpack.c.h.b16 %v1919
    %v2575 = vunpack.c.l.b16 %v1920
    %v2576 = vunpack.c.h.b16 %v1920
    %v2577 = vunpack.c.l.b16 %v1921
    %v2578 = vunpack.c.h.b16 %v1921
    %v2579 = vunpack.c.l.b16 %v1922
    %v2580 = vunpack.c.h.b16 %v1922
    %v2581 = vunpack.c.l.b16 %v1923
    %v2582 = vunpack.c.h.b16 %v1923
    %v2583 = vunpack.c.l.b16 %v1924
    %v2584 = vunpack.c.h.b16 %v1924
    %v2585 = vunpack.c.l.b16 %v1925
    %v2586 = vunpack.c.h.b16 %v1925
    %v2587 = vunpack.c.l.b16 %v1926
    %v2588 = vunpack.c.h.b16 %v1926
    %v2589 = vunpack.c.l.b16 %v1927
    %v2590 = vunpack.c.h.b16 %v1927
    %v2591 = vunpack.c.l.b16 %v1928
    %v2592 = vunpack.c.h.b16 %v1928
    %v2593 = vunpack.c.l.b16 %v1929
    %v2594 = vunpack.c.h.b16 %v1929
    %v2595 = vunpack.c.l.b16 %v1930
    %v2596 = vunpack.c.h.b16 %v1930
    %v2597 = vunpack.c.l.b16 %v1931
    %v2598 = vunpack.c.h.b16 %v1931
    %v2599 = vunpack.c.l.b16 %v1932
    %v2600 = vunpack.c.h.b16 %v1932
    %v2601 = vunpack.c.l.b16 %v1933
    %v2602 = vunpack.c.h.b16 %v1933
    %v2603 = vunpack.c.l.b16 %v1934
    %v2604 = vunpack.c.h.b16 %v1934
    %v2605 = vunpack.c.l.b16 %v1935
    %v2606 = vunpack.c.h.b16 %v1935
    %v2607 = vunpack.c.l.b16 %v1936
    %v2608 = vunpack.c.h.b16 %v1936
    %v2609 = vunpack.c.l.b16 %v1937
    %v2610 = vunpack.c.h.b16 %v1937
    %v2611 = vunpack.c.l.b16 %v1938
    %v2612 = vunpack.c.h.b16 %v1938
    %v2613 = vunpack.c.l.b16 %v1939
    %v2614 = vunpack.c.h.b16 %v1939
    %v2615 = vunpack.c.l.b16 %v1940
    %v2616 = vunpack.c.h.b16 %v1940
    %v2617 = vunpack.c.l.b16 %v1941
    %v2618 = vunpack.c.h.b16 %v1941
    %v2619 = vunpack.c.l.b16 %v1942
    %v2620 = vunpack.c.h.b16 %v1942
    %v2621 = vunpack.c.l.b16 %v1943
    %v2622 = vunpack.c.h.b16 %v1943
    %v2623 = vunpack.c.l.b16 %v1944
    %v2624 = vunpack.c.h.b16 %v1944
    %v2625 = vunpack.c.l.b16 %v1945
    %v2626 = vunpack.c.h.b16 %v1945
    %v2627 = vunpack.c.l.b16 %v1946
    %v2628 = vunpack.c.h.b16 %v1946
    %v2629 = vunpack.c.l.b16 %v1947
    %v2630 = vunpack.c.h.b16 %v1947
    %v2631 = vunpack.c.l.b16 %v1948
    %v2632 = vunpack.c.h.b16 %v1948
    %v2633 = vunpack.c.l.b16 %v1949
    %v2634 = vunpack.c.h.b16 %v1949
    %v2635 = vunpack.c.l.b16 %v1950
    %v2636 = vunpack.c.h.b16 %v1950
    %v2637 = vunpack.c.l.b16 %v1951
    %v2638 = vunpack.c.h.b16 %v1951
    %v2639 = vunpack.c.l.b16 %v1952
    %v2640 = vunpack.c.h.b16 %v1952
    %v2641 = vunpack.c.l.b16 %v1953
    %v2642 = vunpack.c.h.b16 %v1953
    %v2643 = vunpack.c.l.b16 %v1954
    %v2644 = vunpack.c.h.b16 %v1954
    %v2645 = vunpack.c.l.b16 %v1955
    %v2646 = vunpack.c.h.b16 %v1955
    %v2647 = vunpack.c.l.b16 %v1956
    %v2648 = vunpack.c.h.b16 %v1956
    %v2649 = vunpack.c.l.b16 %v1957
    %v2650 = vunpack.c.h.b16 %v1957
    %v2651 = vunpack.c.l.b16 %v1958
    %v2652 = vunpack.c.h.b16 %v1958
    %v2653 = vunpack.c.l.b16 %v1959
    %v2654 = vunpack.c.h.b16 %v1959
    %v2655 = vunpack.c.l.b16 %v1960
    %v2656 = vunpack.c.h.b16 %v1960
    %v2657 = vunpack.c.l.b16 %v1961
    %v2658 = vunpack.c.h.b16 %v1961
    %v2659 = vunpack.c.l.b16 %v1962
    %v2660 = vunpack.c.h.b16 %v1962
    %v2661 = vunpack.c.l.b16 %v1963
    %v2662 = vunpack.c.h.b16 %v1963
    %v2663 = vunpack.c.l.b16 %v1964
    %v2664 = vunpack.c.h.b16 %v1964
    %v2665 = vunpack.c.l.b16 %v1965
    %v2666 = vunpack.c.h.b16 %v1965
    %v2667 = vunpack.c.l.b16 %v1966
    %v2668 = vunpack.c.h.b16 %v1966
    %v2669 = vunpack.c.l.b16 %v1967
    %v2670 = vunpack.c.h.b16 %v1967
    %v2671 = vunpack.c.l.b16 %v1968
    %v2672 = vunpack.c.h.b16 %v1968
    %v2673 = vunpack.c.l.b16 %v1969
    %v2674 = vunpack.c.h.b16 %v1969
    %v2675 = vunpack.c.l.b16 %v1970
    %v2676 = vunpack.c.h.b16 %v1970
    %v2677 = vunpack.c.l.b16 %v1971
    %v2678 = vunpack.c.h.b16 %v1971
    %v2679 = vunpack.c.l.b16 %v1972
    %v2680 = vunpack.c.h.b16 %v1972
    %v2681 = vunpack.c.l.b16 %v1973
    %v2682 = vunpack.c.h.b16 %v1973
    %v2683 = vunpack.c.l.b16 %v1974
    %v2684 = vunpack.c.h.b16 %v1974
    %v2685 = vunpack.c.l.b16 %v1975
    %v2686 = vunpack.c.h.b16 %v1975
    %v2687 = vunpack.c.l.b16 %v1976
    %v2688 = vunpack.c.h.b16 %v1976
    %v2689 = vunpack.c.l.b16 %v1977
    %v2690 = vunpack.c.h.b16 %v1977
    %v2691 = vunpack.c.l.b16 %v1978
    %v2692 = vunpack.c.h.b16 %v1978
    %v2693 = vunpack.c.l.b16 %v1979
    %v2694 = vunpack.c.h.b16 %v1979
    %v2695 = vunpack.c.l.b16 %v1980
    %v2696 = vunpack.c.h.b16 %v1980
    %v2697 = vunpack.c.l.b16 %v1981
    %v2698 = vunpack.c.h.b16 %v1981
    %v2699 = vunpack.c.l.b16 %v1982
    %v2700 = vunpack.c.h.b16 %v1982
    %v2701 = vunpack.c.l.b16 %v1983
    %v2702 = vunpack.c.h.b16 %v1983
    %v2703 = vunpack.c.l.b16 %v1984
    %v2704 = vunpack.c.h.b16 %v1984
    %v2705 = vunpack.c.l.b16 %v1985
    %v2706 = vunpack.c.h.b16 %v1985
    %v2707 = vunpack.c.l.b16 %v1986
    %v2708 = vunpack.c.h.b16 %v1986
    %v2709 = vunpack.c.l.b16 %v1987
    %v2710 = vunpack.c.h.b16 %v1987
    %v2711 = vunpack.c.l.b16 %v1988
    %v2712 = vunpack.c.h.b16 %v1988
    %v2713 = vunpack.c.l.b16 %v1989
    %v2714 = vunpack.c.h.b16 %v1989
    %v2715 = vunpack.c.l.b16 %v1990
    %v2716 = vunpack.c.h.b16 %v1990
    %v2717 = vunpack.c.l.b16 %v1991
    %v2718 = vunpack.c.h.b16 %v1991
    %v2719 = vunpack.c.l.b16 %v1992
    %v2720 = vunpack.c.h.b16 %v1992
    %v2721 = vunpack.c.l.b16 %v1993
    %v2722 = vunpack.c.h.b16 %v1993
    %v2723 = vunpack.c.l.b16 %v1994
    %v2724 = vunpack.c.h.b16 %v1994
    %v2725 = vunpack.c.l.b16 %v1995
    %v2726 = vunpack.c.h.b16 %v1995
    %v2727 = vunpack.c.l.b16 %v1996
    %v2728 = vunpack.c.h.b16 %v1996
    %v2729 = vunpack.c.l.b16 %v1997
    %v2730 = vunpack.c.h.b16 %v1997
    %v2731 = vunpack.c.l.b16 %v1998
    %v2732 = vunpack.c.h.b16 %v1998
    %v2733 = vunpack.c.l.b16 %v1999
    %v2734 = vunpack.c.h.b16 %v1999
    %v2735 = vunpack.c.l.b16 %v2000
    %v2736 = vunpack.c.h.b16 %v2000
    %v2737 = vunpack.c.l.b16 %v2001
    %v2738 = vunpack.c.h.b16 %v2001
    %v2739 = vunpack.c.l.b16 %v2002
    %v2740 = vunpack.c.h.b16 %v2002
    %v2741 = vunpack.c.l.b16 %v2003
    %v2742 = vunpack.c.h.b16 %v2003
    %v2743 = vunpack.c.l.b16 %v2004
    %v2744 = vunpack.c.h.b16 %v2004
    %v2745 = vunpack.c.l.b16 %v2005
    %v2746 = vunpack.c.h.b16 %v2005
    %v2747 = vunpack.c.l.b16 %v2006
    %v2748 = vunpack.c.h.b16 %v2006
    %v2749 = vunpack.c.l.b16 %v2007
    %v2750 = vunpack.c.h.b16 %v2007
    %v2751 = vunpack.c.l.b16 %v2008
    %v2752 = vunpack.c.h.b16 %v2008
    %v2753 = vunpack.c.l.b16 %v2009
    %v2754 = vunpack.c.h.b16 %v2009
    %v2755 = vunpack.c.l.b16 %v2010
    %v2756 = vunpack.c.h.b16 %v2010
    %v2757 = vunpack.c.l.b16 %v2011
    %v2758 = vunpack.c.h.b16 %v2011
    %v2759 = vunpack.c.l.b16 %v2012
    %v2760 = vunpack.c.h.b16 %v2012
    %v2761 = vunpack.c.l.b16 %v2013
    %v2762 = vunpack.c.h.b16 %v2013
    %v2763 = vunpack.c.l.b16 %v2014
    %v2764 = vunpack.c.h.b16 %v2014
    %v2765 = vunpack.c.l.b16 %v2015
    %v2766 = vunpack.c.h.b16 %v2015
    %v2767 = vunpack.c.l.b16 %v2016
    %v2768 = vunpack.c.h.b16 %v2016
    %v2769 = vunpack.c.l.b16 %v2017
    %v2770 = vunpack.c.h.b16 %v2017
    %v2771 = vunpack.c.l.b16 %v2018
    %v2772 = vunpack.c.h.b16 %v2018
    %v2773 = vunpack.c.l.b16 %v2019
    %v2774 = vunpack.c.h.b16 %v2019
    %v2775 = vunpack.c.l.b16 %v2020
    %v2776 = vunpack.c.h.b16 %v2020
    %v2777 = vunpack.c.l.b16 %v2021
    %v2778 = vunpack.c.h.b16 %v2021
    %v2779 = vunpack.c.l.b16 %v2022
    %v2780 = vunpack.c.h.b16 %v2022
    %v2781 = vunpack.c.l.b16 %v2023
    %v2782 = vunpack.c.h.b16 %v2023
    %v2783 = vunpack.c.l.b16 %v2024
    %v2784 = vunpack.c.h.b16 %v2024
    %v2785 = vunpack.c.l.b16 %v2025
    %v2786 = vunpack.c.h.b16 %v2025
    %v2787 = vunpack.c.l.b16 %v2026
    %v2788 = vunpack.c.h.b16 %v2026
    %v2789 = vunpack.c.l.b16 %v2027
    %v2790 = vunpack.c.h.b16 %v2027
    %v2791 = vunpack.c.l.b16 %v2028
    %v2792 = vunpack.c.h.b16 %v2028
    %v2793 = vunpack.c.l.b16 %v2029
    %v2794 = vunpack.c.h.b16 %v2029
    %v2795 = vunpack.c.l.b16 %v2030
    %v2796 = vunpack.c.h.b16 %v2030
    %v2797 = vunpack.c.l.b16 %v2031
    %v2798 = vunpack.c.h.b16 %v2031
    %v2799 = vunpack.c.l.b16 %v2032
    %v2800 = vunpack.c.h.b16 %v2032
    %v2801 = vpack.c.b16 %v2293, %v2289
    %v2802 = vpack.c.b16 %v2294, %v2290
    %v2803 = vpack.c.b16 %v2295, %v2291
    %v2804 = vpack.c.b16 %v2296, %v2292
    %v2805 = vpack.c.b16 %v2301, %v2297
    %v2806 = vpack.c.b16 %v2302, %v2298
    %v2807 = vpack.c.b16 %v2303, %v2299
    %v2808 = vpack.c.b16 %v2304, %v2300
    %v2809 = vpack.c.b16 %v2309, %v2305
    %v2810 = vpack.c.b16 %v2310, %v2306
    %v2811 = vpack.c.b16 %v2311, %v2307
    %v2812 = vpack.c.b16 %v2312, %v2308
    %v2813 = vpack.c.b16 %v2317, %v2313
    %v2814 = vpack.c.b16 %v2318, %v2314
    %v2815 = vpack.c.b16 %v2319, %v2315
    %v2816 = vpack.c.b16 %v2320, %v2316
    %v2817 = vpack.c.b16 %v2325, %v2321
    %v2818 = vpack.c.b16 %v2326, %v2322
    %v2819 = vpack.c.b16 %v2327, %v2323
    %v2820 = vpack.c.b16 %v2328, %v2324
    %v2821 = vpack.c.b16 %v2333, %v2329
    %v2822 = vpack.c.b16 %v2334, %v2330
    %v2823 = vpack.c.b16 %v2335, %v2331
    %v2824 = vpack.c.b16 %v2336, %v2332
    %v2825 = vpack.c.b16 %v2341, %v2337
    %v2826 = vpack.c.b16 %v2342, %v2338
    %v2827 = vpack.c.b16 %v2343, %v2339
    %v2828 = vpack.c.b16 %v2344, %v2340
    %v2829 = vpack.c.b16 %v2349, %v2345
    %v2830 = vpack.c.b16 %v2350, %v2346
    %v2831 = vpack.c.b16 %v2351, %v2347
    %v2832 = vpack.c.b16 %v2352, %v2348
    %v2833 = vpack.c.b16 %v2357, %v2353
    %v2834 = vpack.c.b16 %v2358, %v2354
    %v2835 = vpack.c.b16 %v2359, %v2355
    %v2836 = vpack.c.b16 %v2360, %v2356
    %v2837 = vpack.c.b16 %v2365, %v2361
    %v2838 = vpack.c.b16 %v2366, %v2362
    %v2839 = vpack.c.b16 %v2367, %v2363
    %v2840 = vpack.c.b16 %v2368, %v2364
    %v2841 = vpack.c.b16 %v2373, %v2369
    %v2842 = vpack.c.b16 %v2374, %v2370
    %v2843 = vpack.c.b16 %v2375, %v2371
    %v2844 = vpack.c.b16 %v2376, %v2372
    %v2845 = vpack.c.b16 %v2381, %v2377
    %v2846 = vpack.c.b16 %v2382, %v2378
    %v2847 = vpack.c.b16 %v2383, %v2379
    %v2848 = vpack.c.b16 %v2384, %v2380
    %v2849 = vpack.c.b16 %v2389, %v2385
    %v2850 = vpack.c.b16 %v2390, %v2386
    %v2851 = vpack.c.b16 %v2391, %v2387
    %v2852 = vpack.c.b16 %v2392, %v2388
    %v2853 = vpack.c.b16 %v2397, %v2393
    %v2854 = vpack.c.b16 %v2398, %v2394
    %v2855 = vpack.c.b16 %v2399, %v2395
    %v2856 = vpack.c.b16 %v2400, %v2396
    %v2857 = vpack.c.b16 %v2405, %v2401
    %v2858 = vpack.c.b16 %v2406, %v2402
    %v2859 = vpack.c.b16 %v2407, %v2403
    %v2860 = vpack.c.b16 %v2408, %v2404
    %v2861 = vpack.c.b16 %v2413, %v2409
    %v2862 = vpack.c.b16 %v2414, %v2410
    %v2863 = vpack.c.b16 %v2415, %v2411
    %v2864 = vpack.c.b16 %v2416, %v2412
    %v2865 = vpack.c.b16 %v2421, %v2417
    %v2866 = vpack.c.b16 %v2422, %v2418
    %v2867 = vpack.c.b16 %v2423, %v2419
    %v2868 = vpack.c.b16 %v2424, %v2420
    %v2869 = vpack.c.b16 %v2429, %v2425
    %v2870 = vpack.c.b16 %v2430, %v2426
    %v2871 = vpack.c.b16 %v2431, %v2427
    %v2872 = vpack.c.b16 %v2432, %v2428
    %v2873 = vpack.c.b16 %v2437, %v2433
    %v2874 = vpack.c.b16 %v2438, %v2434
    %v2875 = vpack.c.b16 %v2439, %v2435
    %v2876 = vpack.c.b16 %v2440, %v2436
    %v2877 = vpack.c.b16 %v2445, %v2441
    %v2878 = vpack.c.b16 %v2446, %v2442
    %v2879 = vpack.c.b16 %v2447, %v2443
    %v2880 = vpack.c.b16 %v2448, %v2444
    %v2881 = vpack.c.b16 %v2453, %v2449
    %v2882 = vpack.c.b16 %v2454, %v2450
    %v2883 = vpack.c.b16 %v2455, %v2451
    %v2884 = vpack.c.b16 %v2456, %v2452
    %v2885 = vpack.c.b16 %v2461, %v2457
    %v2886 = vpack.c.b16 %v2462, %v2458
    %v2887 = vpack.c.b16 %v2463, %v2459
    %v2888 = vpack.c.b16 %v2464, %v2460
    %v2889 = vpack.c.b16 %v2469, %v2465
    %v2890 = vpack.c.b16 %v2470, %v2466
    %v2891 = vpack.c.b16 %v2471, %v2467
    %v2892 = vpack.c.b16 %v2472, %v2468
    %v2893 = vpack.c.b16 %v2477, %v2473
    %v2894 = vpack.c.b16 %v2478, %v2474
    %v2895 = vpack.c.b16 %v2479, %v2475
    %v2896 = vpack.c.b16 %v2480, %v2476
    %v2897 = vpack.c.b16 %v2485, %v2481
    %v2898 = vpack.c.b16 %v2486, %v2482
    %v2899 = vpack.c.b16 %v2487, %v2483
    %v2900 = vpack.c.b16 %v2488, %v2484
    %v2901 = vpack.c.b16 %v2493, %v2489
    %v2902 = vpack.c.b16 %v2494, %v2490
    %v2903 = vpack.c.b16 %v2495, %v2491
    %v2904 = vpack.c.b16 %v2496, %v2492
    %v2905 = vpack.c.b16 %v2501, %v2497
    %v2906 = vpack.c.b16 %v2502, %v2498
    %v2907 = vpack.c.b16 %v2503, %v2499
    %v2908 = vpack.c.b16 %v2504, %v2500
    %v2909 = vpack.c.b16 %v2509, %v2505
    %v2910 = vpack.c.b16 %v2510, %v2506
    %v2911 = vpack.c.b16 %v2511, %v2507
    %v2912 = vpack.c.b16 %v2512, %v2508
    %v2913 = vpack.c.b16 %v2517, %v2513
    %v2914 = vpack.c.b16 %v2518, %v2514
    %v2915 = vpack.c.b16 %v2519, %v2515
    %v2916 = vpack.c.b16 %v2520, %v2516
    %v2917 = vpack.c.b16 %v2525, %v2521
    %v2918 = vpack.c.b16 %v2526, %v2522
    %v2919 = vpack.c.b16 %v2527, %v2523
    %v2920 = vpack.c.b16 %v2528, %v2524
    %v2921 = vpack.c.b16 %v2533, %v2529
    %v2922 = vpack.c.b16 %v2534, %v2530
    %v2923 = vpack.c.b16 %v2535, %v2531
    %v2924 = vpack.c.b16 %v2536, %v2532
    %v2925 = vpack.c.b16 %v2541, %v2537
    %v2926 = vpack.c.b16 %v2542, %v2538
    %v2927 = vpack.c.b16 %v2543, %v2539
    %v2928 = vpack.c.b16 %v2544, %v2540
    %v2929 = vpack.c.b16 %v2549, %v2545
    %v2930 = vpack.c.b16 %v2550, %v2546
    %v2931 = vpack.c.b16 %v2551, %v2547
    %v2932 = vpack.c.b16 %v2552, %v2548
    %v2933 = vpack.c.b16 %v2557, %v2553
    %v2934 = vpack.c.b16 %v2558, %v2554
    %v2935 = vpack.c.b16 %v2559, %v2555
    %v2936 = vpack.c.b16 %v2560, %v2556
    %v2937 = vpack.c.b16 %v2565, %v2561
    %v2938 = vpack.c.b16 %v2566, %v2562
    %v2939 = vpack.c.b16 %v2567, %v2563
    %v2940 = vpack.c.b16 %v2568, %v2564
    %v2941 = vpack.c.b16 %v2573, %v2569
    %v2942 = vpack.c.b16 %v2574, %v2570
    %v2943 = vpack.c.b16 %v2575, %v2571
    %v2944 = vpack.c.b16 %v2576, %v2572
    %v2945 = vpack.c.b16 %v2581, %v2577
    %v2946 = vpack.c.b16 %v2582, %v2578
    %v2947 = vpack.c.b16 %v2583, %v2579
    %v2948 = vpack.c.b16 %v2584, %v2580
    %v2949 = vpack.c.b16 %v2589, %v2585
    %v2950 = vpack.c.b16 %v2590, %v2586
    %v2951 = vpack.c.b16 %v2591, %v2587
    %v2952 = vpack.c.b16 %v2592, %v2588
    %v2953 = vpack.c.b16 %v2597, %v2593
    %v2954 = vpack.c.b16 %v2598, %v2594
    %v2955 = vpack.c.b16 %v2599, %v2595
    %v2956 = vpack.c.b16 %v2600, %v2596
    %v2957 = vpack.c.b16 %v2605, %v2601
    %v2958 = vpack.c.b16 %v2606, %v2602
    %v2959 = vpack.c.b16 %v2607, %v2603
    %v2960 = vpack.c.b16 %v2608, %v2604
    %v2961 = vpack.c.b16 %v2613, %v2609
    %v2962 = vpack.c.b16 %v2614, %v2610
    %v2963 = vpack.c.b16 %v2615, %v2611
    %v2964 = vpack.c.b16 %v2616, %v2612
    %v2965 = vpack.c.b16 %v2621, %v2617
    %v2966 = vpack.c.b16 %v2622, %v2618
    %v2967 = vpack.c.b16 %v2623, %v2619
    %v2968 = vpack.c.b16 %v2624, %v2620
    %v2969 = vpack.c.b16 %v2629, %v2625
    %v2970 = vpack.c.b16 %v2630, %v2626
    %v2971 = vpack.c.b16 %v2631, %v2627
    %v2972 = vpack.c.b16 %v2632, %v2628
    %v2973 = vpack.c.b16 %v2637, %v2633
    %v2974 = vpack.c.b16 %v2638, %v2634
    %v2975 = vpack.c.b16 %v2639, %v2635
    %v2976 = vpack.c.b16 %v2640, %v2636
    %v2977 = vpack.c.b16 %v2645, %v2641
    %v2978 = vpack.c.b16 %v2646, %v2642
    %v2979 = vpack.c.b16 %v2647, %v2643
    %v2980 = vpack.c.b16 %v2648, %v2644
    %v2981 = vpack.c.b16 %v2653, %v2649
    %v2982 = vpack.c.b16 %v2654, %v2650
    %v2983 = vpack.c.b16 %v2655, %v2651
    %v2984 = vpack.c.b16 %v2656, %v2652
    %v2985 = vpack.c.b16 %v2661, %v2657
    %v2986 = vpack.c.b16 %v2662, %v2658
    %v2987 = vpack.c.b16 %v2663, %v2659
    %v2988 = vpack.c.b16 %v2664, %v2660
    %v2989 = vpack.c.b16 %v2669, %v2665
    %v2990 = vpack.c.b16 %v2670, %v2666
    %v2991 = vpack.c.b16 %v2671, %v2667
    %v2992 = vpack.c.b16 %v2672, %v2668
    %v2993 = vpack.c.b16 %v2677, %v2673
    %v2994 = vpack.c.b16 %v2678, %v2674
    %v2995 = vpack.c.b16 %v2679, %v2675
    %v2996 = vpack.c.b16 %v2680, %v2676
    %v2997 = vpack.c.b16 %v2685, %v2681
    %v2998 = vpack.c.b16 %v2686, %v2682
    %v2999 = vpack.c.b16 %v2687, %v2683
    %v3000 = vpack.c.b16 %v2688, %v2684
    %v3001 = vpack.c.b16 %v2693, %v2689
    %v3002 = vpack.c.b16 %v2694, %v2690
    %v3003 = vpack.c.b16 %v2695, %v2691
    %v3004 = vpack.c.b16 %v2696, %v2692
    %v3005 = vpack.c.b16 %v2701, %v2697
    %v3006 = vpack.c.b16 %v2702, %v2698
    %v3007 = vpack.c.b16 %v2703, %v2699
    %v3008 = vpack.c.b16 %v2704, %v2700
    %v3009 = vpack.c.b16 %v2709, %v2705
    %v3010 = vpack.c.b16 %v2710, %v2706
    %v3011 = vpack.c.b16 %v2711, %v2707
    %v3012 = vpack.c.b16 %v2712, %v2708
    %v3013 = vpack.c.b16 %v2717, %v2713
    %v3014 = vpack.c.b16 %v2718, %v2714
    %v3015 = vpack.c.b16 %v2719, %v2715
    %v3016 = vpack.c.b16 %v2720, %v2716
    %v3017 = vpack.c.b16 %v2725, %v2721
    %v3018 = vpack.c.b16 %v2726, %v2722
    %v3019 = vpack.c.b16 %v2727, %v2723
    %v3020 = vpack.c.b16 %v2728, %v2724
    %v3021 = vpack.c.b16 %v2733, %v2729
    %v3022 = vpack.c.b16 %v2734, %v2730
    %v3023 = vpack.c.b16 %v2735, %v2731
    %v3024 = vpack.c.b16 %v2736, %v2732
    %v3025 = vpack.c.b16 %v2741, %v2737
    %v3026 = vpack.c.b16 %v2742, %v2738
    %v3027 = vpack.c.b16 %v2743, %v2739
    %v3028 = vpack.c.b16 %v2744, %v2740
    %v3029 = vpack.c.b16 %v2749, %v2745
    %v3030 = vpack.c.b16 %v2750, %v2746
    %v3031 = vpack.c.b16 %v2751, %v2747
    %v3032 = vpack.c.b16 %v2752, %v2748
    %v3033 = vpack.c.b16 %v2757, %v2753
    %v3034 = vpack.c.b16 %v2758, %v2754
    %v3035 = vpack.c.b16 %v2759, %v2755
    %v3036 = vpack.c.b16 %v2760, %v2756
    %v3037 = vpack.c.b16 %v2765, %v2761
    %v3038 = vpack.c.b16 %v2766, %v2762
    %v3039 = vpack.c.b16 %v2767, %v2763
    %v3040 = vpack.c.b16 %v2768, %v2764
    %v3041 = vpack.c.b16 %v2773, %v2769
    %v3042 = vpack.c.b16 %v2774, %v2770
    %v3043 = vpack.c.b16 %v2775, %v2771
    %v3044 = vpack.c.b16 %v2776, %v2772
    %v3045 = vpack.c.b16 %v2781, %v2777
    %v3046 = vpack.c.b16 %v2782, %v2778
    %v3047 = vpack.c.b16 %v2783, %v2779
    %v3048 = vpack.c.b16 %v2784, %v2780
    %v3049 = vpack.c.b16 %v2789, %v2785
    %v3050 = vpack.c.b16 %v2790, %v2786
    %v3051 = vpack.c.b16 %v2791, %v2787
    %v3052 = vpack.c.b16 %v2792, %v2788
    %v3053 = vpack.c.b16 %v2797, %v2793
    %v3054 = vpack.c.b16 %v2798, %v2794
    %v3055 = vpack.c.b16 %v2799, %v2795
    %v3056 = vpack.c.b16 %v2800, %v2796
    %3313 = vmatprep.subr.bf16.mxu0 %v2802
    %3314 = vmatpush1.bf16.msra.mxu0 %v2801
    %3315 = vmatprep.subr.bf16.mxu0 %v2806
    %3316 = vmatpush1.bf16.msra.mxu0 %v2805
    %3317 = vmatprep.subr.bf16.mxu0 %v2810
    %3318 = vmatpush1.bf16.msra.mxu0 %v2809
    %3319 = vmatprep.subr.bf16.mxu0 %v2814
    %3320 = vmatpush1.bf16.msra.mxu0 %v2813
    %3321 = vmatprep.subr.bf16.mxu0 %v2818
    %3322 = vmatpush1.bf16.msra.mxu0 %v2817
    %3323 = vmatprep.subr.bf16.mxu0 %v2822
    %3324 = vmatpush1.bf16.msra.mxu0 %v2821
    %3325 = vmatprep.subr.bf16.mxu0 %v2826
    %3326 = vmatpush1.bf16.msra.mxu0 %v2825
    %3327 = vmatprep.subr.bf16.mxu0 %v2830
    %3328 = vmatpush1.bf16.msra.mxu0 %v2829
    %3329 = vmatprep.subr.bf16.mxu0 %v2834
    %3330 = vmatpush1.bf16.msra.mxu0 %v2833
    %3331 = vmatprep.subr.bf16.mxu0 %v2838
    %3332 = vmatpush1.bf16.msra.mxu0 %v2837
    %3333 = vmatprep.subr.bf16.mxu0 %v2842
    %3334 = vmatpush1.bf16.msra.mxu0 %v2841
    %3335 = vmatprep.subr.bf16.mxu0 %v2846
    %3336 = vmatpush1.bf16.msra.mxu0 %v2845
    %3337 = vmatprep.subr.bf16.mxu0 %v2850
    %3338 = vmatpush1.bf16.msra.mxu0 %v2849
    %3339 = vmatprep.subr.bf16.mxu0 %v2854
    %3340 = vmatpush1.bf16.msra.mxu0 %v2853
    %3341 = vmatprep.subr.bf16.mxu0 %v2858
    %3342 = vmatpush1.bf16.msra.mxu0 %v2857
    %3343 = vmatprep.subr.bf16.mxu0 %v2862
    %3344 = vmatpush1.bf16.msra.mxu0 %v2861
    %3345 = vmatprep.mubr.bf16.mxu0 %v1770
    %3346 = vmatmul.mubr.bf16.gmra.mrb[0].mxu0 %v1769
    %v3347 = vpop.f32.mrb[0].mxu0
    %v3348 = vadd.f32 0.0, %v3347
    %v3349 = vpop.f32.mrb[0].mxu0
    %v3350 = vadd.f32 0.0, %v3349
    %v3351 = vpop.f32.mrb[0].mxu0
    %v3352 = vadd.f32 0.0, %v3351
    %v3353 = vpop.f32.mrb[0].mxu0
    %v3354 = vadd.f32 0.0, %v3353
    %3355 = vdwg.mxu0
    %3356 = vmatprep.subr.bf16.mxu0 %v2866
    %3357 = vmatpush1.bf16.msra.mxu0 %v2865
    %3358 = vmatprep.subr.bf16.mxu0 %v2870
    %3359 = vmatpush1.bf16.msra.mxu0 %v2869
    %3360 = vmatprep.subr.bf16.mxu0 %v2874
    %3361 = vmatpush1.bf16.msra.mxu0 %v2873
    %3362 = vmatprep.subr.bf16.mxu0 %v2878
    %3363 = vmatpush1.bf16.msra.mxu0 %v2877
    %3364 = vmatprep.subr.bf16.mxu0 %v2882
    %3365 = vmatpush1.bf16.msra.mxu0 %v2881
    %3366 = vmatprep.subr.bf16.mxu0 %v2886
    %3367 = vmatpush1.bf16.msra.mxu0 %v2885
    %3368 = vmatprep.subr.bf16.mxu0 %v2890
    %3369 = vmatpush1.bf16.msra.mxu0 %v2889
    %3370 = vmatprep.subr.bf16.mxu0 %v2894
    %3371 = vmatpush1.bf16.msra.mxu0 %v2893
    %3372 = vmatprep.subr.bf16.mxu0 %v2898
    %3373 = vmatpush1.bf16.msra.mxu0 %v2897
    %3374 = vmatprep.subr.bf16.mxu0 %v2902
    %3375 = vmatpush1.bf16.msra.mxu0 %v2901
    %3376 = vmatprep.subr.bf16.mxu0 %v2906
    %3377 = vmatpush1.bf16.msra.mxu0 %v2905
    %3378 = vmatprep.subr.bf16.mxu0 %v2910
    %3379 = vmatpush1.bf16.msra.mxu0 %v2909
    %3380 = vmatprep.subr.bf16.mxu0 %v2914
    %3381 = vmatpush1.bf16.msra.mxu0 %v2913
    %3382 = vmatprep.subr.bf16.mxu0 %v2918
    %3383 = vmatpush1.bf16.msra.mxu0 %v2917
    %3384 = vmatprep.subr.bf16.mxu0 %v2922
    %3385 = vmatpush1.bf16.msra.mxu0 %v2921
    %3386 = vmatprep.subr.bf16.mxu0 %v2926
    %3387 = vmatpush1.bf16.msra.mxu0 %v2925
    %3388 = vmatprep.mubr.bf16.mxu0 %v1772
    %3389 = vmatmul.mubr.bf16.gmra.mrb[0].mxu0 %v1771
    %v3390 = vpop.f32.mrb[0].mxu0
    %v3391 = vadd.f32 %v3348, %v3390
    %v3392 = vpop.f32.mrb[0].mxu0
    %v3393 = vadd.f32 %v3350, %v3392
    %v3394 = vpop.f32.mrb[0].mxu0
    %v3395 = vadd.f32 %v3352, %v3394
    %v3396 = vpop.f32.mrb[0].mxu0
    %v3397 = vadd.f32 %v3354, %v3396
    %3398 = vdwg.mxu0
    %3399 = vmatprep.subr.bf16.mxu0 %v2930
    %3400 = vmatpush1.bf16.msra.mxu0 %v2929
    %3401 = vmatprep.subr.bf16.mxu0 %v2934
    %3402 = vmatpush1.bf16.msra.mxu0 %v2933
    %3403 = vmatprep.subr.bf16.mxu0 %v2938
    %3404 = vmatpush1.bf16.msra.mxu0 %v2937
    %3405 = vmatprep.subr.bf16.mxu0 %v2942
    %3406 = vmatpush1.bf16.msra.mxu0 %v2941
    %3407 = vmatprep.subr.bf16.mxu0 %v2946
    %3408 = vmatpush1.bf16.msra.mxu0 %v2945
    %3409 = vmatprep.subr.bf16.mxu0 %v2950
    %3410 = vmatpush1.bf16.msra.mxu0 %v2949
    %3411 = vmatprep.subr.bf16.mxu0 %v2954
    %3412 = vmatpush1.bf16.msra.mxu0 %v2953
    %3413 = vmatprep.subr.bf16.mxu0 %v2958
    %3414 = vmatpush1.bf16.msra.mxu0 %v2957
    %3415 = vmatprep.subr.bf16.mxu0 %v2962
    %3416 = vmatpush1.bf16.msra.mxu0 %v2961
    %3417 = vmatprep.subr.bf16.mxu0 %v2966
    %3418 = vmatpush1.bf16.msra.mxu0 %v2965
    %3419 = vmatprep.subr.bf16.mxu0 %v2970
    %3420 = vmatpush1.bf16.msra.mxu0 %v2969
    %3421 = vmatprep.subr.bf16.mxu0 %v2974
    %3422 = vmatpush1.bf16.msra.mxu0 %v2973
    %3423 = vmatprep.subr.bf16.mxu0 %v2978
    %3424 = vmatpush1.bf16.msra.mxu0 %v2977
    %3425 = vmatprep.subr.bf16.mxu0 %v2982
    %3426 = vmatpush1.bf16.msra.mxu0 %v2981
    %3427 = vmatprep.subr.bf16.mxu0 %v2986
    %3428 = vmatpush1.bf16.msra.mxu0 %v2985
    %3429 = vmatprep.subr.bf16.mxu0 %v2990
    %3430 = vmatpush1.bf16.msra.mxu0 %v2989
    %3431 = vmatprep.mubr.bf16.mxu0 %v1774
    %3432 = vmatmul.mubr.bf16.gmra.mrb[0].mxu0 %v1773
    %v3433 = vpop.f32.mrb[0].mxu0
    %v3434 = vadd.f32 %v3391, %v3433
    %v3435 = vpop.f32.mrb[0].mxu0
    %v3436 = vadd.f32 %v3393, %v3435
    %v3437 = vpop.f32.mrb[0].mxu0
    %v3438 = vadd.f32 %v3395, %v3437
    %v3439 = vpop.f32.mrb[0].mxu0
    %v3440 = vadd.f32 %v3397, %v3439
    %3441 = vdwg.mxu0
    %3442 = vmatprep.subr.bf16.mxu0 %v2994
    %3443 = vmatpush1.bf16.msra.mxu0 %v2993
    %3444 = vmatprep.subr.bf16.mxu0 %v2998
    %3445 = vmatpush1.bf16.msra.mxu0 %v2997
    %3446 = vmatprep.subr.bf16.mxu0 %v3002
    %3447 = vmatpush1.bf16.msra.mxu0 %v3001
    %3448 = vmatprep.subr.bf16.mxu0 %v3006
    %3449 = vmatpush1.bf16.msra.mxu0 %v3005
    %3450 = vmatprep.subr.bf16.mxu0 %v3010
    %3451 = vmatpush1.bf16.msra.mxu0 %v3009
    %3452 = vmatprep.subr.bf16.mxu0 %v3014
    %3453 = vmatpush1.bf16.msra.mxu0 %v3013
    %3454 = vmatprep.subr.bf16.mxu0 %v3018
    %3455 = vmatpush1.bf16.msra.mxu0 %v3017
    %3456 = vmatprep.subr.bf16.mxu0 %v3022
    %3457 = vmatpush1.bf16.msra.mxu0 %v3021
    %3458 = vmatprep.subr.bf16.mxu0 %v3026
    %3459 = vmatpush1.bf16.msra.mxu0 %v3025
    %3460 = vmatprep.subr.bf16.mxu0 %v3030
    %3461 = vmatpush1.bf16.msra.mxu0 %v3029
    %3462 = vmatprep.subr.bf16.mxu0 %v3034
    %3463 = vmatpush1.bf16.msra.mxu0 %v3033
    %3464 = vmatprep.subr.bf16.mxu0 %v3038
    %3465 = vmatpush1.bf16.msra.mxu0 %v3037
    %3466 = vmatprep.subr.bf16.mxu0 %v3042
    %3467 = vmatpush1.bf16.msra.mxu0 %v3041
    %3468 = vmatprep.subr.bf16.mxu0 %v3046
    %3469 = vmatpush1.bf16.msra.mxu0 %v3045
    %3470 = vmatprep.subr.bf16.mxu0 %v3050
    %3471 = vmatpush1.bf16.msra.mxu0 %v3049
    %3472 = vmatprep.subr.bf16.mxu0 %v3054
    %3473 = vmatpush1.bf16.msra.mxu0 %v3053
    %3474 = vmatprep.mubr.bf16.mxu0 %v1776
    %3475 = vmatmul.mubr.bf16.gmra.mrb[0].mxu0 %v1775
    %v3476 = vpop.f32.mrb[0].mxu0
    %v3477 = vadd.f32 %v3434, %v3476
    %v3478 = vpop.f32.mrb[0].mxu0
    %v3479 = vadd.f32 %v3436, %v3478
    %v3480 = vpop.f32.mrb[0].mxu0
    %v3481 = vadd.f32 %v3438, %v3480
    %v3482 = vpop.f32.mrb[0].mxu0
    %v3483 = vadd.f32 %v3440, %v3482
    %3484 = vdwg.mxu0
    %3485 = vmatprep.subr.bf16.mxu0 %v2804
    %3486 = vmatpush1.bf16.msra.mxu0 %v2803
    %3487 = vmatprep.subr.bf16.mxu0 %v2808
    %3488 = vmatpush1.bf16.msra.mxu0 %v2807
    %3489 = vmatprep.subr.bf16.mxu0 %v2812
    %3490 = vmatpush1.bf16.msra.mxu0 %v2811
    %3491 = vmatprep.subr.bf16.mxu0 %v2816
    %3492 = vmatpush1.bf16.msra.mxu0 %v2815
    %3493 = vmatprep.subr.bf16.mxu0 %v2820
    %3494 = vmatpush1.bf16.msra.mxu0 %v2819
    %3495 = vmatprep.subr.bf16.mxu0 %v2824
    %3496 = vmatpush1.bf16.msra.mxu0 %v2823
    %3497 = vmatprep.subr.bf16.mxu0 %v2828
    %3498 = vmatpush1.bf16.msra.mxu0 %v2827
    %3499 = vmatprep.subr.bf16.mxu0 %v2832
    %3500 = vmatpush1.bf16.msra.mxu0 %v2831
    %3501 = vmatprep.subr.bf16.mxu0 %v2836
    %3502 = vmatpush1.bf16.msra.mxu0 %v2835
    %3503 = vmatprep.subr.bf16.mxu0 %v2840
    %3504 = vmatpush1.bf16.msra.mxu0 %v2839
    %3505 = vmatprep.subr.bf16.mxu0 %v2844
    %3506 = vmatpush1.bf16.msra.mxu0 %v2843
    %3507 = vmatprep.subr.bf16.mxu0 %v2848
    %3508 = vmatpush1.bf16.msra.mxu0 %v2847
    %3509 = vmatprep.subr.bf16.mxu0 %v2852
    %3510 = vmatpush1.bf16.msra.mxu0 %v2851
    %3511 = vmatprep.subr.bf16.mxu0 %v2856
    %3512 = vmatpush1.bf16.msra.mxu0 %v2855
    %3513 = vmatprep.subr.bf16.mxu0 %v2860
    %3514 = vmatpush1.bf16.msra.mxu0 %v2859
    %3515 = vmatprep.subr.bf16.mxu0 %v2864
    %3516 = vmatpush1.bf16.msra.mxu0 %v2863
    %3517 = vmatprep.mubr.bf16.mxu0 %v1770
    %3518 = vmatmul.mubr.bf16.gmra.mrb[0].mxu0 %v1769
    %v3519 = vpop.f32.mrb[0].mxu0
    %v3520 = vadd.f32 0.0, %v3519
    %v3521 = vpop.f32.mrb[0].mxu0
    %v3522 = vadd.f32 0.0, %v3521
    %v3523 = vpop.f32.mrb[0].mxu0
    %v3524 = vadd.f32 0.0, %v3523
    %v3525 = vpop.f32.mrb[0].mxu0
    %v3526 = vadd.f32 0.0, %v3525
    %3527 = vdwg.mxu0
    %3528 = vmatprep.subr.bf16.mxu0 %v2868
    %3529 = vmatpush1.bf16.msra.mxu0 %v2867
    %3530 = vmatprep.subr.bf16.mxu0 %v2872
    %3531 = vmatpush1.bf16.msra.mxu0 %v2871
    %3532 = vmatprep.subr.bf16.mxu0 %v2876
    %3533 = vmatpush1.bf16.msra.mxu0 %v2875
    %3534 = vmatprep.subr.bf16.mxu0 %v2880
    %3535 = vmatpush1.bf16.msra.mxu0 %v2879
    %3536 = vmatprep.subr.bf16.mxu0 %v2884
    %3537 = vmatpush1.bf16.msra.mxu0 %v2883
    %3538 = vmatprep.subr.bf16.mxu0 %v2888
    %3539 = vmatpush1.bf16.msra.mxu0 %v2887
    %3540 = vmatprep.subr.bf16.mxu0 %v2892
    %3541 = vmatpush1.bf16.msra.mxu0 %v2891
    %3542 = vmatprep.subr.bf16.mxu0 %v2896
    %3543 = vmatpush1.bf16.msra.mxu0 %v2895
    %3544 = vmatprep.subr.bf16.mxu0 %v2900
    %3545 = vmatpush1.bf16.msra.mxu0 %v2899
    %3546 = vmatprep.subr.bf16.mxu0 %v2904
    %3547 = vmatpush1.bf16.msra.mxu0 %v2903
    %3548 = vmatprep.subr.bf16.mxu0 %v2908
    %3549 = vmatpush1.bf16.msra.mxu0 %v2907
    %3550 = vmatprep.subr.bf16.mxu0 %v2912
    %3551 = vmatpush1.bf16.msra.mxu0 %v2911
    %3552 = vmatprep.subr.bf16.mxu0 %v2916
    %3553 = vmatpush1.bf16.msra.mxu0 %v2915
    %3554 = vmatprep.subr.bf16.mxu0 %v2920
    %3555 = vmatpush1.bf16.msra.mxu0 %v2919
    %3556 = vmatprep.subr.bf16.mxu0 %v2924
    %3557 = vmatpush1.bf16.msra.mxu0 %v2923
    %3558 = vmatprep.subr.bf16.mxu0 %v2928
    %3559 = vmatpush1.bf16.msra.mxu0 %v2927
    %3560 = vmatprep.mubr.bf16.mxu0 %v1772
    %3561 = vmatmul.mubr.bf16.gmra.mrb[0].mxu0 %v1771
    %v3562 = vpop.f32.mrb[0].mxu0
    %v3563 = vadd.f32 %v3520, %v3562
    %v3564 = vpop.f32.mrb[0].mxu0
    %v3565 = vadd.f32 %v3522, %v3564
    %v3566 = vpop.f32.mrb[0].mxu0
    %v3567 = vadd.f32 %v3524, %v3566
    %v3568 = vpop.f32.mrb[0].mxu0
    %v3569 = vadd.f32 %v3526, %v3568
    %3570 = vdwg.mxu0
    %3571 = vmatprep.subr.bf16.mxu0 %v2932
    %3572 = vmatpush1.bf16.msra.mxu0 %v2931
    %3573 = vmatprep.subr.bf16.mxu0 %v2936
    %3574 = vmatpush1.bf16.msra.mxu0 %v2935
    %3575 = vmatprep.subr.bf16.mxu0 %v2940
    %3576 = vmatpush1.bf16.msra.mxu0 %v2939
    %3577 = vmatprep.subr.bf16.mxu0 %v2944
    %3578 = vmatpush1.bf16.msra.mxu0 %v2943
    %3579 = vmatprep.subr.bf16.mxu0 %v2948
    %3580 = vmatpush1.bf16.msra.mxu0 %v2947
    %3581 = vmatprep.subr.bf16.mxu0 %v2952
    %3582 = vmatpush1.bf16.msra.mxu0 %v2951
    %3583 = vmatprep.subr.bf16.mxu0 %v2956
    %3584 = vmatpush1.bf16.msra.mxu0 %v2955
    %3585 = vmatprep.subr.bf16.mxu0 %v2960
    %3586 = vmatpush1.bf16.msra.mxu0 %v2959
    %3587 = vmatprep.subr.bf16.mxu0 %v2964
    %3588 = vmatpush1.bf16.msra.mxu0 %v2963
    %3589 = vmatprep.subr.bf16.mxu0 %v2968
    %3590 = vmatpush1.bf16.msra.mxu0 %v2967
    %3591 = vmatprep.subr.bf16.mxu0 %v2972
    %3592 = vmatpush1.bf16.msra.mxu0 %v2971
    %3593 = vmatprep.subr.bf16.mxu0 %v2976
    %3594 = vmatpush1.bf16.msra.mxu0 %v2975
    %3595 = vmatprep.subr.bf16.mxu0 %v2980
    %3596 = vmatpush1.bf16.msra.mxu0 %v2979
    %3597 = vmatprep.subr.bf16.mxu0 %v2984
    %3598 = vmatpush1.bf16.msra.mxu0 %v2983
    %3599 = vmatprep.subr.bf16.mxu0 %v2988
    %3600 = vmatpush1.bf16.msra.mxu0 %v2987
    %3601 = vmatprep.subr.bf16.mxu0 %v2992
    %3602 = vmatpush1.bf16.msra.mxu0 %v2991
    %3603 = vmatprep.mubr.bf16.mxu0 %v1774
    %3604 = vmatmul.mubr.bf16.gmra.mrb[0].mxu0 %v1773
    %v3605 = vpop.f32.mrb[0].mxu0
    %v3606 = vadd.f32 %v3563, %v3605
    %v3607 = vpop.f32.mrb[0].mxu0
    %v3608 = vadd.f32 %v3565, %v3607
    %v3609 = vpop.f32.mrb[0].mxu0
    %v3610 = vadd.f32 %v3567, %v3609
    %v3611 = vpop.f32.mrb[0].mxu0
    %v3612 = vadd.f32 %v3569, %v3611
    %3613 = vdwg.mxu0
    %3614 = vmatprep.subr.bf16.mxu0 %v2996
    %3615 = vmatpush1.bf16.msra.mxu0 %v2995
    %3616 = vmatprep.subr.bf16.mxu0 %v3000
    %3617 = vmatpush1.bf16.msra.mxu0 %v2999
    %3618 = vmatprep.subr.bf16.mxu0 %v3004
    %3619 = vmatpush1.bf16.msra.mxu0 %v3003
    %3620 = vmatprep.subr.bf16.mxu0 %v3008
    %3621 = vmatpush1.bf16.msra.mxu0 %v3007
    %3622 = vmatprep.subr.bf16.mxu0 %v3012
    %3623 = vmatpush1.bf16.msra.mxu0 %v3011
    %3624 = vmatprep.subr.bf16.mxu0 %v3016
    %3625 = vmatpush1.bf16.msra.mxu0 %v3015
    %3626 = vmatprep.subr.bf16.mxu0 %v3020
    %3627 = vmatpush1.bf16.msra.mxu0 %v3019
    %3628 = vmatprep.subr.bf16.mxu0 %v3024
    %3629 = vmatpush1.bf16.msra.mxu0 %v3023
    %3630 = vmatprep.subr.bf16.mxu0 %v3028
    %3631 = vmatpush1.bf16.msra.mxu0 %v3027
    %3632 = vmatprep.subr.bf16.mxu0 %v3032
    %3633 = vmatpush1.bf16.msra.mxu0 %v3031
    %3634 = vmatprep.subr.bf16.mxu0 %v3036
    %3635 = vmatpush1.bf16.msra.mxu0 %v3035
    %3636 = vmatprep.subr.bf16.mxu0 %v3040
    %3637 = vmatpush1.bf16.msra.mxu0 %v3039
    %3638 = vmatprep.subr.bf16.mxu0 %v3044
    %3639 = vmatpush1.bf16.msra.mxu0 %v3043
    %3640 = vmatprep.subr.bf16.mxu0 %v3048
    %3641 = vmatpush1.bf16.msra.mxu0 %v3047
    %3642 = vmatprep.subr.bf16.mxu0 %v3052
    %3643 = vmatpush1.bf16.msra.mxu0 %v3051
    %3644 = vmatprep.subr.bf16.mxu0 %v3056
    %3645 = vmatpush1.bf16.msra.mxu0 %v3055
    %3646 = vmatprep.mubr.bf16.mxu0 %v1776
    %3647 = vmatmul.mubr.bf16.gmra.mrb[0].mxu0 %v1775
    %v3648 = vpop.f32.mrb[0].mxu0
    %v3649 = vadd.f32 %v3606, %v3648
    %v3650 = vpop.f32.mrb[0].mxu0
    %v3651 = vadd.f32 %v3608, %v3650
    %v3652 = vpop.f32.mrb[0].mxu0
    %v3653 = vadd.f32 %v3610, %v3652
    %v3654 = vpop.f32.mrb[0].mxu0
    %v3655 = vadd.f32 %v3612, %v3654
    %3656 = vdwg.mxu0
    %v3913 = vunpack.c.l.b16 %v1513
    %v3914 = vunpack.c.h.b16 %v1513
    %v3915 = vunpack.c.l.b16 %v1514
    %v3916 = vunpack.c.h.b16 %v1514
    %v3917 = vunpack.c.l.b16 %v1515
    %v3918 = vunpack.c.h.b16 %v1515
    %v3919 = vunpack.c.l.b16 %v1516
    %v3920 = vunpack.c.h.b16 %v1516
    %v3921 = vunpack.c.l.b16 %v1517
    %v3922 = vunpack.c.h.b16 %v1517
    %v3923 = vunpack.c.l.b16 %v1518
    %v3924 = vunpack.c.h.b16 %v1518
    %v3925 = vunpack.c.l.b16 %v1519
    %v3926 = vunpack.c.h.b16 %v1519
    %v3927 = vunpack.c.l.b16 %v1520
    %v3928 = vunpack.c.h.b16 %v1520
    %v3929 = vunpack.c.l.b16 %v1521
    %v3930 = vunpack.c.h.b16 %v1521
    %v3931 = vunpack.c.l.b16 %v1522
    %v3932 = vunpack.c.h.b16 %v1522
    %v3933 = vunpack.c.l.b16 %v1523
    %v3934 = vunpack.c.h.b16 %v1523
    %v3935 = vunpack.c.l.b16 %v1524
    %v3936 = vunpack.c.h.b16 %v1524
    %v3937 = vunpack.c.l.b16 %v1525
    %v3938 = vunpack.c.h.b16 %v1525
    %v3939 = vunpack.c.l.b16 %v1526
    %v3940 = vunpack.c.h.b16 %v1526
    %v3941 = vunpack.c.l.b16 %v1527
    %v3942 = vunpack.c.h.b16 %v1527
    %v3943 = vunpack.c.l.b16 %v1528
    %v3944 = vunpack.c.h.b16 %v1528
    %v3945 = vunpack.c.l.b16 %v1529
    %v3946 = vunpack.c.h.b16 %v1529
    %v3947 = vunpack.c.l.b16 %v1530
    %v3948 = vunpack.c.h.b16 %v1530
    %v3949 = vunpack.c.l.b16 %v1531
    %v3950 = vunpack.c.h.b16 %v1531
    %v3951 = vunpack.c.l.b16 %v1532
    %v3952 = vunpack.c.h.b16 %v1532
    %v3953 = vunpack.c.l.b16 %v1533
    %v3954 = vunpack.c.h.b16 %v1533
    %v3955 = vunpack.c.l.b16 %v1534
    %v3956 = vunpack.c.h.b16 %v1534
    %v3957 = vunpack.c.l.b16 %v1535
    %v3958 = vunpack.c.h.b16 %v1535
    %v3959 = vunpack.c.l.b16 %v1536
    %v3960 = vunpack.c.h.b16 %v1536
    %v3961 = vunpack.c.l.b16 %v1537
    %v3962 = vunpack.c.h.b16 %v1537
    %v3963 = vunpack.c.l.b16 %v1538
    %v3964 = vunpack.c.h.b16 %v1538
    %v3965 = vunpack.c.l.b16 %v1539
    %v3966 = vunpack.c.h.b16 %v1539
    %v3967 = vunpack.c.l.b16 %v1540
    %v3968 = vunpack.c.h.b16 %v1540
    %v3969 = vunpack.c.l.b16 %v1541
    %v3970 = vunpack.c.h.b16 %v1541
    %v3971 = vunpack.c.l.b16 %v1542
    %v3972 = vunpack.c.h.b16 %v1542
    %v3973 = vunpack.c.l.b16 %v1543
    %v3974 = vunpack.c.h.b16 %v1543
    %v3975 = vunpack.c.l.b16 %v1544
    %v3976 = vunpack.c.h.b16 %v1544
    %v3977 = vunpack.c.l.b16 %v1545
    %v3978 = vunpack.c.h.b16 %v1545
    %v3979 = vunpack.c.l.b16 %v1546
    %v3980 = vunpack.c.h.b16 %v1546
    %v3981 = vunpack.c.l.b16 %v1547
    %v3982 = vunpack.c.h.b16 %v1547
    %v3983 = vunpack.c.l.b16 %v1548
    %v3984 = vunpack.c.h.b16 %v1548
    %v3985 = vunpack.c.l.b16 %v1549
    %v3986 = vunpack.c.h.b16 %v1549
    %v3987 = vunpack.c.l.b16 %v1550
    %v3988 = vunpack.c.h.b16 %v1550
    %v3989 = vunpack.c.l.b16 %v1551
    %v3990 = vunpack.c.h.b16 %v1551
    %v3991 = vunpack.c.l.b16 %v1552
    %v3992 = vunpack.c.h.b16 %v1552
    %v3993 = vunpack.c.l.b16 %v1553
    %v3994 = vunpack.c.h.b16 %v1553
    %v3995 = vunpack.c.l.b16 %v1554
    %v3996 = vunpack.c.h.b16 %v1554
    %v3997 = vunpack.c.l.b16 %v1555
    %v3998 = vunpack.c.h.b16 %v1555
    %v3999 = vunpack.c.l.b16 %v1556
    %v4000 = vunpack.c.h.b16 %v1556
    %v4001 = vunpack.c.l.b16 %v1557
    %v4002 = vunpack.c.h.b16 %v1557
    %v4003 = vunpack.c.l.b16 %v1558
    %v4004 = vunpack.c.h.b16 %v1558
    %v4005 = vunpack.c.l.b16 %v1559
    %v4006 = vunpack.c.h.b16 %v1559
    %v4007 = vunpack.c.l.b16 %v1560
    %v4008 = vunpack.c.h.b16 %v1560
    %v4009 = vunpack.c.l.b16 %v1561
    %v4010 = vunpack.c.h.b16 %v1561
    %v4011 = vunpack.c.l.b16 %v1562
    %v4012 = vunpack.c.h.b16 %v1562
    %v4013 = vunpack.c.l.b16 %v1563
    %v4014 = vunpack.c.h.b16 %v1563
    %v4015 = vunpack.c.l.b16 %v1564
    %v4016 = vunpack.c.h.b16 %v1564
    %v4017 = vunpack.c.l.b16 %v1565
    %v4018 = vunpack.c.h.b16 %v1565
    %v4019 = vunpack.c.l.b16 %v1566
    %v4020 = vunpack.c.h.b16 %v1566
    %v4021 = vunpack.c.l.b16 %v1567
    %v4022 = vunpack.c.h.b16 %v1567
    %v4023 = vunpack.c.l.b16 %v1568
    %v4024 = vunpack.c.h.b16 %v1568
    %v4025 = vunpack.c.l.b16 %v1569
    %v4026 = vunpack.c.h.b16 %v1569
    %v4027 = vunpack.c.l.b16 %v1570
    %v4028 = vunpack.c.h.b16 %v1570
    %v4029 = vunpack.c.l.b16 %v1571
    %v4030 = vunpack.c.h.b16 %v1571
    %v4031 = vunpack.c.l.b16 %v1572
    %v4032 = vunpack.c.h.b16 %v1572
    %v4033 = vunpack.c.l.b16 %v1573
    %v4034 = vunpack.c.h.b16 %v1573
    %v4035 = vunpack.c.l.b16 %v1574
    %v4036 = vunpack.c.h.b16 %v1574
    %v4037 = vunpack.c.l.b16 %v1575
    %v4038 = vunpack.c.h.b16 %v1575
    %v4039 = vunpack.c.l.b16 %v1576
    %v4040 = vunpack.c.h.b16 %v1576
    %v4041 = vunpack.c.l.b16 %v1577
    %v4042 = vunpack.c.h.b16 %v1577
    %v4043 = vunpack.c.l.b16 %v1578
    %v4044 = vunpack.c.h.b16 %v1578
    %v4045 = vunpack.c.l.b16 %v1579
    %v4046 = vunpack.c.h.b16 %v1579
    %v4047 = vunpack.c.l.b16 %v1580
    %v4048 = vunpack.c.h.b16 %v1580
    %v4049 = vunpack.c.l.b16 %v1581
    %v4050 = vunpack.c.h.b16 %v1581
    %v4051 = vunpack.c.l.b16 %v1582
    %v4052 = vunpack.c.h.b16 %v1582
    %v4053 = vunpack.c.l.b16 %v1583
    %v4054 = vunpack.c.h.b16 %v1583
    %v4055 = vunpack.c.l.b16 %v1584
    %v4056 = vunpack.c.h.b16 %v1584
    %v4057 = vunpack.c.l.b16 %v1585
    %v4058 = vunpack.c.h.b16 %v1585
    %v4059 = vunpack.c.l.b16 %v1586
    %v4060 = vunpack.c.h.b16 %v1586
    %v4061 = vunpack.c.l.b16 %v1587
    %v4062 = vunpack.c.h.b16 %v1587
    %v4063 = vunpack.c.l.b16 %v1588
    %v4064 = vunpack.c.h.b16 %v1588
    %v4065 = vunpack.c.l.b16 %v1589
    %v4066 = vunpack.c.h.b16 %v1589
    %v4067 = vunpack.c.l.b16 %v1590
    %v4068 = vunpack.c.h.b16 %v1590
    %v4069 = vunpack.c.l.b16 %v1591
    %v4070 = vunpack.c.h.b16 %v1591
    %v4071 = vunpack.c.l.b16 %v1592
    %v4072 = vunpack.c.h.b16 %v1592
    %v4073 = vunpack.c.l.b16 %v1593
    %v4074 = vunpack.c.h.b16 %v1593
    %v4075 = vunpack.c.l.b16 %v1594
    %v4076 = vunpack.c.h.b16 %v1594
    %v4077 = vunpack.c.l.b16 %v1595
    %v4078 = vunpack.c.h.b16 %v1595
    %v4079 = vunpack.c.l.b16 %v1596
    %v4080 = vunpack.c.h.b16 %v1596
    %v4081 = vunpack.c.l.b16 %v1597
    %v4082 = vunpack.c.h.b16 %v1597
    %v4083 = vunpack.c.l.b16 %v1598
    %v4084 = vunpack.c.h.b16 %v1598
    %v4085 = vunpack.c.l.b16 %v1599
    %v4086 = vunpack.c.h.b16 %v1599
    %v4087 = vunpack.c.l.b16 %v1600
    %v4088 = vunpack.c.h.b16 %v1600
    %v4089 = vunpack.c.l.b16 %v1601
    %v4090 = vunpack.c.h.b16 %v1601
    %v4091 = vunpack.c.l.b16 %v1602
    %v4092 = vunpack.c.h.b16 %v1602
    %v4093 = vunpack.c.l.b16 %v1603
    %v4094 = vunpack.c.h.b16 %v1603
    %v4095 = vunpack.c.l.b16 %v1604
    %v4096 = vunpack.c.h.b16 %v1604
    %v4097 = vunpack.c.l.b16 %v1605
    %v4098 = vunpack.c.h.b16 %v1605
    %v4099 = vunpack.c.l.b16 %v1606
    %v4100 = vunpack.c.h.b16 %v1606
    %v4101 = vunpack.c.l.b16 %v1607
    %v4102 = vunpack.c.h.b16 %v1607
    %v4103 = vunpack.c.l.b16 %v1608
    %v4104 = vunpack.c.h.b16 %v1608
    %v4105 = vunpack.c.l.b16 %v1609
    %v4106 = vunpack.c.h.b16 %v1609
    %v4107 = vunpack.c.l.b16 %v1610
    %v4108 = vunpack.c.h.b16 %v1610
    %v4109 = vunpack.c.l.b16 %v1611
    %v4110 = vunpack.c.h.b16 %v1611
    %v4111 = vunpack.c.l.b16 %v1612
    %v4112 = vunpack.c.h.b16 %v1612
    %v4113 = vunpack.c.l.b16 %v1613
    %v4114 = vunpack.c.h.b16 %v1613
    %v4115 = vunpack.c.l.b16 %v1614
    %v4116 = vunpack.c.h.b16 %v1614
    %v4117 = vunpack.c.l.b16 %v1615
    %v4118 = vunpack.c.h.b16 %v1615
    %v4119 = vunpack.c.l.b16 %v1616
    %v4120 = vunpack.c.h.b16 %v1616
    %v4121 = vunpack.c.l.b16 %v1617
    %v4122 = vunpack.c.h.b16 %v1617
    %v4123 = vunpack.c.l.b16 %v1618
    %v4124 = vunpack.c.h.b16 %v1618
    %v4125 = vunpack.c.l.b16 %v1619
    %v4126 = vunpack.c.h.b16 %v1619
    %v4127 = vunpack.c.l.b16 %v1620
    %v4128 = vunpack.c.h.b16 %v1620
    %v4129 = vunpack.c.l.b16 %v1621
    %v4130 = vunpack.c.h.b16 %v1621
    %v4131 = vunpack.c.l.b16 %v1622
    %v4132 = vunpack.c.h.b16 %v1622
    %v4133 = vunpack.c.l.b16 %v1623
    %v4134 = vunpack.c.h.b16 %v1623
    %v4135 = vunpack.c.l.b16 %v1624
    %v4136 = vunpack.c.h.b16 %v1624
    %v4137 = vunpack.c.l.b16 %v1625
    %v4138 = vunpack.c.h.b16 %v1625
    %v4139 = vunpack.c.l.b16 %v1626
    %v4140 = vunpack.c.h.b16 %v1626
    %v4141 = vunpack.c.l.b16 %v1627
    %v4142 = vunpack.c.h.b16 %v1627
    %v4143 = vunpack.c.l.b16 %v1628
    %v4144 = vunpack.c.h.b16 %v1628
    %v4145 = vunpack.c.l.b16 %v1629
    %v4146 = vunpack.c.h.b16 %v1629
    %v4147 = vunpack.c.l.b16 %v1630
    %v4148 = vunpack.c.h.b16 %v1630
    %v4149 = vunpack.c.l.b16 %v1631
    %v4150 = vunpack.c.h.b16 %v1631
    %v4151 = vunpack.c.l.b16 %v1632
    %v4152 = vunpack.c.h.b16 %v1632
    %v4153 = vunpack.c.l.b16 %v1633
    %v4154 = vunpack.c.h.b16 %v1633
    %v4155 = vunpack.c.l.b16 %v1634
    %v4156 = vunpack.c.h.b16 %v1634
    %v4157 = vunpack.c.l.b16 %v1635
    %v4158 = vunpack.c.h.b16 %v1635
    %v4159 = vunpack.c.l.b16 %v1636
    %v4160 = vunpack.c.h.b16 %v1636
    %v4161 = vunpack.c.l.b16 %v1637
    %v4162 = vunpack.c.h.b16 %v1637
    %v4163 = vunpack.c.l.b16 %v1638
    %v4164 = vunpack.c.h.b16 %v1638
    %v4165 = vunpack.c.l.b16 %v1639
    %v4166 = vunpack.c.h.b16 %v1639
    %v4167 = vunpack.c.l.b16 %v1640
    %v4168 = vunpack.c.h.b16 %v1640
    %v4169 = vunpack.c.l.b16 %v1641
    %v4170 = vunpack.c.h.b16 %v1641
    %v4171 = vunpack.c.l.b16 %v1642
    %v4172 = vunpack.c.h.b16 %v1642
    %v4173 = vunpack.c.l.b16 %v1643
    %v4174 = vunpack.c.h.b16 %v1643
    %v4175 = vunpack.c.l.b16 %v1644
    %v4176 = vunpack.c.h.b16 %v1644
    %v4177 = vunpack.c.l.b16 %v1645
    %v4178 = vunpack.c.h.b16 %v1645
    %v4179 = vunpack.c.l.b16 %v1646
    %v4180 = vunpack.c.h.b16 %v1646
    %v4181 = vunpack.c.l.b16 %v1647
    %v4182 = vunpack.c.h.b16 %v1647
    %v4183 = vunpack.c.l.b16 %v1648
    %v4184 = vunpack.c.h.b16 %v1648
    %v4185 = vunpack.c.l.b16 %v1649
    %v4186 = vunpack.c.h.b16 %v1649
    %v4187 = vunpack.c.l.b16 %v1650
    %v4188 = vunpack.c.h.b16 %v1650
    %v4189 = vunpack.c.l.b16 %v1651
    %v4190 = vunpack.c.h.b16 %v1651
    %v4191 = vunpack.c.l.b16 %v1652
    %v4192 = vunpack.c.h.b16 %v1652
    %v4193 = vunpack.c.l.b16 %v1653
    %v4194 = vunpack.c.h.b16 %v1653
    %v4195 = vunpack.c.l.b16 %v1654
    %v4196 = vunpack.c.h.b16 %v1654
    %v4197 = vunpack.c.l.b16 %v1655
    %v4198 = vunpack.c.h.b16 %v1655
    %v4199 = vunpack.c.l.b16 %v1656
    %v4200 = vunpack.c.h.b16 %v1656
    %v4201 = vunpack.c.l.b16 %v1657
    %v4202 = vunpack.c.h.b16 %v1657
    %v4203 = vunpack.c.l.b16 %v1658
    %v4204 = vunpack.c.h.b16 %v1658
    %v4205 = vunpack.c.l.b16 %v1659
    %v4206 = vunpack.c.h.b16 %v1659
    %v4207 = vunpack.c.l.b16 %v1660
    %v4208 = vunpack.c.h.b16 %v1660
    %v4209 = vunpack.c.l.b16 %v1661
    %v4210 = vunpack.c.h.b16 %v1661
    %v4211 = vunpack.c.l.b16 %v1662
    %v4212 = vunpack.c.h.b16 %v1662
    %v4213 = vunpack.c.l.b16 %v1663
    %v4214 = vunpack.c.h.b16 %v1663
    %v4215 = vunpack.c.l.b16 %v1664
    %v4216 = vunpack.c.h.b16 %v1664
    %v4217 = vunpack.c.l.b16 %v1665
    %v4218 = vunpack.c.h.b16 %v1665
    %v4219 = vunpack.c.l.b16 %v1666
    %v4220 = vunpack.c.h.b16 %v1666
    %v4221 = vunpack.c.l.b16 %v1667
    %v4222 = vunpack.c.h.b16 %v1667
    %v4223 = vunpack.c.l.b16 %v1668
    %v4224 = vunpack.c.h.b16 %v1668
    %v4225 = vunpack.c.l.b16 %v1669
    %v4226 = vunpack.c.h.b16 %v1669
    %v4227 = vunpack.c.l.b16 %v1670
    %v4228 = vunpack.c.h.b16 %v1670
    %v4229 = vunpack.c.l.b16 %v1671
    %v4230 = vunpack.c.h.b16 %v1671
    %v4231 = vunpack.c.l.b16 %v1672
    %v4232 = vunpack.c.h.b16 %v1672
    %v4233 = vunpack.c.l.b16 %v1673
    %v4234 = vunpack.c.h.b16 %v1673
    %v4235 = vunpack.c.l.b16 %v1674
    %v4236 = vunpack.c.h.b16 %v1674
    %v4237 = vunpack.c.l.b16 %v1675
    %v4238 = vunpack.c.h.b16 %v1675
    %v4239 = vunpack.c.l.b16 %v1676
    %v4240 = vunpack.c.h.b16 %v1676
    %v4241 = vunpack.c.l.b16 %v1677
    %v4242 = vunpack.c.h.b16 %v1677
    %v4243 = vunpack.c.l.b16 %v1678
    %v4244 = vunpack.c.h.b16 %v1678
    %v4245 = vunpack.c.l.b16 %v1679
    %v4246 = vunpack.c.h.b16 %v1679
    %v4247 = vunpack.c.l.b16 %v1680
    %v4248 = vunpack.c.h.b16 %v1680
    %v4249 = vunpack.c.l.b16 %v1681
    %v4250 = vunpack.c.h.b16 %v1681
    %v4251 = vunpack.c.l.b16 %v1682
    %v4252 = vunpack.c.h.b16 %v1682
    %v4253 = vunpack.c.l.b16 %v1683
    %v4254 = vunpack.c.h.b16 %v1683
    %v4255 = vunpack.c.l.b16 %v1684
    %v4256 = vunpack.c.h.b16 %v1684
    %v4257 = vunpack.c.l.b16 %v1685
    %v4258 = vunpack.c.h.b16 %v1685
    %v4259 = vunpack.c.l.b16 %v1686
    %v4260 = vunpack.c.h.b16 %v1686
    %v4261 = vunpack.c.l.b16 %v1687
    %v4262 = vunpack.c.h.b16 %v1687
    %v4263 = vunpack.c.l.b16 %v1688
    %v4264 = vunpack.c.h.b16 %v1688
    %v4265 = vunpack.c.l.b16 %v1689
    %v4266 = vunpack.c.h.b16 %v1689
    %v4267 = vunpack.c.l.b16 %v1690
    %v4268 = vunpack.c.h.b16 %v1690
    %v4269 = vunpack.c.l.b16 %v1691
    %v4270 = vunpack.c.h.b16 %v1691
    %v4271 = vunpack.c.l.b16 %v1692
    %v4272 = vunpack.c.h.b16 %v1692
    %v4273 = vunpack.c.l.b16 %v1693
    %v4274 = vunpack.c.h.b16 %v1693
    %v4275 = vunpack.c.l.b16 %v1694
    %v4276 = vunpack.c.h.b16 %v1694
    %v4277 = vunpack.c.l.b16 %v1695
    %v4278 = vunpack.c.h.b16 %v1695
    %v4279 = vunpack.c.l.b16 %v1696
    %v4280 = vunpack.c.h.b16 %v1696
    %v4281 = vunpack.c.l.b16 %v1697
    %v4282 = vunpack.c.h.b16 %v1697
    %v4283 = vunpack.c.l.b16 %v1698
    %v4284 = vunpack.c.h.b16 %v1698
    %v4285 = vunpack.c.l.b16 %v1699
    %v4286 = vunpack.c.h.b16 %v1699
    %v4287 = vunpack.c.l.b16 %v1700
    %v4288 = vunpack.c.h.b16 %v1700
    %v4289 = vunpack.c.l.b16 %v1701
    %v4290 = vunpack.c.h.b16 %v1701
    %v4291 = vunpack.c.l.b16 %v1702
    %v4292 = vunpack.c.h.b16 %v1702
    %v4293 = vunpack.c.l.b16 %v1703
    %v4294 = vunpack.c.h.b16 %v1703
    %v4295 = vunpack.c.l.b16 %v1704
    %v4296 = vunpack.c.h.b16 %v1704
    %v4297 = vunpack.c.l.b16 %v1705
    %v4298 = vunpack.c.h.b16 %v1705
    %v4299 = vunpack.c.l.b16 %v1706
    %v4300 = vunpack.c.h.b16 %v1706
    %v4301 = vunpack.c.l.b16 %v1707
    %v4302 = vunpack.c.h.b16 %v1707
    %v4303 = vunpack.c.l.b16 %v1708
    %v4304 = vunpack.c.h.b16 %v1708
    %v4305 = vunpack.c.l.b16 %v1709
    %v4306 = vunpack.c.h.b16 %v1709
    %v4307 = vunpack.c.l.b16 %v1710
    %v4308 = vunpack.c.h.b16 %v1710
    %v4309 = vunpack.c.l.b16 %v1711
    %v4310 = vunpack.c.h.b16 %v1711
    %v4311 = vunpack.c.l.b16 %v1712
    %v4312 = vunpack.c.h.b16 %v1712
    %v4313 = vunpack.c.l.b16 %v1713
    %v4314 = vunpack.c.h.b16 %v1713
    %v4315 = vunpack.c.l.b16 %v1714
    %v4316 = vunpack.c.h.b16 %v1714
    %v4317 = vunpack.c.l.b16 %v1715
    %v4318 = vunpack.c.h.b16 %v1715
    %v4319 = vunpack.c.l.b16 %v1716
    %v4320 = vunpack.c.h.b16 %v1716
    %v4321 = vunpack.c.l.b16 %v1717
    %v4322 = vunpack.c.h.b16 %v1717
    %v4323 = vunpack.c.l.b16 %v1718
    %v4324 = vunpack.c.h.b16 %v1718
    %v4325 = vunpack.c.l.b16 %v1719
    %v4326 = vunpack.c.h.b16 %v1719
    %v4327 = vunpack.c.l.b16 %v1720
    %v4328 = vunpack.c.h.b16 %v1720
    %v4329 = vunpack.c.l.b16 %v1721
    %v4330 = vunpack.c.h.b16 %v1721
    %v4331 = vunpack.c.l.b16 %v1722
    %v4332 = vunpack.c.h.b16 %v1722
    %v4333 = vunpack.c.l.b16 %v1723
    %v4334 = vunpack.c.h.b16 %v1723
    %v4335 = vunpack.c.l.b16 %v1724
    %v4336 = vunpack.c.h.b16 %v1724
    %v4337 = vunpack.c.l.b16 %v1725
    %v4338 = vunpack.c.h.b16 %v1725
    %v4339 = vunpack.c.l.b16 %v1726
    %v4340 = vunpack.c.h.b16 %v1726
    %v4341 = vunpack.c.l.b16 %v1727
    %v4342 = vunpack.c.h.b16 %v1727
    %v4343 = vunpack.c.l.b16 %v1728
    %v4344 = vunpack.c.h.b16 %v1728
    %v4345 = vunpack.c.l.b16 %v1729
    %v4346 = vunpack.c.h.b16 %v1729
    %v4347 = vunpack.c.l.b16 %v1730
    %v4348 = vunpack.c.h.b16 %v1730
    %v4349 = vunpack.c.l.b16 %v1731
    %v4350 = vunpack.c.h.b16 %v1731
    %v4351 = vunpack.c.l.b16 %v1732
    %v4352 = vunpack.c.h.b16 %v1732
    %v4353 = vunpack.c.l.b16 %v1733
    %v4354 = vunpack.c.h.b16 %v1733
    %v4355 = vunpack.c.l.b16 %v1734
    %v4356 = vunpack.c.h.b16 %v1734
    %v4357 = vunpack.c.l.b16 %v1735
    %v4358 = vunpack.c.h.b16 %v1735
    %v4359 = vunpack.c.l.b16 %v1736
    %v4360 = vunpack.c.h.b16 %v1736
    %v4361 = vunpack.c.l.b16 %v1737
    %v4362 = vunpack.c.h.b16 %v1737
    %v4363 = vunpack.c.l.b16 %v1738
    %v4364 = vunpack.c.h.b16 %v1738
    %v4365 = vunpack.c.l.b16 %v1739
    %v4366 = vunpack.c.h.b16 %v1739
    %v4367 = vunpack.c.l.b16 %v1740
    %v4368 = vunpack.c.h.b16 %v1740
    %v4369 = vunpack.c.l.b16 %v1741
    %v4370 = vunpack.c.h.b16 %v1741
    %v4371 = vunpack.c.l.b16 %v1742
    %v4372 = vunpack.c.h.b16 %v1742
    %v4373 = vunpack.c.l.b16 %v1743
    %v4374 = vunpack.c.h.b16 %v1743
    %v4375 = vunpack.c.l.b16 %v1744
    %v4376 = vunpack.c.h.b16 %v1744
    %v4377 = vunpack.c.l.b16 %v1745
    %v4378 = vunpack.c.h.b16 %v1745
    %v4379 = vunpack.c.l.b16 %v1746
    %v4380 = vunpack.c.h.b16 %v1746
    %v4381 = vunpack.c.l.b16 %v1747
    %v4382 = vunpack.c.h.b16 %v1747
    %v4383 = vunpack.c.l.b16 %v1748
    %v4384 = vunpack.c.h.b16 %v1748
    %v4385 = vunpack.c.l.b16 %v1749
    %v4386 = vunpack.c.h.b16 %v1749
    %v4387 = vunpack.c.l.b16 %v1750
    %v4388 = vunpack.c.h.b16 %v1750
    %v4389 = vunpack.c.l.b16 %v1751
    %v4390 = vunpack.c.h.b16 %v1751
    %v4391 = vunpack.c.l.b16 %v1752
    %v4392 = vunpack.c.h.b16 %v1752
    %v4393 = vunpack.c.l.b16 %v1753
    %v4394 = vunpack.c.h.b16 %v1753
    %v4395 = vunpack.c.l.b16 %v1754
    %v4396 = vunpack.c.h.b16 %v1754
    %v4397 = vunpack.c.l.b16 %v1755
    %v4398 = vunpack.c.h.b16 %v1755
    %v4399 = vunpack.c.l.b16 %v1756
    %v4400 = vunpack.c.h.b16 %v1756
    %v4401 = vunpack.c.l.b16 %v1757
    %v4402 = vunpack.c.h.b16 %v1757
    %v4403 = vunpack.c.l.b16 %v1758
    %v4404 = vunpack.c.h.b16 %v1758
    %v4405 = vunpack.c.l.b16 %v1759
    %v4406 = vunpack.c.h.b16 %v1759
    %v4407 = vunpack.c.l.b16 %v1760
    %v4408 = vunpack.c.h.b16 %v1760
    %v4409 = vunpack.c.l.b16 %v1761
    %v4410 = vunpack.c.h.b16 %v1761
    %v4411 = vunpack.c.l.b16 %v1762
    %v4412 = vunpack.c.h.b16 %v1762
    %v4413 = vunpack.c.l.b16 %v1763
    %v4414 = vunpack.c.h.b16 %v1763
    %v4415 = vunpack.c.l.b16 %v1764
    %v4416 = vunpack.c.h.b16 %v1764
    %v4417 = vunpack.c.l.b16 %v1765
    %v4418 = vunpack.c.h.b16 %v1765
    %v4419 = vunpack.c.l.b16 %v1766
    %v4420 = vunpack.c.h.b16 %v1766
    %v4421 = vunpack.c.l.b16 %v1767
    %v4422 = vunpack.c.h.b16 %v1767
    %v4423 = vunpack.c.l.b16 %v1768
    %v4424 = vunpack.c.h.b16 %v1768
    %v4425 = vpack.c.b16 %v3917, %v3913
    %v4426 = vpack.c.b16 %v3918, %v3914
    %v4427 = vpack.c.b16 %v3919, %v3915
    %v4428 = vpack.c.b16 %v3920, %v3916
    %v4429 = vpack.c.b16 %v3925, %v3921
    %v4430 = vpack.c.b16 %v3926, %v3922
    %v4431 = vpack.c.b16 %v3927, %v3923
    %v4432 = vpack.c.b16 %v3928, %v3924
    %v4433 = vpack.c.b16 %v3933, %v3929
    %v4434 = vpack.c.b16 %v3934, %v3930
    %v4435 = vpack.c.b16 %v3935, %v3931
    %v4436 = vpack.c.b16 %v3936, %v3932
    %v4437 = vpack.c.b16 %v3941, %v3937
    %v4438 = vpack.c.b16 %v3942, %v3938
    %v4439 = vpack.c.b16 %v3943, %v3939
    %v4440 = vpack.c.b16 %v3944, %v3940
    %v4441 = vpack.c.b16 %v3949, %v3945
    %v4442 = vpack.c.b16 %v3950, %v3946
    %v4443 = vpack.c.b16 %v3951, %v3947
    %v4444 = vpack.c.b16 %v3952, %v3948
    %v4445 = vpack.c.b16 %v3957, %v3953
    %v4446 = vpack.c.b16 %v3958, %v3954
    %v4447 = vpack.c.b16 %v3959, %v3955
    %v4448 = vpack.c.b16 %v3960, %v3956
    %v4449 = vpack.c.b16 %v3965, %v3961
    %v4450 = vpack.c.b16 %v3966, %v3962
    %v4451 = vpack.c.b16 %v3967, %v3963
    %v4452 = vpack.c.b16 %v3968, %v3964
    %v4453 = vpack.c.b16 %v3973, %v3969
    %v4454 = vpack.c.b16 %v3974, %v3970
    %v4455 = vpack.c.b16 %v3975, %v3971
    %v4456 = vpack.c.b16 %v3976, %v3972
    %v4457 = vpack.c.b16 %v3981, %v3977
    %v4458 = vpack.c.b16 %v3982, %v3978
    %v4459 = vpack.c.b16 %v3983, %v3979
    %v4460 = vpack.c.b16 %v3984, %v3980
    %v4461 = vpack.c.b16 %v3989, %v3985
    %v4462 = vpack.c.b16 %v3990, %v3986
    %v4463 = vpack.c.b16 %v3991, %v3987
    %v4464 = vpack.c.b16 %v3992, %v3988
    %v4465 = vpack.c.b16 %v3997, %v3993
    %v4466 = vpack.c.b16 %v3998, %v3994
    %v4467 = vpack.c.b16 %v3999, %v3995
    %v4468 = vpack.c.b16 %v4000, %v3996
    %v4469 = vpack.c.b16 %v4005, %v4001
    %v4470 = vpack.c.b16 %v4006, %v4002
    %v4471 = vpack.c.b16 %v4007, %v4003
    %v4472 = vpack.c.b16 %v4008, %v4004
    %v4473 = vpack.c.b16 %v4013, %v4009
    %v4474 = vpack.c.b16 %v4014, %v4010
    %v4475 = vpack.c.b16 %v4015, %v4011
    %v4476 = vpack.c.b16 %v4016, %v4012
    %v4477 = vpack.c.b16 %v4021, %v4017
    %v4478 = vpack.c.b16 %v4022, %v4018
    %v4479 = vpack.c.b16 %v4023, %v4019
    %v4480 = vpack.c.b16 %v4024, %v4020
    %v4481 = vpack.c.b16 %v4029, %v4025
    %v4482 = vpack.c.b16 %v4030, %v4026
    %v4483 = vpack.c.b16 %v4031, %v4027
    %v4484 = vpack.c.b16 %v4032, %v4028
    %v4485 = vpack.c.b16 %v4037, %v4033
    %v4486 = vpack.c.b16 %v4038, %v4034
    %v4487 = vpack.c.b16 %v4039, %v4035
    %v4488 = vpack.c.b16 %v4040, %v4036
    %v4489 = vpack.c.b16 %v4045, %v4041
    %v4490 = vpack.c.b16 %v4046, %v4042
    %v4491 = vpack.c.b16 %v4047, %v4043
    %v4492 = vpack.c.b16 %v4048, %v4044
    %v4493 = vpack.c.b16 %v4053, %v4049
    %v4494 = vpack.c.b16 %v4054, %v4050
    %v4495 = vpack.c.b16 %v4055, %v4051
    %v4496 = vpack.c.b16 %v4056, %v4052
    %v4497 = vpack.c.b16 %v4061, %v4057
    %v4498 = vpack.c.b16 %v4062, %v4058
    %v4499 = vpack.c.b16 %v4063, %v4059
    %v4500 = vpack.c.b16 %v4064, %v4060
    %v4501 = vpack.c.b16 %v4069, %v4065
    %v4502 = vpack.c.b16 %v4070, %v4066
    %v4503 = vpack.c.b16 %v4071, %v4067
    %v4504 = vpack.c.b16 %v4072, %v4068
    %v4505 = vpack.c.b16 %v4077, %v4073
    %v4506 = vpack.c.b16 %v4078, %v4074
    %v4507 = vpack.c.b16 %v4079, %v4075
    %v4508 = vpack.c.b16 %v4080, %v4076
    %v4509 = vpack.c.b16 %v4085, %v4081
    %v4510 = vpack.c.b16 %v4086, %v4082
    %v4511 = vpack.c.b16 %v4087, %v4083
    %v4512 = vpack.c.b16 %v4088, %v4084
    %v4513 = vpack.c.b16 %v4093, %v4089
    %v4514 = vpack.c.b16 %v4094, %v4090
    %v4515 = vpack.c.b16 %v4095, %v4091
    %v4516 = vpack.c.b16 %v4096, %v4092
    %v4517 = vpack.c.b16 %v4101, %v4097
    %v4518 = vpack.c.b16 %v4102, %v4098
    %v4519 = vpack.c.b16 %v4103, %v4099
    %v4520 = vpack.c.b16 %v4104, %v4100
    %v4521 = vpack.c.b16 %v4109, %v4105
    %v4522 = vpack.c.b16 %v4110, %v4106
    %v4523 = vpack.c.b16 %v4111, %v4107
    %v4524 = vpack.c.b16 %v4112, %v4108
    %v4525 = vpack.c.b16 %v4117, %v4113
    %v4526 = vpack.c.b16 %v4118, %v4114
    %v4527 = vpack.c.b16 %v4119, %v4115
    %v4528 = vpack.c.b16 %v4120, %v4116
    %v4529 = vpack.c.b16 %v4125, %v4121
    %v4530 = vpack.c.b16 %v4126, %v4122
    %v4531 = vpack.c.b16 %v4127, %v4123
    %v4532 = vpack.c.b16 %v4128, %v4124
    %v4533 = vpack.c.b16 %v4133, %v4129
    %v4534 = vpack.c.b16 %v4134, %v4130
    %v4535 = vpack.c.b16 %v4135, %v4131
    %v4536 = vpack.c.b16 %v4136, %v4132
    %v4537 = vpack.c.b16 %v4141, %v4137
    %v4538 = vpack.c.b16 %v4142, %v4138
    %v4539 = vpack.c.b16 %v4143, %v4139
    %v4540 = vpack.c.b16 %v4144, %v4140
    %v4541 = vpack.c.b16 %v4149, %v4145
    %v4542 = vpack.c.b16 %v4150, %v4146
    %v4543 = vpack.c.b16 %v4151, %v4147
    %v4544 = vpack.c.b16 %v4152, %v4148
    %v4545 = vpack.c.b16 %v4157, %v4153
    %v4546 = vpack.c.b16 %v4158, %v4154
    %v4547 = vpack.c.b16 %v4159, %v4155
    %v4548 = vpack.c.b16 %v4160, %v4156
    %v4549 = vpack.c.b16 %v4165, %v4161
    %v4550 = vpack.c.b16 %v4166, %v4162
    %v4551 = vpack.c.b16 %v4167, %v4163
    %v4552 = vpack.c.b16 %v4168, %v4164
    %v4553 = vpack.c.b16 %v4173, %v4169
    %v4554 = vpack.c.b16 %v4174, %v4170
    %v4555 = vpack.c.b16 %v4175, %v4171
    %v4556 = vpack.c.b16 %v4176, %v4172
    %v4557 = vpack.c.b16 %v4181, %v4177
    %v4558 = vpack.c.b16 %v4182, %v4178
    %v4559 = vpack.c.b16 %v4183, %v4179
    %v4560 = vpack.c.b16 %v4184, %v4180
    %v4561 = vpack.c.b16 %v4189, %v4185
    %v4562 = vpack.c.b16 %v4190, %v4186
    %v4563 = vpack.c.b16 %v4191, %v4187
    %v4564 = vpack.c.b16 %v4192, %v4188
    %v4565 = vpack.c.b16 %v4197, %v4193
    %v4566 = vpack.c.b16 %v4198, %v4194
    %v4567 = vpack.c.b16 %v4199, %v4195
    %v4568 = vpack.c.b16 %v4200, %v4196
    %v4569 = vpack.c.b16 %v4205, %v4201
    %v4570 = vpack.c.b16 %v4206, %v4202
    %v4571 = vpack.c.b16 %v4207, %v4203
    %v4572 = vpack.c.b16 %v4208, %v4204
    %v4573 = vpack.c.b16 %v4213, %v4209
    %v4574 = vpack.c.b16 %v4214, %v4210
    %v4575 = vpack.c.b16 %v4215, %v4211
    %v4576 = vpack.c.b16 %v4216, %v4212
    %v4577 = vpack.c.b16 %v4221, %v4217
    %v4578 = vpack.c.b16 %v4222, %v4218
    %v4579 = vpack.c.b16 %v4223, %v4219
    %v4580 = vpack.c.b16 %v4224, %v4220
    %v4581 = vpack.c.b16 %v4229, %v4225
    %v4582 = vpack.c.b16 %v4230, %v4226
    %v4583 = vpack.c.b16 %v4231, %v4227
    %v4584 = vpack.c.b16 %v4232, %v4228
    %v4585 = vpack.c.b16 %v4237, %v4233
    %v4586 = vpack.c.b16 %v4238, %v4234
    %v4587 = vpack.c.b16 %v4239, %v4235
    %v4588 = vpack.c.b16 %v4240, %v4236
    %v4589 = vpack.c.b16 %v4245, %v4241
    %v4590 = vpack.c.b16 %v4246, %v4242
    %v4591 = vpack.c.b16 %v4247, %v4243
    %v4592 = vpack.c.b16 %v4248, %v4244
    %v4593 = vpack.c.b16 %v4253, %v4249
    %v4594 = vpack.c.b16 %v4254, %v4250
    %v4595 = vpack.c.b16 %v4255, %v4251
    %v4596 = vpack.c.b16 %v4256, %v4252
    %v4597 = vpack.c.b16 %v4261, %v4257
    %v4598 = vpack.c.b16 %v4262, %v4258
    %v4599 = vpack.c.b16 %v4263, %v4259
    %v4600 = vpack.c.b16 %v4264, %v4260
    %v4601 = vpack.c.b16 %v4269, %v4265
    %v4602 = vpack.c.b16 %v4270, %v4266
    %v4603 = vpack.c.b16 %v4271, %v4267
    %v4604 = vpack.c.b16 %v4272, %v4268
    %v4605 = vpack.c.b16 %v4277, %v4273
    %v4606 = vpack.c.b16 %v4278, %v4274
    %v4607 = vpack.c.b16 %v4279, %v4275
    %v4608 = vpack.c.b16 %v4280, %v4276
    %v4609 = vpack.c.b16 %v4285, %v4281
    %v4610 = vpack.c.b16 %v4286, %v4282
    %v4611 = vpack.c.b16 %v4287, %v4283
    %v4612 = vpack.c.b16 %v4288, %v4284
    %v4613 = vpack.c.b16 %v4293, %v4289
    %v4614 = vpack.c.b16 %v4294, %v4290
    %v4615 = vpack.c.b16 %v4295, %v4291
    %v4616 = vpack.c.b16 %v4296, %v4292
    %v4617 = vpack.c.b16 %v4301, %v4297
    %v4618 = vpack.c.b16 %v4302, %v4298
    %v4619 = vpack.c.b16 %v4303, %v4299
    %v4620 = vpack.c.b16 %v4304, %v4300
    %v4621 = vpack.c.b16 %v4309, %v4305
    %v4622 = vpack.c.b16 %v4310, %v4306
    %v4623 = vpack.c.b16 %v4311, %v4307
    %v4624 = vpack.c.b16 %v4312, %v4308
    %v4625 = vpack.c.b16 %v4317, %v4313
    %v4626 = vpack.c.b16 %v4318, %v4314
    %v4627 = vpack.c.b16 %v4319, %v4315
    %v4628 = vpack.c.b16 %v4320, %v4316
    %v4629 = vpack.c.b16 %v4325, %v4321
    %v4630 = vpack.c.b16 %v4326, %v4322
    %v4631 = vpack.c.b16 %v4327, %v4323
    %v4632 = vpack.c.b16 %v4328, %v4324
    %v4633 = vpack.c.b16 %v4333, %v4329
    %v4634 = vpack.c.b16 %v4334, %v4330
    %v4635 = vpack.c.b16 %v4335, %v4331
    %v4636 = vpack.c.b16 %v4336, %v4332
    %v4637 = vpack.c.b16 %v4341, %v4337
    %v4638 = vpack.c.b16 %v4342, %v4338
    %v4639 = vpack.c.b16 %v4343, %v4339
    %v4640 = vpack.c.b16 %v4344, %v4340
    %v4641 = vpack.c.b16 %v4349, %v4345
    %v4642 = vpack.c.b16 %v4350, %v4346
    %v4643 = vpack.c.b16 %v4351, %v4347
    %v4644 = vpack.c.b16 %v4352, %v4348
    %v4645 = vpack.c.b16 %v4357, %v4353
    %v4646 = vpack.c.b16 %v4358, %v4354
    %v4647 = vpack.c.b16 %v4359, %v4355
    %v4648 = vpack.c.b16 %v4360, %v4356
    %v4649 = vpack.c.b16 %v4365, %v4361
    %v4650 = vpack.c.b16 %v4366, %v4362
    %v4651 = vpack.c.b16 %v4367, %v4363
    %v4652 = vpack.c.b16 %v4368, %v4364
    %v4653 = vpack.c.b16 %v4373, %v4369
    %v4654 = vpack.c.b16 %v4374, %v4370
    %v4655 = vpack.c.b16 %v4375, %v4371
    %v4656 = vpack.c.b16 %v4376, %v4372
    %v4657 = vpack.c.b16 %v4381, %v4377
    %v4658 = vpack.c.b16 %v4382, %v4378
    %v4659 = vpack.c.b16 %v4383, %v4379
    %v4660 = vpack.c.b16 %v4384, %v4380
    %v4661 = vpack.c.b16 %v4389, %v4385
    %v4662 = vpack.c.b16 %v4390, %v4386
    %v4663 = vpack.c.b16 %v4391, %v4387
    %v4664 = vpack.c.b16 %v4392, %v4388
    %v4665 = vpack.c.b16 %v4397, %v4393
    %v4666 = vpack.c.b16 %v4398, %v4394
    %v4667 = vpack.c.b16 %v4399, %v4395
    %v4668 = vpack.c.b16 %v4400, %v4396
    %v4669 = vpack.c.b16 %v4405, %v4401
    %v4670 = vpack.c.b16 %v4406, %v4402
    %v4671 = vpack.c.b16 %v4407, %v4403
    %v4672 = vpack.c.b16 %v4408, %v4404
    %v4673 = vpack.c.b16 %v4413, %v4409
    %v4674 = vpack.c.b16 %v4414, %v4410
    %v4675 = vpack.c.b16 %v4415, %v4411
    %v4676 = vpack.c.b16 %v4416, %v4412
    %v4677 = vpack.c.b16 %v4421, %v4417
    %v4678 = vpack.c.b16 %v4422, %v4418
    %v4679 = vpack.c.b16 %v4423, %v4419
    %v4680 = vpack.c.b16 %v4424, %v4420
    %4937 = vmatprep.subr.bf16.mxu0 %v4426
    %4938 = vmatpush1.bf16.msra.mxu0 %v4425
    %4939 = vmatprep.subr.bf16.mxu0 %v4430
    %4940 = vmatpush1.bf16.msra.mxu0 %v4429
    %4941 = vmatprep.subr.bf16.mxu0 %v4434
    %4942 = vmatpush1.bf16.msra.mxu0 %v4433
    %4943 = vmatprep.subr.bf16.mxu0 %v4438
    %4944 = vmatpush1.bf16.msra.mxu0 %v4437
    %4945 = vmatprep.subr.bf16.mxu0 %v4442
    %4946 = vmatpush1.bf16.msra.mxu0 %v4441
    %4947 = vmatprep.subr.bf16.mxu0 %v4446
    %4948 = vmatpush1.bf16.msra.mxu0 %v4445
    %4949 = vmatprep.subr.bf16.mxu0 %v4450
    %4950 = vmatpush1.bf16.msra.mxu0 %v4449
    %4951 = vmatprep.subr.bf16.mxu0 %v4454
    %4952 = vmatpush1.bf16.msra.mxu0 %v4453
    %4953 = vmatprep.subr.bf16.mxu0 %v4458
    %4954 = vmatpush1.bf16.msra.mxu0 %v4457
    %4955 = vmatprep.subr.bf16.mxu0 %v4462
    %4956 = vmatpush1.bf16.msra.mxu0 %v4461
    %4957 = vmatprep.subr.bf16.mxu0 %v4466
    %4958 = vmatpush1.bf16.msra.mxu0 %v4465
    %4959 = vmatprep.subr.bf16.mxu0 %v4470
    %4960 = vmatpush1.bf16.msra.mxu0 %v4469
    %4961 = vmatprep.subr.bf16.mxu0 %v4474
    %4962 = vmatpush1.bf16.msra.mxu0 %v4473
    %4963 = vmatprep.subr.bf16.mxu0 %v4478
    %4964 = vmatpush1.bf16.msra.mxu0 %v4477
    %4965 = vmatprep.subr.bf16.mxu0 %v4482
    %4966 = vmatpush1.bf16.msra.mxu0 %v4481
    %4967 = vmatprep.subr.bf16.mxu0 %v4486
    %4968 = vmatpush1.bf16.msra.mxu0 %v4485
    %4969 = vmatprep.mubr.bf16.mxu0 %v1506
    %4970 = vmatmul.mubr.bf16.gmra.mrb[0].mxu0 %v1505
    %v4971 = vpop.f32.mrb[0].mxu0
    %v4972 = vadd.f32 %v3477, %v4971
    %v4973 = vpop.f32.mrb[0].mxu0
    %v4974 = vadd.f32 %v3479, %v4973
    %v4975 = vpop.f32.mrb[0].mxu0
    %v4976 = vadd.f32 %v3481, %v4975
    %v4977 = vpop.f32.mrb[0].mxu0
    %v4978 = vadd.f32 %v3483, %v4977
    %4979 = vdwg.mxu0
    %4980 = vmatprep.subr.bf16.mxu0 %v4490
    %4981 = vmatpush1.bf16.msra.mxu0 %v4489
    %4982 = vmatprep.subr.bf16.mxu0 %v4494
    %4983 = vmatpush1.bf16.msra.mxu0 %v4493
    %4984 = vmatprep.subr.bf16.mxu0 %v4498
    %4985 = vmatpush1.bf16.msra.mxu0 %v4497
    %4986 = vmatprep.subr.bf16.mxu0 %v4502
    %4987 = vmatpush1.bf16.msra.mxu0 %v4501
    %4988 = vmatprep.subr.bf16.mxu0 %v4506
    %4989 = vmatpush1.bf16.msra.mxu0 %v4505
    %4990 = vmatprep.subr.bf16.mxu0 %v4510
    %4991 = vmatpush1.bf16.msra.mxu0 %v4509
    %4992 = vmatprep.subr.bf16.mxu0 %v4514
    %4993 = vmatpush1.bf16.msra.mxu0 %v4513
    %4994 = vmatprep.subr.bf16.mxu0 %v4518
    %4995 = vmatpush1.bf16.msra.mxu0 %v4517
    %4996 = vmatprep.subr.bf16.mxu0 %v4522
    %4997 = vmatpush1.bf16.msra.mxu0 %v4521
    %4998 = vmatprep.subr.bf16.mxu0 %v4526
    %4999 = vmatpush1.bf16.msra.mxu0 %v4525
    %5000 = vmatprep.subr.bf16.mxu0 %v4530
    %5001 = vmatpush1.bf16.msra.mxu0 %v4529
    %5002 = vmatprep.subr.bf16.mxu0 %v4534
    %5003 = vmatpush1.bf16.msra.mxu0 %v4533
    %5004 = vmatprep.subr.bf16.mxu0 %v4538
    %5005 = vmatpush1.bf16.msra.mxu0 %v4537
    %5006 = vmatprep.subr.bf16.mxu0 %v4542
    %5007 = vmatpush1.bf16.msra.mxu0 %v4541
    %5008 = vmatprep.subr.bf16.mxu0 %v4546
    %5009 = vmatpush1.bf16.msra.mxu0 %v4545
    %5010 = vmatprep.subr.bf16.mxu0 %v4550
    %5011 = vmatpush1.bf16.msra.mxu0 %v4549
    %5012 = vmatprep.mubr.bf16.mxu0 %v1508
    %5013 = vmatmul.mubr.bf16.gmra.mrb[0].mxu0 %v1507
    %v5014 = vpop.f32.mrb[0].mxu0
    %v5015 = vadd.f32 %v4972, %v5014
    %v5016 = vpop.f32.mrb[0].mxu0
    %v5017 = vadd.f32 %v4974, %v5016
    %v5018 = vpop.f32.mrb[0].mxu0
    %v5019 = vadd.f32 %v4976, %v5018
    %v5020 = vpop.f32.mrb[0].mxu0
    %v5021 = vadd.f32 %v4978, %v5020
    %5022 = vdwg.mxu0
    %5023 = vmatprep.subr.bf16.mxu0 %v4554
    %5024 = vmatpush1.bf16.msra.mxu0 %v4553
    %5025 = vmatprep.subr.bf16.mxu0 %v4558
    %5026 = vmatpush1.bf16.msra.mxu0 %v4557
    %5027 = vmatprep.subr.bf16.mxu0 %v4562
    %5028 = vmatpush1.bf16.msra.mxu0 %v4561
    %5029 = vmatprep.subr.bf16.mxu0 %v4566
    %5030 = vmatpush1.bf16.msra.mxu0 %v4565
    %5031 = vmatprep.subr.bf16.mxu0 %v4570
    %5032 = vmatpush1.bf16.msra.mxu0 %v4569
    %5033 = vmatprep.subr.bf16.mxu0 %v4574
    %5034 = vmatpush1.bf16.msra.mxu0 %v4573
    %5035 = vmatprep.subr.bf16.mxu0 %v4578
    %5036 = vmatpush1.bf16.msra.mxu0 %v4577
    %5037 = vmatprep.subr.bf16.mxu0 %v4582
    %5038 = vmatpush1.bf16.msra.mxu0 %v4581
    %5039 = vmatprep.subr.bf16.mxu0 %v4586
    %5040 = vmatpush1.bf16.msra.mxu0 %v4585
    %5041 = vmatprep.subr.bf16.mxu0 %v4590
    %5042 = vmatpush1.bf16.msra.mxu0 %v4589
    %5043 = vmatprep.subr.bf16.mxu0 %v4594
    %5044 = vmatpush1.bf16.msra.mxu0 %v4593
    %5045 = vmatprep.subr.bf16.mxu0 %v4598
    %5046 = vmatpush1.bf16.msra.mxu0 %v4597
    %5047 = vmatprep.subr.bf16.mxu0 %v4602
    %5048 = vmatpush1.bf16.msra.mxu0 %v4601
    %5049 = vmatprep.subr.bf16.mxu0 %v4606
    %5050 = vmatpush1.bf16.msra.mxu0 %v4605
    %5051 = vmatprep.subr.bf16.mxu0 %v4610
    %5052 = vmatpush1.bf16.msra.mxu0 %v4609
    %5053 = vmatprep.subr.bf16.mxu0 %v4614
    %5054 = vmatpush1.bf16.msra.mxu0 %v4613
    %5055 = vmatprep.mubr.bf16.mxu0 %v1510
    %5056 = vmatmul.mubr.bf16.gmra.mrb[0].mxu0 %v1509
    %v5057 = vpop.f32.mrb[0].mxu0
    %v5058 = vadd.f32 %v5015, %v5057
    %v5059 = vpop.f32.mrb[0].mxu0
    %v5060 = vadd.f32 %v5017, %v5059
    %v5061 = vpop.f32.mrb[0].mxu0
    %v5062 = vadd.f32 %v5019, %v5061
    %v5063 = vpop.f32.mrb[0].mxu0
    %v5064 = vadd.f32 %v5021, %v5063
    %5065 = vdwg.mxu0
    %5066 = vmatprep.subr.bf16.mxu0 %v4618
    %5067 = vmatpush1.bf16.msra.mxu0 %v4617
    %5068 = vmatprep.subr.bf16.mxu0 %v4622
    %5069 = vmatpush1.bf16.msra.mxu0 %v4621
    %5070 = vmatprep.subr.bf16.mxu0 %v4626
    %5071 = vmatpush1.bf16.msra.mxu0 %v4625
    %5072 = vmatprep.subr.bf16.mxu0 %v4630
    %5073 = vmatpush1.bf16.msra.mxu0 %v4629
    %5074 = vmatprep.subr.bf16.mxu0 %v4634
    %5075 = vmatpush1.bf16.msra.mxu0 %v4633
    %5076 = vmatprep.subr.bf16.mxu0 %v4638
    %5077 = vmatpush1.bf16.msra.mxu0 %v4637
    %5078 = vmatprep.subr.bf16.mxu0 %v4642
    %5079 = vmatpush1.bf16.msra.mxu0 %v4641
    %5080 = vmatprep.subr.bf16.mxu0 %v4646
    %5081 = vmatpush1.bf16.msra.mxu0 %v4645
    %5082 = vmatprep.subr.bf16.mxu0 %v4650
    %5083 = vmatpush1.bf16.msra.mxu0 %v4649
    %5084 = vmatprep.subr.bf16.mxu0 %v4654
    %5085 = vmatpush1.bf16.msra.mxu0 %v4653
    %5086 = vmatprep.subr.bf16.mxu0 %v4658
    %5087 = vmatpush1.bf16.msra.mxu0 %v4657
    %5088 = vmatprep.subr.bf16.mxu0 %v4662
    %5089 = vmatpush1.bf16.msra.mxu0 %v4661
    %5090 = vmatprep.subr.bf16.mxu0 %v4666
    %5091 = vmatpush1.bf16.msra.mxu0 %v4665
    %5092 = vmatprep.subr.bf16.mxu0 %v4670
    %5093 = vmatpush1.bf16.msra.mxu0 %v4669
    %5094 = vmatprep.subr.bf16.mxu0 %v4674
    %5095 = vmatpush1.bf16.msra.mxu0 %v4673
    %5096 = vmatprep.subr.bf16.mxu0 %v4678
    %5097 = vmatpush1.bf16.msra.mxu0 %v4677
    %5098 = vmatprep.mubr.bf16.mxu0 %v1512
    %5099 = vmatmul.mubr.bf16.gmra.mrb[0].mxu0 %v1511
    %v5100 = vpop.f32.mrb[0].mxu0
    %v5101 = vadd.f32 %v5058, %v5100
    %v5102 = vpop.f32.mrb[0].mxu0
    %v5103 = vadd.f32 %v5060, %v5102
    %v5104 = vpop.f32.mrb[0].mxu0
    %v5105 = vadd.f32 %v5062, %v5104
    %v5106 = vpop.f32.mrb[0].mxu0
    %v5107 = vadd.f32 %v5064, %v5106
    %5108 = vdwg.mxu0
    %5109 = vmatprep.subr.bf16.mxu0 %v4428
    %5110 = vmatpush1.bf16.msra.mxu0 %v4427
    %5111 = vmatprep.subr.bf16.mxu0 %v4432
    %5112 = vmatpush1.bf16.msra.mxu0 %v4431
    %5113 = vmatprep.subr.bf16.mxu0 %v4436
    %5114 = vmatpush1.bf16.msra.mxu0 %v4435
    %5115 = vmatprep.subr.bf16.mxu0 %v4440
    %5116 = vmatpush1.bf16.msra.mxu0 %v4439
    %5117 = vmatprep.subr.bf16.mxu0 %v4444
    %5118 = vmatpush1.bf16.msra.mxu0 %v4443
    %5119 = vmatprep.subr.bf16.mxu0 %v4448
    %5120 = vmatpush1.bf16.msra.mxu0 %v4447
    %5121 = vmatprep.subr.bf16.mxu0 %v4452
    %5122 = vmatpush1.bf16.msra.mxu0 %v4451
    %5123 = vmatprep.subr.bf16.mxu0 %v4456
    %5124 = vmatpush1.bf16.msra.mxu0 %v4455
    %5125 = vmatprep.subr.bf16.mxu0 %v4460
    %5126 = vmatpush1.bf16.msra.mxu0 %v4459
    %5127 = vmatprep.subr.bf16.mxu0 %v4464
    %5128 = vmatpush1.bf16.msra.mxu0 %v4463
    %5129 = vmatprep.subr.bf16.mxu0 %v4468
    %5130 = vmatpush1.bf16.msra.mxu0 %v4467
    %5131 = vmatprep.subr.bf16.mxu0 %v4472
    %5132 = vmatpush1.bf16.msra.mxu0 %v4471
    %5133 = vmatprep.subr.bf16.mxu0 %v4476
    %5134 = vmatpush1.bf16.msra.mxu0 %v4475
    %5135 = vmatprep.subr.bf16.mxu0 %v4480
    %5136 = vmatpush1.bf16.msra.mxu0 %v4479
    %5137 = vmatprep.subr.bf16.mxu0 %v4484
    %5138 = vmatpush1.bf16.msra.mxu0 %v4483
    %5139 = vmatprep.subr.bf16.mxu0 %v4488
    %5140 = vmatpush1.bf16.msra.mxu0 %v4487
    %5141 = vmatprep.mubr.bf16.mxu0 %v1506
    %5142 = vmatmul.mubr.bf16.gmra.mrb[0].mxu0 %v1505
    %v5143 = vpop.f32.mrb[0].mxu0
    %v5144 = vadd.f32 %v3649, %v5143
    %v5145 = vpop.f32.mrb[0].mxu0
    %v5146 = vadd.f32 %v3651, %v5145
    %v5147 = vpop.f32.mrb[0].mxu0
    %v5148 = vadd.f32 %v3653, %v5147
    %v5149 = vpop.f32.mrb[0].mxu0
    %v5150 = vadd.f32 %v3655, %v5149
    %5151 = vdwg.mxu0
    %5152 = vmatprep.subr.bf16.mxu0 %v4492
    %5153 = vmatpush1.bf16.msra.mxu0 %v4491
    %5154 = vmatprep.subr.bf16.mxu0 %v4496
    %5155 = vmatpush1.bf16.msra.mxu0 %v4495
    %5156 = vmatprep.subr.bf16.mxu0 %v4500
    %5157 = vmatpush1.bf16.msra.mxu0 %v4499
    %5158 = vmatprep.subr.bf16.mxu0 %v4504
    %5159 = vmatpush1.bf16.msra.mxu0 %v4503
    %5160 = vmatprep.subr.bf16.mxu0 %v4508
    %5161 = vmatpush1.bf16.msra.mxu0 %v4507
    %5162 = vmatprep.subr.bf16.mxu0 %v4512
    %5163 = vmatpush1.bf16.msra.mxu0 %v4511
    %5164 = vmatprep.subr.bf16.mxu0 %v4516
    %5165 = vmatpush1.bf16.msra.mxu0 %v4515
    %5166 = vmatprep.subr.bf16.mxu0 %v4520
    %5167 = vmatpush1.bf16.msra.mxu0 %v4519
    %5168 = vmatprep.subr.bf16.mxu0 %v4524
    %5169 = vmatpush1.bf16.msra.mxu0 %v4523
    %5170 = vmatprep.subr.bf16.mxu0 %v4528
    %5171 = vmatpush1.bf16.msra.mxu0 %v4527
    %5172 = vmatprep.subr.bf16.mxu0 %v4532
    %5173 = vmatpush1.bf16.msra.mxu0 %v4531
    %5174 = vmatprep.subr.bf16.mxu0 %v4536
    %5175 = vmatpush1.bf16.msra.mxu0 %v4535
    %5176 = vmatprep.subr.bf16.mxu0 %v4540
    %5177 = vmatpush1.bf16.msra.mxu0 %v4539
    %5178 = vmatprep.subr.bf16.mxu0 %v4544
    %5179 = vmatpush1.bf16.msra.mxu0 %v4543
    %5180 = vmatprep.subr.bf16.mxu0 %v4548
    %5181 = vmatpush1.bf16.msra.mxu0 %v4547
    %5182 = vmatprep.subr.bf16.mxu0 %v4552
    %5183 = vmatpush1.bf16.msra.mxu0 %v4551
    %5184 = vmatprep.mubr.bf16.mxu0 %v1508
    %5185 = vmatmul.mubr.bf16.gmra.mrb[0].mxu0 %v1507
    %v5186 = vpop.f32.mrb[0].mxu0
    %v5187 = vadd.f32 %v5144, %v5186
    %v5188 = vpop.f32.mrb[0].mxu0
    %v5189 = vadd.f32 %v5146, %v5188
    %v5190 = vpop.f32.mrb[0].mxu0
    %v5191 = vadd.f32 %v5148, %v5190
    %v5192 = vpop.f32.mrb[0].mxu0
    %v5193 = vadd.f32 %v5150, %v5192
    %5194 = vdwg.mxu0
    %5195 = vmatprep.subr.bf16.mxu0 %v4556
    %5196 = vmatpush1.bf16.msra.mxu0 %v4555
    %5197 = vmatprep.subr.bf16.mxu0 %v4560
    %5198 = vmatpush1.bf16.msra.mxu0 %v4559
    %5199 = vmatprep.subr.bf16.mxu0 %v4564
    %5200 = vmatpush1.bf16.msra.mxu0 %v4563
    %5201 = vmatprep.subr.bf16.mxu0 %v4568
    %5202 = vmatpush1.bf16.msra.mxu0 %v4567
    %5203 = vmatprep.subr.bf16.mxu0 %v4572
    %5204 = vmatpush1.bf16.msra.mxu0 %v4571
    %5205 = vmatprep.subr.bf16.mxu0 %v4576
    %5206 = vmatpush1.bf16.msra.mxu0 %v4575
    %5207 = vmatprep.subr.bf16.mxu0 %v4580
    %5208 = vmatpush1.bf16.msra.mxu0 %v4579
    %5209 = vmatprep.subr.bf16.mxu0 %v4584
    %5210 = vmatpush1.bf16.msra.mxu0 %v4583
    %5211 = vmatprep.subr.bf16.mxu0 %v4588
    %5212 = vmatpush1.bf16.msra.mxu0 %v4587
    %5213 = vmatprep.subr.bf16.mxu0 %v4592
    %5214 = vmatpush1.bf16.msra.mxu0 %v4591
    %5215 = vmatprep.subr.bf16.mxu0 %v4596
    %5216 = vmatpush1.bf16.msra.mxu0 %v4595
    %5217 = vmatprep.subr.bf16.mxu0 %v4600
    %5218 = vmatpush1.bf16.msra.mxu0 %v4599
    %5219 = vmatprep.subr.bf16.mxu0 %v4604
    %5220 = vmatpush1.bf16.msra.mxu0 %v4603
    %5221 = vmatprep.subr.bf16.mxu0 %v4608
    %5222 = vmatpush1.bf16.msra.mxu0 %v4607
    %5223 = vmatprep.subr.bf16.mxu0 %v4612
    %5224 = vmatpush1.bf16.msra.mxu0 %v4611
    %5225 = vmatprep.subr.bf16.mxu0 %v4616
    %5226 = vmatpush1.bf16.msra.mxu0 %v4615
    %5227 = vmatprep.mubr.bf16.mxu0 %v1510
    %5228 = vmatmul.mubr.bf16.gmra.mrb[0].mxu0 %v1509
    %v5229 = vpop.f32.mrb[0].mxu0
    %v5230 = vadd.f32 %v5187, %v5229
    %v5231 = vpop.f32.mrb[0].mxu0
    %v5232 = vadd.f32 %v5189, %v5231
    %v5233 = vpop.f32.mrb[0].mxu0
    %v5234 = vadd.f32 %v5191, %v5233
    %v5235 = vpop.f32.mrb[0].mxu0
    %v5236 = vadd.f32 %v5193, %v5235
    %5237 = vdwg.mxu0
    %5238 = vmatprep.subr.bf16.mxu0 %v4620
    %5239 = vmatpush1.bf16.msra.mxu0 %v4619
    %5240 = vmatprep.subr.bf16.mxu0 %v4624
    %5241 = vmatpush1.bf16.msra.mxu0 %v4623
    %5242 = vmatprep.subr.bf16.mxu0 %v4628
    %5243 = vmatpush1.bf16.msra.mxu0 %v4627
    %5244 = vmatprep.subr.bf16.mxu0 %v4632
    %5245 = vmatpush1.bf16.msra.mxu0 %v4631
    %5246 = vmatprep.subr.bf16.mxu0 %v4636
    %5247 = vmatpush1.bf16.msra.mxu0 %v4635
    %5248 = vmatprep.subr.bf16.mxu0 %v4640
    %5249 = vmatpush1.bf16.msra.mxu0 %v4639
    %5250 = vmatprep.subr.bf16.mxu0 %v4644
    %5251 = vmatpush1.bf16.msra.mxu0 %v4643
    %5252 = vmatprep.subr.bf16.mxu0 %v4648
    %5253 = vmatpush1.bf16.msra.mxu0 %v4647
    %5254 = vmatprep.subr.bf16.mxu0 %v4652
    %5255 = vmatpush1.bf16.msra.mxu0 %v4651
    %5256 = vmatprep.subr.bf16.mxu0 %v4656
    %5257 = vmatpush1.bf16.msra.mxu0 %v4655
    %5258 = vmatprep.subr.bf16.mxu0 %v4660
    %5259 = vmatpush1.bf16.msra.mxu0 %v4659
    %5260 = vmatprep.subr.bf16.mxu0 %v4664
    %5261 = vmatpush1.bf16.msra.mxu0 %v4663
    %5262 = vmatprep.subr.bf16.mxu0 %v4668
    %5263 = vmatpush1.bf16.msra.mxu0 %v4667
    %5264 = vmatprep.subr.bf16.mxu0 %v4672
    %5265 = vmatpush1.bf16.msra.mxu0 %v4671
    %5266 = vmatprep.subr.bf16.mxu0 %v4676
    %5267 = vmatpush1.bf16.msra.mxu0 %v4675
    %5268 = vmatprep.subr.bf16.mxu0 %v4680
    %5269 = vmatpush1.bf16.msra.mxu0 %v4679
    %5270 = vmatprep.mubr.bf16.mxu0 %v1512
    %5271 = vmatmul.mubr.bf16.gmra.mrb[0].mxu0 %v1511
    %v5272 = vpop.f32.mrb[0].mxu0
    %v5273 = vadd.f32 %v5230, %v5272
    %v5274 = vpop.f32.mrb[0].mxu0
    %v5275 = vadd.f32 %v5232, %v5274
    %v5276 = vpop.f32.mrb[0].mxu0
    %v5277 = vadd.f32 %v5234, %v5276
    %v5278 = vpop.f32.mrb[0].mxu0
    %v5279 = vadd.f32 %v5236, %v5278
    %5280 = vdwg.mxu0
    %v5282 = vlaneseq
    %v5283 = vshrl.u32 %v5282, 7
    %v5284 = vsub.s32 0, %v5283
    %v5285 = vrot.slane %v113, %v5284
    %v5286 = vlaneseq
    %v5287 = vshrl.u32 %v5286, 7
    %v5288 = vsub.s32 1, %v5287
    %v5289 = vrot.slane %v113, %v5288
    %v5290 = vlaneseq
    %v5291 = vshrl.u32 %v5290, 7
    %v5292 = vsub.s32 2, %v5291
    %v5293 = vrot.slane %v113, %v5292
    %v5294 = vlaneseq
    %v5295 = vshrl.u32 %v5294, 7
    %v5296 = vsub.s32 3, %v5295
    %v5297 = vrot.slane %v113, %v5296
    %v5302 = vadd.f32 %v5101, %v5285
    %v5303 = vadd.f32 %v5103, %v5289
    %v5304 = vadd.f32 %v5273, %v5293
    %v5305 = vadd.f32 %v5275, %v5297
    %v5306 = vadd.f32 %v5105, %v5285
    %v5307 = vadd.f32 %v5107, %v5289
    %v5308 = vadd.f32 %v5277, %v5293
    %v5309 = vadd.f32 %v5279, %v5297
    %v5310 = vmul.f32 %v5302, %v103
    %v5311 = vmul.f32 %v5303, %v103
    %v5312 = vmul.f32 %v5304, %v103
    %v5313 = vmul.f32 %v5305, %v103
    %v5314 = vmul.f32 %v5306, %v104
    %v5315 = vmul.f32 %v5307, %v104
    %v5316 = vmul.f32 %v5308, %v104
    %v5317 = vmul.f32 %v5309, %v104
    %v5318 = vadd.f32 %v5310, %v5314
    %v5319 = vrot.slane %v5318, 4
    %v5320 = vadd.f32 %v5318, %v5319
    %v5321 = vrot.slane %v5320, 2
    %v5322 = vadd.f32 %v5320, %v5321
    %v5323 = vrot.slane %v5322, 1
    %v5324 = vadd.f32 %v5322, %v5323
    %v5325 = vadd.f32 %v5311, %v5315
    %v5326 = vrot.slane %v5325, 4
    %v5327 = vadd.f32 %v5325, %v5326
    %v5328 = vrot.slane %v5327, 2
    %v5329 = vadd.f32 %v5327, %v5328
    %v5330 = vrot.slane %v5329, 1
    %v5331 = vadd.f32 %v5329, %v5330
    %v5332 = vadd.f32 %v5312, %v5316
    %v5333 = vrot.slane %v5332, 4
    %v5334 = vadd.f32 %v5332, %v5333
    %v5335 = vrot.slane %v5334, 2
    %v5336 = vadd.f32 %v5334, %v5335
    %v5337 = vrot.slane %v5336, 1
    %v5338 = vadd.f32 %v5336, %v5337
    %v5339 = vadd.f32 %v5313, %v5317
    %v5340 = vrot.slane %v5339, 4
    %v5341 = vadd.f32 %v5339, %v5340
    %v5342 = vrot.slane %v5341, 2
    %v5343 = vadd.f32 %v5341, %v5342
    %v5344 = vrot.slane %v5343, 1
    %v5345 = vadd.f32 %v5343, %v5344
    %v5346 = vmul.f32 %v5302, %v5310
    %v5347 = vmul.f32 %v5303, %v5311
    %v5348 = vmul.f32 %v5304, %v5312
    %v5349 = vmul.f32 %v5305, %v5313
    %v5350 = vmul.f32 %v5306, %v5314
    %v5351 = vmul.f32 %v5307, %v5315
    %v5352 = vmul.f32 %v5308, %v5316
    %v5353 = vmul.f32 %v5309, %v5317
    %v5354 = vadd.f32 %v5346, %v5350
    %v5355 = vrot.slane %v5354, 4
    %v5356 = vadd.f32 %v5354, %v5355
    %v5357 = vrot.slane %v5356, 2
    %v5358 = vadd.f32 %v5356, %v5357
    %v5359 = vrot.slane %v5358, 1
    %v5360 = vadd.f32 %v5358, %v5359
    %v5361 = vadd.f32 %v5347, %v5351
    %v5362 = vrot.slane %v5361, 4
    %v5363 = vadd.f32 %v5361, %v5362
    %v5364 = vrot.slane %v5363, 2
    %v5365 = vadd.f32 %v5363, %v5364
    %v5366 = vrot.slane %v5365, 1
    %v5367 = vadd.f32 %v5365, %v5366
    %v5368 = vadd.f32 %v5348, %v5352
    %v5369 = vrot.slane %v5368, 4
    %v5370 = vadd.f32 %v5368, %v5369
    %v5371 = vrot.slane %v5370, 2
    %v5372 = vadd.f32 %v5370, %v5371
    %v5373 = vrot.slane %v5372, 1
    %v5374 = vadd.f32 %v5372, %v5373
    %v5375 = vadd.f32 %v5349, %v5353
    %v5376 = vrot.slane %v5375, 4
    %v5377 = vadd.f32 %v5375, %v5376
    %v5378 = vrot.slane %v5377, 2
    %v5379 = vadd.f32 %v5377, %v5378
    %v5380 = vrot.slane %v5379, 1
    %v5381 = vadd.f32 %v5379, %v5380
    %v5382 = vmul.f32 %v5324, %v5324
    %v5383 = vmul.f32 %v5331, %v5331
    %v5384 = vmul.f32 %v5338, %v5338
    %v5385 = vmul.f32 %v5345, %v5345
    %v5386 = vsub.f32 %v5360, %v5382
    %v5387 = vsub.f32 %v5367, %v5383
    %v5388 = vsub.f32 %v5374, %v5384
    %v5389 = vsub.f32 %v5381, %v5385
    %v5390 = vadd.f32 %v5386, 1e-05
    %v5391 = vadd.f32 %v5387, 1e-05
    %v5392 = vadd.f32 %v5388, 1e-05
    %v5393 = vadd.f32 %v5389, 1e-05
    %v5394 = vrsqrt.pop %v5390
    %v5395 = vrsqrt.pop %v5391
    %v5396 = vrsqrt.pop %v5392
    %v5397 = vrsqrt.pop %v5393
    %v5402 = vcombine.low %v5394, %v5395
    %v5403 = vcombine.low %v5396, %v5397
    %v5405 = vunpack.c.l.s4 1966171168
    %v5406 = vunpack.c.0.s8 %v5405
    %v5407 = vlaneseq
    %v5408 = vshrl.u32 %v5407, 7
    %v5409 = vsub.s32 %v5406, %v5408
    %v5410 = vrot.slane %v5402, %v5409
    %v5412 = vunpack.c.l.s4 1966171168
    %v5413 = vunpack.c.0.s8 %v5412
    %v5414 = vlaneseq
    %v5415 = vshrl.u32 %v5414, 7
    %v5416 = vsub.s32 %v5413, %v5415
    %v5417 = vrot.slane %v5403, %v5416
    %v5418 = vcombine.low %v5410, %v5417
    %v5420 = vunpack.c.l.s4 1966171168
    %v5421 = vunpack.c.0.s8 %v5420
    %v5422 = vlaneseq
    %v5423 = vshrl.u32 %v5422, 7
    %v5424 = vsub.s32 %v5421, %v5423
    %v5425 = vrot.slane %v5418, %v5424
    %v5427 = vmul.f32 %v115, %v5425
    %v5429 = vlaneseq
    %v5430 = vshrl.u32 %v5429, 7
    %v5431 = vsub.s32 0, %v5430
    %v5432 = vrot.slane %v5427, %v5431
    %v5433 = vlaneseq
    %v5434 = vshrl.u32 %v5433, 7
    %v5435 = vsub.s32 1, %v5434
    %v5436 = vrot.slane %v5427, %v5435
    %v5437 = vlaneseq
    %v5438 = vshrl.u32 %v5437, 7
    %v5439 = vsub.s32 2, %v5438
    %v5440 = vrot.slane %v5427, %v5439
    %v5441 = vlaneseq
    %v5442 = vshrl.u32 %v5441, 7
    %v5443 = vsub.s32 3, %v5442
    %v5444 = vrot.slane %v5427, %v5443
    %v5449 = vmul.f32 %v5324, %v5432
    %v5450 = vmul.f32 %v5331, %v5436
    %v5451 = vmul.f32 %v5338, %v5440
    %v5452 = vmul.f32 %v5345, %v5444
    %v5457 = vcombine.low %v5449, %v5450
    %v5458 = vcombine.low %v5451, %v5452
    %v5460 = vunpack.c.l.s4 1966171168
    %v5461 = vunpack.c.0.s8 %v5460
    %v5462 = vlaneseq
    %v5463 = vshrl.u32 %v5462, 7
    %v5464 = vsub.s32 %v5461, %v5463
    %v5465 = vrot.slane %v5457, %v5464
    %v5467 = vunpack.c.l.s4 1966171168
    %v5468 = vunpack.c.0.s8 %v5467
    %v5469 = vlaneseq
    %v5470 = vshrl.u32 %v5469, 7
    %v5471 = vsub.s32 %v5468, %v5470
    %v5472 = vrot.slane %v5458, %v5471
    %v5473 = vcombine.low %v5465, %v5472
    %v5475 = vunpack.c.l.s4 1966171168
    %v5476 = vunpack.c.0.s8 %v5475
    %v5477 = vlaneseq
    %v5478 = vshrl.u32 %v5477, 7
    %v5479 = vsub.s32 %v5476, %v5478
    %v5480 = vrot.slane %v5473, %v5479
    %v5482 = vsub.f32 %v117, %v5480
    %v5483 = vmul.f32 %v5302, %v5432
    %v5484 = vmul.f32 %v5303, %v5436
    %v5485 = vmul.f32 %v5304, %v5440
    %v5486 = vmul.f32 %v5305, %v5444
    %v5487 = vmul.f32 %v5306, %v5432
    %v5488 = vmul.f32 %v5307, %v5436
    %v5489 = vmul.f32 %v5308, %v5440
    %v5490 = vmul.f32 %v5309, %v5444
    %v5492 = vlaneseq
    %v5493 = vshrl.u32 %v5492, 7
    %v5494 = vsub.s32 0, %v5493
    %v5495 = vrot.slane %v5482, %v5494
    %v5496 = vlaneseq
    %v5497 = vshrl.u32 %v5496, 7
    %v5498 = vsub.s32 1, %v5497
    %v5499 = vrot.slane %v5482, %v5498
    %v5500 = vlaneseq
    %v5501 = vshrl.u32 %v5500, 7
    %v5502 = vsub.s32 2, %v5501
    %v5503 = vrot.slane %v5482, %v5502
    %v5504 = vlaneseq
    %v5505 = vshrl.u32 %v5504, 7
    %v5506 = vsub.s32 3, %v5505
    %v5507 = vrot.slane %v5482, %v5506
    %v5512 = vadd.f32 %v5483, %v5495
    %v5513 = vadd.f32 %v5484, %v5499
    %v5514 = vadd.f32 %v5485, %v5503
    %v5515 = vadd.f32 %v5486, %v5507
    %v5516 = vadd.f32 %v5487, %v5495
    %v5517 = vadd.f32 %v5488, %v5499
    %v5518 = vadd.f32 %v5489, %v5503
    %v5519 = vadd.f32 %v5490, %v5507
    %vm5520 = vcmp.gt.f32.partialorder %v5512, 0.0
    %vm5521 = vcmp.gt.f32.partialorder %v5513, 0.0
    %vm5522 = vcmp.gt.f32.partialorder %v5514, 0.0
    %vm5523 = vcmp.gt.f32.partialorder %v5515, 0.0
    %vm5524 = vcmp.gt.f32.partialorder %v5516, 0.0
    %vm5525 = vcmp.gt.f32.partialorder %v5517, 0.0
    %vm5526 = vcmp.gt.f32.partialorder %v5518, 0.0
    %vm5527 = vcmp.gt.f32.partialorder %v5519, 0.0
    %v5528 = vmul.f32 %v5512, 0.2
    %v5529 = vmul.f32 %v5513, 0.2
    %v5530 = vmul.f32 %v5514, 0.2
    %v5531 = vmul.f32 %v5515, 0.2
    %v5532 = vmul.f32 %v5516, 0.2
    %v5533 = vmul.f32 %v5517, 0.2
    %v5534 = vmul.f32 %v5518, 0.2
    %v5535 = vmul.f32 %v5519, 0.2
    %v5536 = vsel %vm5520, %v5512, %v5528
    %v5537 = vsel %vm5521, %v5513, %v5529
    %v5538 = vsel %vm5522, %v5514, %v5530
    %v5539 = vsel %vm5523, %v5515, %v5531
    %v5540 = vsel %vm5524, %v5516, %v5532
    %v5541 = vsel %vm5525, %v5517, %v5533
    %v5542 = vsel %vm5526, %v5518, %v5534
    %v5543 = vsel %vm5527, %v5519, %v5535
    %v5544 = vpack.c.bf16 %v5540, %v5536
    %v5545 = vpack.c.bf16 %v5541, %v5537
    %v5546 = vpack.c.bf16 %v5542, %v5538
    %v5547 = vpack.c.bf16 %v5543, %v5539
    %v5548 = vld [vmem:[#allocation9] sm:$0xff]
    %v5549 = vld [vmem:[#allocation9 + $0x8] sm:$0xff]
    %v5550 = vld [vmem:[#allocation9 + $0x10] sm:$0xff]
    %v5551 = vld [vmem:[#allocation9 + $0x18] sm:$0xff]
    %v5552 = vld [vmem:[#allocation9 + $0x20] sm:$0xff]
    %v5553 = vld [vmem:[#allocation9 + $0x28] sm:$0xff]
    %v5554 = vld [vmem:[#allocation9 + $0x30] sm:$0xff]
    %v5555 = vld [vmem:[#allocation9 + $0x38] sm:$0xff]
    %v5556 = vld [vmem:[#allocation9 + $0x40] sm:$0xff]
    %v5557 = vld [vmem:[#allocation9 + $0x48] sm:$0xff]
    %v5558 = vld [vmem:[#allocation9 + $0x50] sm:$0xff]
    %v5559 = vld [vmem:[#allocation9 + $0x58] sm:$0xff]
    %v5560 = vld [vmem:[#allocation9 + $0x60] sm:$0xff]
    %v5561 = vld [vmem:[#allocation9 + $0x68] sm:$0xff]
    %v5562 = vld [vmem:[#allocation9 + $0x70] sm:$0xff]
    %v5563 = vld [vmem:[#allocation9 + $0x78] sm:$0xff]
    %v5564 = vld [vmem:[#allocation9 + $0x80] sm:$0xff]
    %v5565 = vld [vmem:[#allocation9 + $0x88] sm:$0xff]
    %v5566 = vld [vmem:[#allocation9 + $0x90] sm:$0xff]
    %v5567 = vld [vmem:[#allocation9 + $0x98] sm:$0xff]
    %v5568 = vld [vmem:[#allocation9 + $0xa0] sm:$0xff]
    %v5569 = vld [vmem:[#allocation9 + $0xa8] sm:$0xff]
    %v5570 = vld [vmem:[#allocation9 + $0xb0] sm:$0xff]
    %v5571 = vld [vmem:[#allocation9 + $0xb8] sm:$0xff]
    %v5572 = vld [vmem:[#allocation9 + $0xc0] sm:$0xff]
    %v5573 = vld [vmem:[#allocation9 + $0xc8] sm:$0xff]
    %v5574 = vld [vmem:[#allocation9 + $0xd0] sm:$0xff]
    %v5575 = vld [vmem:[#allocation9 + $0xd8] sm:$0xff]
    %v5576 = vld [vmem:[#allocation9 + $0xe0] sm:$0xff]
    %v5577 = vld [vmem:[#allocation9 + $0xe8] sm:$0xff]
    %v5578 = vld [vmem:[#allocation9 + $0xf0] sm:$0xff]
    %v5579 = vld [vmem:[#allocation9 + $0xf8] sm:$0xff]
    %v5580 = vld [vmem:[#allocation9 + $0x100] sm:$0xff]
    %v5581 = vld [vmem:[#allocation9 + $0x108] sm:$0xff]
    %v5582 = vld [vmem:[#allocation9 + $0x110] sm:$0xff]
    %v5583 = vld [vmem:[#allocation9 + $0x118] sm:$0xff]
    %v5584 = vld [vmem:[#allocation9 + $0x120] sm:$0xff]
    %v5585 = vld [vmem:[#allocation9 + $0x128] sm:$0xff]
    %v5586 = vld [vmem:[#allocation9 + $0x130] sm:$0xff]
    %v5587 = vld [vmem:[#allocation9 + $0x138] sm:$0xff]
    %v5588 = vld [vmem:[#allocation9 + $0x140] sm:$0xff]
    %v5589 = vld [vmem:[#allocation9 + $0x148] sm:$0xff]
    %v5590 = vld [vmem:[#allocation9 + $0x150] sm:$0xff]
    %v5591 = vld [vmem:[#allocation9 + $0x158] sm:$0xff]
    %v5592 = vld [vmem:[#allocation9 + $0x160] sm:$0xff]
    %v5593 = vld [vmem:[#allocation9 + $0x168] sm:$0xff]
    %v5594 = vld [vmem:[#allocation9 + $0x170] sm:$0xff]
    %v5595 = vld [vmem:[#allocation9 + $0x178] sm:$0xff]
    %v5596 = vld [vmem:[#allocation9 + $0x180] sm:$0xff]
    %v5597 = vld [vmem:[#allocation9 + $0x188] sm:$0xff]
    %v5598 = vld [vmem:[#allocation9 + $0x190] sm:$0xff]
    %v5599 = vld [vmem:[#allocation9 + $0x198] sm:$0xff]
    %v5600 = vld [vmem:[#allocation9 + $0x1a0] sm:$0xff]
    %v5601 = vld [vmem:[#allocation9 + $0x1a8] sm:$0xff]
    %v5602 = vld [vmem:[#allocation9 + $0x1b0] sm:$0xff]
    %v5603 = vld [vmem:[#allocation9 + $0x1b8] sm:$0xff]
    %v5604 = vld [vmem:[#allocation9 + $0x1c0] sm:$0xff]
    %v5605 = vld [vmem:[#allocation9 + $0x1c8] sm:$0xff]
    %v5606 = vld [vmem:[#allocation9 + $0x1d0] sm:$0xff]
    %v5607 = vld [vmem:[#allocation9 + $0x1d8] sm:$0xff]
    %v5608 = vld [vmem:[#allocation9 + $0x1e0] sm:$0xff]
    %v5609 = vld [vmem:[#allocation9 + $0x1e8] sm:$0xff]
    %v5610 = vld [vmem:[#allocation9 + $0x1f0] sm:$0xff]
    %v5611 = vld [vmem:[#allocation9 + $0x1f8] sm:$0xff]
    %v5613 = vlaneseq
    %v5614 = vshrl.u32 %v5613, 7
    %v5615 = vsub.s32 0, %v5614
    %v5616 = vrot.slane %v119, %v5615
    %v5617 = vlaneseq
    %v5618 = vshrl.u32 %v5617, 7
    %v5619 = vsub.s32 1, %v5618
    %v5620 = vrot.slane %v119, %v5619
    %v5687 = vunpack.c.l.b16 %v5548
    %v5688 = vunpack.c.h.b16 %v5548
    %v5689 = vunpack.c.l.b16 %v5549
    %v5690 = vunpack.c.h.b16 %v5549
    %v5691 = vunpack.c.l.b16 %v5550
    %v5692 = vunpack.c.h.b16 %v5550
    %v5693 = vunpack.c.l.b16 %v5551
    %v5694 = vunpack.c.h.b16 %v5551
    %v5695 = vunpack.c.l.b16 %v5552
    %v5696 = vunpack.c.h.b16 %v5552
    %v5697 = vunpack.c.l.b16 %v5553
    %v5698 = vunpack.c.h.b16 %v5553
    %v5699 = vunpack.c.l.b16 %v5554
    %v5700 = vunpack.c.h.b16 %v5554
    %v5701 = vunpack.c.l.b16 %v5555
    %v5702 = vunpack.c.h.b16 %v5555
    %v5703 = vunpack.c.l.b16 %v5556
    %v5704 = vunpack.c.h.b16 %v5556
    %v5705 = vunpack.c.l.b16 %v5557
    %v5706 = vunpack.c.h.b16 %v5557
    %v5707 = vunpack.c.l.b16 %v5558
    %v5708 = vunpack.c.h.b16 %v5558
    %v5709 = vunpack.c.l.b16 %v5559
    %v5710 = vunpack.c.h.b16 %v5559
    %v5711 = vunpack.c.l.b16 %v5560
    %v5712 = vunpack.c.h.b16 %v5560
    %v5713 = vunpack.c.l.b16 %v5561
    %v5714 = vunpack.c.h.b16 %v5561
    %v5715 = vunpack.c.l.b16 %v5562
    %v5716 = vunpack.c.h.b16 %v5562
    %v5717 = vunpack.c.l.b16 %v5563
    %v5718 = vunpack.c.h.b16 %v5563
    %v5719 = vunpack.c.l.b16 %v5564
    %v5720 = vunpack.c.h.b16 %v5564
    %v5721 = vunpack.c.l.b16 %v5565
    %v5722 = vunpack.c.h.b16 %v5565
    %v5723 = vunpack.c.l.b16 %v5566
    %v5724 = vunpack.c.h.b16 %v5566
    %v5725 = vunpack.c.l.b16 %v5567
    %v5726 = vunpack.c.h.b16 %v5567
    %v5727 = vunpack.c.l.b16 %v5568
    %v5728 = vunpack.c.h.b16 %v5568
    %v5729 = vunpack.c.l.b16 %v5569
    %v5730 = vunpack.c.h.b16 %v5569
    %v5731 = vunpack.c.l.b16 %v5570
    %v5732 = vunpack.c.h.b16 %v5570
    %v5733 = vunpack.c.l.b16 %v5571
    %v5734 = vunpack.c.h.b16 %v5571
    %v5735 = vunpack.c.l.b16 %v5572
    %v5736 = vunpack.c.h.b16 %v5572
    %v5737 = vunpack.c.l.b16 %v5573
    %v5738 = vunpack.c.h.b16 %v5573
    %v5739 = vunpack.c.l.b16 %v5574
    %v5740 = vunpack.c.h.b16 %v5574
    %v5741 = vunpack.c.l.b16 %v5575
    %v5742 = vunpack.c.h.b16 %v5575
    %v5743 = vunpack.c.l.b16 %v5576
    %v5744 = vunpack.c.h.b16 %v5576
    %v5745 = vunpack.c.l.b16 %v5577
    %v5746 = vunpack.c.h.b16 %v5577
    %v5747 = vunpack.c.l.b16 %v5578
    %v5748 = vunpack.c.h.b16 %v5578
    %v5749 = vunpack.c.l.b16 %v5579
    %v5750 = vunpack.c.h.b16 %v5579
    %v5751 = vunpack.c.l.b16 %v5580
    %v5752 = vunpack.c.h.b16 %v5580
    %v5753 = vunpack.c.l.b16 %v5581
    %v5754 = vunpack.c.h.b16 %v5581
    %v5755 = vunpack.c.l.b16 %v5582
    %v5756 = vunpack.c.h.b16 %v5582
    %v5757 = vunpack.c.l.b16 %v5583
    %v5758 = vunpack.c.h.b16 %v5583
    %v5759 = vunpack.c.l.b16 %v5584
    %v5760 = vunpack.c.h.b16 %v5584
    %v5761 = vunpack.c.l.b16 %v5585
    %v5762 = vunpack.c.h.b16 %v5585
    %v5763 = vunpack.c.l.b16 %v5586
    %v5764 = vunpack.c.h.b16 %v5586
    %v5765 = vunpack.c.l.b16 %v5587
    %v5766 = vunpack.c.h.b16 %v5587
    %v5767 = vunpack.c.l.b16 %v5588
    %v5768 = vunpack.c.h.b16 %v5588
    %v5769 = vunpack.c.l.b16 %v5589
    %v5770 = vunpack.c.h.b16 %v5589
    %v5771 = vunpack.c.l.b16 %v5590
    %v5772 = vunpack.c.h.b16 %v5590
    %v5773 = vunpack.c.l.b16 %v5591
    %v5774 = vunpack.c.h.b16 %v5591
    %v5775 = vunpack.c.l.b16 %v5592
    %v5776 = vunpack.c.h.b16 %v5592
    %v5777 = vunpack.c.l.b16 %v5593
    %v5778 = vunpack.c.h.b16 %v5593
    %v5779 = vunpack.c.l.b16 %v5594
    %v5780 = vunpack.c.h.b16 %v5594
    %v5781 = vunpack.c.l.b16 %v5595
    %v5782 = vunpack.c.h.b16 %v5595
    %v5783 = vunpack.c.l.b16 %v5596
    %v5784 = vunpack.c.h.b16 %v5596
    %v5785 = vunpack.c.l.b16 %v5597
    %v5786 = vunpack.c.h.b16 %v5597
    %v5787 = vunpack.c.l.b16 %v5598
    %v5788 = vunpack.c.h.b16 %v5598
    %v5789 = vunpack.c.l.b16 %v5599
    %v5790 = vunpack.c.h.b16 %v5599
    %v5791 = vunpack.c.l.b16 %v5600
    %v5792 = vunpack.c.h.b16 %v5600
    %v5793 = vunpack.c.l.b16 %v5601
    %v5794 = vunpack.c.h.b16 %v5601
    %v5795 = vunpack.c.l.b16 %v5602
    %v5796 = vunpack.c.h.b16 %v5602
    %v5797 = vunpack.c.l.b16 %v5603
    %v5798 = vunpack.c.h.b16 %v5603
    %v5799 = vunpack.c.l.b16 %v5604
    %v5800 = vunpack.c.h.b16 %v5604
    %v5801 = vunpack.c.l.b16 %v5605
    %v5802 = vunpack.c.h.b16 %v5605
    %v5803 = vunpack.c.l.b16 %v5606
    %v5804 = vunpack.c.h.b16 %v5606
    %v5805 = vunpack.c.l.b16 %v5607
    %v5806 = vunpack.c.h.b16 %v5607
    %v5807 = vunpack.c.l.b16 %v5608
    %v5808 = vunpack.c.h.b16 %v5608
    %v5809 = vunpack.c.l.b16 %v5609
    %v5810 = vunpack.c.h.b16 %v5609
    %v5811 = vunpack.c.l.b16 %v5610
    %v5812 = vunpack.c.h.b16 %v5610
    %v5813 = vunpack.c.l.b16 %v5611
    %v5814 = vunpack.c.h.b16 %v5611
    %v5815 = vpack.c.b16 %v5689, %v5687
    %v5816 = vpack.c.b16 %v5690, %v5688
    %v5817 = vpack.c.b16 %v5693, %v5691
    %v5818 = vpack.c.b16 %v5694, %v5692
    %v5819 = vpack.c.b16 %v5697, %v5695
    %v5820 = vpack.c.b16 %v5698, %v5696
    %v5821 = vpack.c.b16 %v5701, %v5699
    %v5822 = vpack.c.b16 %v5702, %v5700
    %v5823 = vpack.c.b16 %v5705, %v5703
    %v5824 = vpack.c.b16 %v5706, %v5704
    %v5825 = vpack.c.b16 %v5709, %v5707
    %v5826 = vpack.c.b16 %v5710, %v5708
    %v5827 = vpack.c.b16 %v5713, %v5711
    %v5828 = vpack.c.b16 %v5714, %v5712
    %v5829 = vpack.c.b16 %v5717, %v5715
    %v5830 = vpack.c.b16 %v5718, %v5716
    %v5831 = vpack.c.b16 %v5721, %v5719
    %v5832 = vpack.c.b16 %v5722, %v5720
    %v5833 = vpack.c.b16 %v5725, %v5723
    %v5834 = vpack.c.b16 %v5726, %v5724
    %v5835 = vpack.c.b16 %v5729, %v5727
    %v5836 = vpack.c.b16 %v5730, %v5728
    %v5837 = vpack.c.b16 %v5733, %v5731
    %v5838 = vpack.c.b16 %v5734, %v5732
    %v5839 = vpack.c.b16 %v5737, %v5735
    %v5840 = vpack.c.b16 %v5738, %v5736
    %v5841 = vpack.c.b16 %v5741, %v5739
    %v5842 = vpack.c.b16 %v5742, %v5740
    %v5843 = vpack.c.b16 %v5745, %v5743
    %v5844 = vpack.c.b16 %v5746, %v5744
    %v5845 = vpack.c.b16 %v5749, %v5747
    %v5846 = vpack.c.b16 %v5750, %v5748
    %v5847 = vpack.c.b16 %v5753, %v5751
    %v5848 = vpack.c.b16 %v5754, %v5752
    %v5849 = vpack.c.b16 %v5757, %v5755
    %v5850 = vpack.c.b16 %v5758, %v5756
    %v5851 = vpack.c.b16 %v5761, %v5759
    %v5852 = vpack.c.b16 %v5762, %v5760
    %v5853 = vpack.c.b16 %v5765, %v5763
    %v5854 = vpack.c.b16 %v5766, %v5764
    %v5855 = vpack.c.b16 %v5769, %v5767
    %v5856 = vpack.c.b16 %v5770, %v5768
    %v5857 = vpack.c.b16 %v5773, %v5771
    %v5858 = vpack.c.b16 %v5774, %v5772
    %v5859 = vpack.c.b16 %v5777, %v5775
    %v5860 = vpack.c.b16 %v5778, %v5776
    %v5861 = vpack.c.b16 %v5781, %v5779
    %v5862 = vpack.c.b16 %v5782, %v5780
    %v5863 = vpack.c.b16 %v5785, %v5783
    %v5864 = vpack.c.b16 %v5786, %v5784
    %v5865 = vpack.c.b16 %v5789, %v5787
    %v5866 = vpack.c.b16 %v5790, %v5788
    %v5867 = vpack.c.b16 %v5793, %v5791
    %v5868 = vpack.c.b16 %v5794, %v5792
    %v5869 = vpack.c.b16 %v5797, %v5795
    %v5870 = vpack.c.b16 %v5798, %v5796
    %v5871 = vpack.c.b16 %v5801, %v5799
    %v5872 = vpack.c.b16 %v5802, %v5800
    %v5873 = vpack.c.b16 %v5805, %v5803
    %v5874 = vpack.c.b16 %v5806, %v5804
    %v5875 = vpack.c.b16 %v5809, %v5807
    %v5876 = vpack.c.b16 %v5810, %v5808
    %v5877 = vpack.c.b16 %v5813, %v5811
    %v5878 = vpack.c.b16 %v5814, %v5812
    %5943 = vmatprep.subr.bf16.mxu0 %v5816
    %5944 = vmatpush1.bf16.msra.mxu0 %v5815
    %5945 = vmatprep.subr.bf16.mxu0 %v5818
    %5946 = vmatpush1.bf16.msra.mxu0 %v5817
    %5947 = vmatprep.subr.bf16.mxu0 %v5820
    %5948 = vmatpush1.bf16.msra.mxu0 %v5819
    %5949 = vmatprep.subr.bf16.mxu0 %v5822
    %5950 = vmatpush1.bf16.msra.mxu0 %v5821
    %5951 = vmatprep.subr.bf16.mxu0 %v5824
    %5952 = vmatpush1.bf16.msra.mxu0 %v5823
    %5953 = vmatprep.subr.bf16.mxu0 %v5826
    %5954 = vmatpush1.bf16.msra.mxu0 %v5825
    %5955 = vmatprep.subr.bf16.mxu0 %v5828
    %5956 = vmatpush1.bf16.msra.mxu0 %v5827
    %5957 = vmatprep.subr.bf16.mxu0 %v5830
    %5958 = vmatpush1.bf16.msra.mxu0 %v5829
    %5959 = vmatprep.subr.bf16.mxu0 %v5832
    %5960 = vmatpush1.bf16.msra.mxu0 %v5831
    %5961 = vmatprep.subr.bf16.mxu0 %v5834
    %5962 = vmatpush1.bf16.msra.mxu0 %v5833
    %5963 = vmatprep.subr.bf16.mxu0 %v5836
    %5964 = vmatpush1.bf16.msra.mxu0 %v5835
    %5965 = vmatprep.subr.bf16.mxu0 %v5838
    %5966 = vmatpush1.bf16.msra.mxu0 %v5837
    %5967 = vmatprep.subr.bf16.mxu0 %v5840
    %5968 = vmatpush1.bf16.msra.mxu0 %v5839
    %5969 = vmatprep.subr.bf16.mxu0 %v5842
    %5970 = vmatpush1.bf16.msra.mxu0 %v5841
    %5971 = vmatprep.subr.bf16.mxu0 %v5844
    %5972 = vmatpush1.bf16.msra.mxu0 %v5843
    %5973 = vmatprep.subr.bf16.mxu0 %v5846
    %5974 = vmatpush1.bf16.msra.mxu0 %v5845
    %5975 = vmatprep.mubr.bf16.mxu0 %v5545
    %5976 = vmatmul.mubr.bf16.gmra.mrb[0].mxu0 %v5544
    %v5977 = vpop.f32.mrb[0].mxu0
    %v5978 = vadd.f32 %v5616, %v5977
    %v5979 = vpop.f32.mrb[0].mxu0
    %v5980 = vadd.f32 %v5620, %v5979
    %v5981 = vpop.f32.mrb[0].mxu0
    %v5982 = vadd.f32 %v5616, %v5981
    %v5983 = vpop.f32.mrb[0].mxu0
    %v5984 = vadd.f32 %v5620, %v5983
    %5985 = vdwg.mxu0
    %5986 = vmatprep.subr.bf16.mxu0 %v5848
    %5987 = vmatpush1.bf16.msra.mxu0 %v5847
    %5988 = vmatprep.subr.bf16.mxu0 %v5850
    %5989 = vmatpush1.bf16.msra.mxu0 %v5849
    %5990 = vmatprep.subr.bf16.mxu0 %v5852
    %5991 = vmatpush1.bf16.msra.mxu0 %v5851
    %5992 = vmatprep.subr.bf16.mxu0 %v5854
    %5993 = vmatpush1.bf16.msra.mxu0 %v5853
    %5994 = vmatprep.subr.bf16.mxu0 %v5856
    %5995 = vmatpush1.bf16.msra.mxu0 %v5855
    %5996 = vmatprep.subr.bf16.mxu0 %v5858
    %5997 = vmatpush1.bf16.msra.mxu0 %v5857
    %5998 = vmatprep.subr.bf16.mxu0 %v5860
    %5999 = vmatpush1.bf16.msra.mxu0 %v5859
    %6000 = vmatprep.subr.bf16.mxu0 %v5862
    %6001 = vmatpush1.bf16.msra.mxu0 %v5861
    %6002 = vmatprep.subr.bf16.mxu0 %v5864
    %6003 = vmatpush1.bf16.msra.mxu0 %v5863
    %6004 = vmatprep.subr.bf16.mxu0 %v5866
    %6005 = vmatpush1.bf16.msra.mxu0 %v5865
    %6006 = vmatprep.subr.bf16.mxu0 %v5868
    %6007 = vmatpush1.bf16.msra.mxu0 %v5867
    %6008 = vmatprep.subr.bf16.mxu0 %v5870
    %6009 = vmatpush1.bf16.msra.mxu0 %v5869
    %6010 = vmatprep.subr.bf16.mxu0 %v5872
    %6011 = vmatpush1.bf16.msra.mxu0 %v5871
    %6012 = vmatprep.subr.bf16.mxu0 %v5874
    %6013 = vmatpush1.bf16.msra.mxu0 %v5873
    %6014 = vmatprep.subr.bf16.mxu0 %v5876
    %6015 = vmatpush1.bf16.msra.mxu0 %v5875
    %6016 = vmatprep.subr.bf16.mxu0 %v5878
    %6017 = vmatpush1.bf16.msra.mxu0 %v5877
    %6018 = vmatprep.mubr.bf16.mxu0 %v5547
    %6019 = vmatmul.mubr.bf16.gmra.mrb[0].mxu0 %v5546
    %v6020 = vpop.f32.mrb[0].mxu0
    %v6021 = vadd.f32 %v5978, %v6020
    %v6022 = vpop.f32.mrb[0].mxu0
    %v6023 = vadd.f32 %v5980, %v6022
    %v6024 = vpop.f32.mrb[0].mxu0
    %v6025 = vadd.f32 %v5982, %v6024
    %v6026 = vpop.f32.mrb[0].mxu0
    %v6027 = vadd.f32 %v5984, %v6026
    %6028 = vdwg.mxu0
    %v6029 = vmul.f32 %v6021, %v103
    %v6030 = vmul.f32 %v6023, %v103
    %v6031 = vmul.f32 %v6025, %v104
    %v6032 = vmul.f32 %v6027, %v104
    %v6033 = vadd.f32 %v6029, %v6031
    %v6034 = vrot.slane %v6033, 4
    %v6035 = vadd.f32 %v6033, %v6034
    %v6036 = vrot.slane %v6035, 2
    %v6037 = vadd.f32 %v6035, %v6036
    %v6038 = vrot.slane %v6037, 1
    %v6039 = vadd.f32 %v6037, %v6038
    %v6040 = vadd.f32 %v6030, %v6032
    %v6041 = vrot.slane %v6040, 4
    %v6042 = vadd.f32 %v6040, %v6041
    %v6043 = vrot.slane %v6042, 2
    %v6044 = vadd.f32 %v6042, %v6043
    %v6045 = vrot.slane %v6044, 1
    %v6046 = vadd.f32 %v6044, %v6045
    %v6047 = vmul.f32 %v6021, %v6029
    %v6048 = vmul.f32 %v6023, %v6030
    %v6049 = vmul.f32 %v6025, %v6031
    %v6050 = vmul.f32 %v6027, %v6032
    %v6051 = vadd.f32 %v6047, %v6049
    %v6052 = vrot.slane %v6051, 4
    %v6053 = vadd.f32 %v6051, %v6052
    %v6054 = vrot.slane %v6053, 2
    %v6055 = vadd.f32 %v6053, %v6054
    %v6056 = vrot.slane %v6055, 1
    %v6057 = vadd.f32 %v6055, %v6056
    %v6058 = vadd.f32 %v6048, %v6050
    %v6059 = vrot.slane %v6058, 4
    %v6060 = vadd.f32 %v6058, %v6059
    %v6061 = vrot.slane %v6060, 2
    %v6062 = vadd.f32 %v6060, %v6061
    %v6063 = vrot.slane %v6062, 1
    %v6064 = vadd.f32 %v6062, %v6063
    %v6065 = vmul.f32 %v6039, %v6039
    %v6066 = vmul.f32 %v6046, %v6046
    %v6067 = vsub.f32 %v6057, %v6065
    %v6068 = vsub.f32 %v6064, %v6066
    %v6069 = vadd.f32 %v6067, 1e-05
    %v6070 = vadd.f32 %v6068, 1e-05
    %v6071 = vrsqrt.pop %v6069
    %v6072 = vrsqrt.pop %v6070
    %v6075 = vcombine.low %v6071, %v6072
    %v6077 = vunpack.c.l.s4 1966171168
    %v6078 = vunpack.c.0.s8 %v6077
    %v6079 = vlaneseq
    %v6080 = vshrl.u32 %v6079, 7
    %v6081 = vsub.s32 %v6078, %v6080
    %v6082 = vrot.slane %v6075, %v6081
    %v6084 = vunpack.c.l.s4 1966171168
    %v6085 = vunpack.c.0.s8 %v6084
    %v6086 = vlaneseq
    %v6087 = vshrl.u32 %v6086, 7
    %v6088 = vsub.s32 %v6085, %v6087
    %v6089 = vrot.slane %v6082, %v6088
    %v6091 = vmul.f32 %v121, %v6089
    %v6093 = vlaneseq
    %v6094 = vshrl.u32 %v6093, 7
    %v6095 = vsub.s32 0, %v6094
    %v6096 = vrot.slane %v6091, %v6095
    %v6097 = vlaneseq
    %v6098 = vshrl.u32 %v6097, 7
    %v6099 = vsub.s32 1, %v6098
    %v6100 = vrot.slane %v6091, %v6099
    %v6103 = vmul.f32 %v6039, %v6096
    %v6104 = vmul.f32 %v6046, %v6100
    %v6107 = vcombine.low %v6103, %v6104
    %v6109 = vunpack.c.l.s4 1966171168
    %v6110 = vunpack.c.0.s8 %v6109
    %v6111 = vlaneseq
    %v6112 = vshrl.u32 %v6111, 7
    %v6113 = vsub.s32 %v6110, %v6112
    %v6114 = vrot.slane %v6107, %v6113
    %v6116 = vunpack.c.l.s4 1966171168
    %v6117 = vunpack.c.0.s8 %v6116
    %v6118 = vlaneseq
    %v6119 = vshrl.u32 %v6118, 7
    %v6120 = vsub.s32 %v6117, %v6119
    %v6121 = vrot.slane %v6114, %v6120
    %v6123 = vsub.f32 %v123, %v6121
    %v6124 = vmul.f32 %v6021, %v6096
    %v6125 = vmul.f32 %v6023, %v6100
    %v6126 = vmul.f32 %v6025, %v6096
    %v6127 = vmul.f32 %v6027, %v6100
    %v6129 = vlaneseq
    %v6130 = vshrl.u32 %v6129, 7
    %v6131 = vsub.s32 0, %v6130
    %v6132 = vrot.slane %v6123, %v6131
    %v6133 = vlaneseq
    %v6134 = vshrl.u32 %v6133, 7
    %v6135 = vsub.s32 1, %v6134
    %v6136 = vrot.slane %v6123, %v6135
    %v6139 = vadd.f32 %v6124, %v6132
    %v6140 = vadd.f32 %v6125, %v6136
    %v6141 = vadd.f32 %v6126, %v6132
    %v6142 = vadd.f32 %v6127, %v6136
    %vm6143 = vcmp.gt.f32.partialorder %v6139, 0.0
    %vm6144 = vcmp.gt.f32.partialorder %v6140, 0.0
    %vm6145 = vcmp.gt.f32.partialorder %v6141, 0.0
    %vm6146 = vcmp.gt.f32.partialorder %v6142, 0.0
    %v6147 = vmul.f32 %v6139, 0.2
    %v6148 = vmul.f32 %v6140, 0.2
    %v6149 = vmul.f32 %v6141, 0.2
    %v6150 = vmul.f32 %v6142, 0.2
    %v6151 = vsel %vm6143, %v6139, %v6147
    %v6152 = vsel %vm6144, %v6140, %v6148
    %v6153 = vsel %vm6145, %v6141, %v6149
    %v6154 = vsel %vm6146, %v6142, %v6150
    %v6156 = vlaneseq
    %v6157 = vshrl.u32 %v6156, 7
    %v6158 = vsub.s32 0, %v6157
    %v6159 = vrot.slane %v125, %v6158
    %v6160 = vlaneseq
    %v6161 = vshrl.u32 %v6160, 7
    %v6162 = vsub.s32 1, %v6161
    %v6163 = vrot.slane %v125, %v6162
    %v6166 = vmul.f32 %v6151, %v6159
    %v6167 = vmul.f32 %v6152, %v6163
    %v6168 = vmul.f32 %v6153, %v6159
    %v6169 = vmul.f32 %v6154, %v6163
    %v6170 = vadd.f32 %v6166, %v6167
    %6171 = vadd.xlane.f32.xlu0 %v6170
    %v6172 = vpop.xlane.xlu0 %6171
    %v6173 = vadd.f32 %v6168, %v6169
    %6174 = vadd.xlane.f32.xlu0 %v6173
    %v6175 = vpop.xlane.xlu0 %6174
    %v6176 = vadd.f32 %v6172, %v126
    %v6177 = vadd.f32 %v6175, %v126
    %v6178 = vxor.u32 %v6176, 2147483648
    %v6179 = vxor.u32 %v6177, 2147483648
    %v6180 = vmul.f32 %v6178, 1.442695
    %v6181 = vpow.pop %v6180
    %v6182 = vmul.f32 %v6179, 1.442695
    %v6183 = vpow.pop %v6182
    %v6184 = vadd.f32 %v6181, 1.0
    %v6185 = vadd.f32 %v6183, 1.0
    %v6186 = vrcp.pop %v6184
    %v6187 = vmul.f32 1.0, %v6186
    %v6188 = vrcp.pop %v6185
    %v6189 = vmul.f32 1.0, %v6188
    %vm6190 = vcmask 7168
    %6191 = vst.msk [vmem:[%s8] sm:$0xff] %vm6190, %v6187
    %6192 = vst.msk [vmem:[%s8 + $0x8] sm:$0xff] %vm6190, %v6189
    // Predicated region
    $region54: #{discriminator_forward.1} parent=1 // pred_check
      _
    $region55: #{discriminator_forward.1} parent=1 // pred_check_branch
      %6194 = sbr.rel (0) target = $region57
    $region56: #{discriminator_forward.1} parent=1 // pred_region
      _
    $region57: #{discriminator_forward.1} parent=1 // pred_fallthru
      _
    // Predicated region
    $region58: #{discriminator_forward.1} parent=1 // pred_check
      _
    $region59: #{discriminator_forward.1} parent=1 // pred_check_branch
      %6196 = sbr.rel (0) target = $region61
    $region60: #{discriminator_forward.1} parent=1 // pred_region
      _
    $region61: #{discriminator_forward.1} parent=1 // pred_fallthru
      _
    %6197 = vsyncpa [#allocation3], 1
    %6198 = vsyncpa [#allocation5], 1
    %6199 = vsyncpa [#allocation8], 1

</llo_original>
